<compile_context>
chip_gen: v6e
topology: v6e:2x2x1
jax: 0.10.0
libtpu: 0.0.40
codegen_flags: <defaults>
</compile_context>

<pallas_src>
import functools

import jax
import jax.numpy as jnp
from jax.experimental import pallas as pl
from jax.experimental.pallas import tpu as pltpu


def _segmented_lane_max(x, seg, numpy_roll):
    """Max over aligned `seg`-wide lane segments, broadcast back to every lane.

    Hypercube/butterfly exchange: log2(seg) steps of two lane rotations (XLU)
    plus one select and one max (VPU).  Rolls wrap around the full lane axis,
    but wrapped lanes are never selected by the (lane & step) mask, so
    segments never mix.  `seg` must be a power of two dividing the lane width.
    """
    width = x.shape[-1]
    lane = jax.lax.broadcasted_iota(jnp.int32, (1, width), 1)
    step = 1
    while step < seg:
        fwd = pltpu.roll(x, width - step, axis=1)   # np semantics: lane i <- i+step
        bwd = pltpu.roll(x, step, axis=1)           # np semantics: lane i <- i-step
        up, down = (fwd, bwd) if numpy_roll else (bwd, fwd)
        x = jnp.maximum(x, jnp.where((lane & step) == 0, up, down))
        step *= 2
    return x


def _top_encoder_kernel(numpy_roll,
                        x_ref, x0_ref, wkv_ref, bkv_ref, wq_ref, bq_ref,
                        cos_ref, sin_ref, rot_ref, bh_ref, bht_ref, ind_ref,
                        o_ref):
    z_tile, L = o_ref.shape
    rows = x_ref.shape[0]
    dk = rows // z_tile
    dh = bh_ref.shape[1]
    de = L // dh
    f32 = jnp.float32

    # ---- fused lane-dense projections (bf16/f32 operands, f32 accumulation) -
    kv = jnp.dot(x_ref[...], wkv_ref[...], preferred_element_type=f32) + bkv_ref[...]
    q = jnp.dot(x0_ref[...], wq_ref[...], preferred_element_type=f32) + bq_ref[...]
    k = kv[:, :L]                    # (rows, L) keys
    v = kv[:, L:]                    # (rows, L) values

    # ---- rotary: the cross-lane rotate_half runs on the (idle) MXU as a
    #      signed block permutation; (dk, L) cos/sin tables broadcast over the
    #      batch tile via a free 3-D view ------------------------------------
    k_rot = jnp.dot(k, rot_ref[...], preferred_element_type=f32)
    k3 = (k.reshape(z_tile, dk, L) * cos_ref[...][None]
          + k_rot.reshape(z_tile, dk, L) * sin_ref[...][None])

    # ---- per-(row, head) logits s = <q, k>: elementwise q*k (q broadcast
    #      over the dk positions), head-segment sum on the MXU ----------------
    qk = (k3 * q[:, None, :]).reshape(rows, L)
    s_h = jnp.dot(qk, bh_ref[...], preferred_element_type=f32)       # (rows, dh)
    sq_h = s_h * s_h

    # ---- inf_cube: cube, per-(row, head) max of |v^3| via the lane
    #      butterfly; the normalisation is folded into a per-head weight
    #      (one approx reciprocal per (row, head), not a full-width divide) ---
    v3 = v * v * v
    vmax = _segmented_lane_max(jnp.abs(v3), de, numpy_roll)          # (rows, L)
    vmax_h = jnp.dot(vmax, bh_ref[...], preferred_element_type=f32) * (1.0 / de)
    coeff = sq_h * pl.reciprocal(jnp.maximum(vmax_h, 1e-38), approx=True)
    coeff_l = jnp.dot(coeff, bht_ref[...], preferred_element_type=f32)  # (rows, L)

    # ---- sums over sequence positions on the MXU (row -> batch 0/1 matrix);
    #      normed_square denominator stays per (batch, head) ------------------
    numer = jnp.dot(ind_ref[...], coeff_l * v3, preferred_element_type=f32)
    denom = jnp.dot(ind_ref[...], sq_h, preferred_element_type=f32)     # (z_tile, dh)
    inv_d = pl.reciprocal(jnp.maximum(denom, 1e-38), approx=True)
    o_ref[...] = (numer * jnp.dot(inv_d, bht_ref[...], preferred_element_type=f32)
                  ).astype(o_ref.dtype)


def top_encoder_forward(x, w_q, b_q, w_kv, b_kv, dim_head, dim_emb, *,
                        z_tile=None, mxu_dtype=jnp.bfloat16, numpy_roll=True):
    """TopEncoderBase.forward (mask=None) as a single Pallas TPU kernel.

    x:    (dz, dk, dim_in) float32
    w_q:  (dh*de, dim_in),   b_q:  (dh*de,)      -- proj_q
    w_kv: (2*dh*de, dim_in), b_kv: (2*dh*de,)    -- proj_kv
    Returns (dz, dh*de).
    """
    dz, dk, dim_in = x.shape
    dh, de = dim_head, dim_emb
    L = dh * de
    half = de // 2
    out_dtype = x.dtype
    assert de >= 2 and (de & (de - 1)) == 0, "dim_emb must be a power of two"
    assert dk % 8 == 0, "sequence length dk must be a multiple of 8 (sublane tile)"

    # Batch tile: sublane-aligned; keep >= 2 grid steps when dz allows so both
    # v7x TensorCores get work (the grid axis is marked "parallel").
    if z_tile is None:
        opts = [c for c in (32, 24, 16, 8) if dz % c == 0 and dz // c >= 2]
        z_tile = opts[0] if opts else dz
    assert dz % z_tile == 0
    assert z_tile == dz or z_tile % 8 == 0, "z_tile must be a multiple of 8"
    rows = z_tile * dk
    grid = (dz // z_tile,)

    # ---- projection weights (transposed; MXU operands optionally bf16) ------
    w_kv_t = w_kv.astype(mxu_dtype).T                      # (dim_in, 2L): [k | v]
    w_q_t = w_q.astype(mxu_dtype).T                        # (dim_in, L)
    b_kv2 = b_kv.astype(jnp.float32).reshape(1, 2 * L)
    b_q2 = b_q.astype(jnp.float32).reshape(1, L)

    # ---- rotary tables (same construction as belief.py's Rotary module) -----
    fh = 10000.0 ** jnp.arange(0, -1, -2.0 / de, dtype=jnp.float32)
    freq = jnp.concatenate([fh, fh[: fh.shape[0] - de % 2]])         # (de,)
    emb = jnp.arange(dk, dtype=jnp.float32)[:, None] * freq[None, :]
    cos_f = jnp.tile(jnp.cos(emb), (1, dh))                           # (dk, L)
    sin_f = jnp.tile(jnp.sin(emb), (1, dh))                           # (dk, L)

    # rotate_half as a signed block-diagonal (L, L) permutation (MXU operand).
    pb = jnp.zeros((de, de), jnp.float32)
    pb = pb.at[jnp.arange(half) + half, jnp.arange(half)].set(-1.0)
    pb = pb.at[jnp.arange(half), jnp.arange(half) + half].set(1.0)
    p_rot = jnp.kron(jnp.eye(dh, dtype=jnp.float32), pb)              # (L, L)

    # Head block-indicator (lane -> head), its transpose, row -> batch matrix.
    b_head = (jnp.arange(L)[:, None] // de == jnp.arange(dh)[None, :]
              ).astype(jnp.float32)                                   # (L, dh)
    bt_head = b_head.T                                                # (dh, L)
    ind = (jnp.arange(z_tile)[:, None] == jnp.arange(rows)[None, :] // dk
           ).astype(jnp.float32)                                      # (z_tile, rows)

    # ---- activations (q projection gets an un-replicated (dz, dim_in) input) -
    x2d = x.reshape(dz * dk, dim_in).astype(mxu_dtype)
    x0 = x[:, 0, :].astype(mxu_dtype)                                 # (dz, dim_in)

    # ---- explicit VMEM budget: streamed blocks x2 buffers, constants ideally
    #      x1, plus a bound on the live f32 intermediates ---------------------
    act = jnp.dtype(mxu_dtype).itemsize
    stream = 2 * (rows * dim_in * act + z_tile * dim_in * act
                  + z_tile * L * jnp.dtype(out_dtype).itemsize)
    const = (3 * dim_in * L * act + 3 * L * 4 + 2 * dk * L * 4 + L * L * 4
             + 2 * L * dh * 4 + z_tile * rows * 4)
    work = 10 * rows * 2 * L * 4
    vmem_limit = int(min(64 << 20, max(32 << 20, 2 * (stream + 2 * const + work))))

    kernel = functools.partial(_top_encoder_kernel, numpy_roll)

    def build(single_buffer_consts):
        def const_spec(shape):
            kw = ({"pipeline_mode": pl.Buffered(1)}
                  if single_buffer_consts else {})
            return pl.BlockSpec(shape, lambda z: (0, 0), **kw)

        in_specs = [
            pl.BlockSpec((rows, dim_in), lambda z: (z, 0)),     # x (all positions)
            pl.BlockSpec((z_tile, dim_in), lambda z: (z, 0)),   # x[:, 0]
            const_spec((dim_in, 2 * L)),                        # W_kv
            const_spec((1, 2 * L)),                             # b_kv
            const_spec((dim_in, L)),                            # W_q
            const_spec((1, L)),                                 # b_q
            const_spec((dk, L)),                                # cos
            const_spec((dk, L)),                                # sin
            const_spec((L, L)),                                 # rotate_half permutation
            const_spec((L, dh)),                                # head indicator
            const_spec((dh, L)),                                # head indicator^T
            const_spec((z_tile, rows)),                         # row -> batch sum
        ]
        return pl.pallas_call(
            kernel,
            out_shape=jax.ShapeDtypeStruct((dz, L), out_dtype),
            grid_spec=pltpu.PrefetchScalarGridSpec(
                num_scalar_prefetch=0,
                grid=grid,
                in_specs=in_specs,
                out_specs=pl.BlockSpec((z_tile, L), lambda z: (z, 0)),
            ),
            compiler_params=pltpu.CompilerParams(
                dimension_semantics=("parallel",),
                vmem_limit_bytes=vmem_limit,
            ),
        )

    args = (x2d, x0, w_kv_t, b_kv2, w_q_t, b_q2, cos_f, sin_f, p_rot,
            b_head, bt_head, ind)

    # Constants have a fixed block index, so request single buffering for them
    # (halves their VMEM footprint); fall back to default double buffering if
    # this JAX/Mosaic build rejects pl.Buffered(1).
    try:
        out = build(True)(*args)
        jax.block_until_ready(out)
        return out
    except Exception:                                   # pragma: no cover
        return build(False)(*args)


def top_encoder_reference(x, w_q, b_q, w_kv, b_kv, dim_head, dim_emb):
    """Pure-JAX reference mirroring the PyTorch forward (mask=None)."""
    dz, dk, dim_in = x.shape
    dh, de = dim_head, dim_emb
    hp = jax.lax.Precision.HIGHEST

    kv = (jnp.einsum('zki,oi->zko', x, w_kv, precision=hp) + b_kv).reshape(
        dz, dk, 2, dh, de)
    q = (jnp.einsum('zi,oi->zo', x[:, 0], w_q, precision=hp) + b_q).reshape(
        dz, dh, de)

    fh = 10000.0 ** jnp.arange(0, -1, -2.0 / de, dtype=jnp.float32)
    freq = jnp.concatenate([fh, fh[: fh.shape[0] - de % 2]])
    emb = jnp.arange(dk, dtype=jnp.float32)[:, None] * freq[None, :]
    cos = jnp.cos(emb)[None, :, None, :]
    sin = jnp.sin(emb)[None, :, None, :]

    kk = kv[:, :, 0]
    t1, t2 = kk[..., :de // 2], kk[..., de // 2:]
    k = kk * cos + jnp.concatenate([-t2, t1], axis=-1) * sin

    v3 = kv[:, :, 1] ** 3
    v = v3 / jnp.maximum(jnp.max(jnp.abs(v3), axis=-1, keepdims=True), 1e-38)

    s = jnp.einsum('zhe,zkhe->zkh', q, k, precision=hp)
    s2 = s * s
    w = s2 / jnp.maximum(jnp.sum(s2, axis=-2, keepdims=True), 1e-38)
    out = jnp.einsum('zkh,zkhe->zhe', w, v, precision=hp)
    return out.reshape(dz, dh * de)


if __name__ == "__main__":
    # Small, module-consistent shapes: batch=16, seq=8, feat=16, heads=8, emb=32.
    dz, dk, dim_in = 16, 8, 16
    dim_head, dim_emb = 8, 32
    L = dim_head * dim_emb

    key = jax.random.PRNGKey(0)
    kx, kq, kbq, kkv, kbkv = jax.random.split(key, 5)
    x = jax.random.normal(kx, (dz, dk, dim_in), dtype=jnp.float32)
    w_q = jax.random.normal(kq, (L, dim_in), jnp.float32) / jnp.sqrt(float(dim_in))
    b_q = 0.01 * jax.random.normal(kbq, (L,), jnp.float32)
    w_kv = jax.random.normal(kkv, (2 * L, dim_in), jnp.float32) / jnp.sqrt(float(dim_in))
    b_kv = 0.01 * jax.random.normal(kbkv, (2 * L,), jnp.float32)

    ref = top_encoder_reference(x, w_q, b_q, w_kv, b_kv, dim_head, dim_emb)

    def run(mxu_dtype, numpy_roll=True):
        out = top_encoder_forward(x, w_q, b_q, w_kv, b_kv, dim_head, dim_emb,
                                  mxu_dtype=mxu_dtype, numpy_roll=numpy_roll)
        return jax.block_until_ready(out)

    # f32 MXU operands: the strict functional check.
    out32 = run(jnp.float32)
    numpy_roll = True
    if float(jnp.max(jnp.abs(out32 - ref))) > 2e-2:
        # Zero-cost safety net replacing the old roll-direction probe: rebuild
        # the segmented-max butterfly with the opposite rotate convention.
        numpy_roll = False
        out32 = run(jnp.float32, numpy_roll=False)
    assert out32.shape == (dz, L), out32.shape
    assert jnp.allclose(out32, ref, rtol=2e-2, atol=2e-2), (
        float(jnp.max(jnp.abs(out32 - ref))))

    # bf16 MXU operands (default fast path on v6e/v7x): loose sanity check.
    out16 = run(jnp.bfloat16, numpy_roll=numpy_roll)
    assert out16.shape == (dz, L), out16.shape
    assert jnp.allclose(out16, ref, rtol=8e-2, atol=8e-2), (
        float(jnp.max(jnp.abs(out16 - ref))))

    print("KERNEL_OK")
</pallas_src>

<mosaic_0001>
module attributes {stable_mosaic.version = 11 : i64} {
  func.func @_top_encoder_kernel(%arg0: i32, %arg1: memref<64x16xf32, #tpu.memory_space<vmem>>, %arg2: memref<8x16xf32, #tpu.memory_space<vmem>>, %arg3: memref<16x512xf32, #tpu.memory_space<vmem>>, %arg4: memref<1x512xf32, #tpu.memory_space<vmem>>, %arg5: memref<16x256xf32, #tpu.memory_space<vmem>>, %arg6: memref<1x256xf32, #tpu.memory_space<vmem>>, %arg7: memref<8x256xf32, #tpu.memory_space<vmem>>, %arg8: memref<8x256xf32, #tpu.memory_space<vmem>>, %arg9: memref<256x256xf32, #tpu.memory_space<vmem>>, %arg10: memref<256x8xf32, #tpu.memory_space<vmem>>, %arg11: memref<8x256xf32, #tpu.memory_space<vmem>>, %arg12: memref<8x64xf32, #tpu.memory_space<vmem>>, %arg13: memref<8x256xf32, #tpu.memory_space<vmem>>) attributes {dimension_semantics = [#tpu.dimension_semantics<parallel>], iteration_bounds = array<i64: 2>, scalar_prefetch = 0 : i64, scratch_operands = 0 : i64, tpu.core_type = #tpu.core_type<tc>, window_params = [{transform_indices = @transform_0, window_bounds = array<i64: 64, 16>}, {transform_indices = @transform_1, window_bounds = array<i64: 8, 16>}, {pipeline_mode = #tpu.pipeline_mode<synchronous>, transform_indices = @transform_2, window_bounds = array<i64: 16, 512>}, {pipeline_mode = #tpu.pipeline_mode<synchronous>, transform_indices = @transform_3, window_bounds = array<i64: 1, 512>}, {pipeline_mode = #tpu.pipeline_mode<synchronous>, transform_indices = @transform_4, window_bounds = array<i64: 16, 256>}, {pipeline_mode = #tpu.pipeline_mode<synchronous>, transform_indices = @transform_5, window_bounds = array<i64: 1, 256>}, {pipeline_mode = #tpu.pipeline_mode<synchronous>, transform_indices = @transform_6, window_bounds = array<i64: 8, 256>}, {pipeline_mode = #tpu.pipeline_mode<synchronous>, transform_indices = @transform_7, window_bounds = array<i64: 8, 256>}, {pipeline_mode = #tpu.pipeline_mode<synchronous>, transform_indices = @transform_8, window_bounds = array<i64: 256, 256>}, {pipeline_mode = #tpu.pipeline_mode<synchronous>, transform_indices = @transform_9, window_bounds = array<i64: 256, 8>}, {pipeline_mode = #tpu.pipeline_mode<synchronous>, transform_indices = @transform_10, window_bounds = array<i64: 8, 256>}, {pipeline_mode = #tpu.pipeline_mode<synchronous>, transform_indices = @transform_11, window_bounds = array<i64: 8, 64>}, {transform_indices = @transform_12, window_bounds = array<i64: 8, 256>}]} {
    %c0 = arith.constant 0 : index
    %c0_0 = arith.constant 0 : index
    %0 = vector.load %arg1[%c0, %c0_0] : memref<64x16xf32, #tpu.memory_space<vmem>>, vector<64x16xf32>
    %c0_1 = arith.constant 0 : index
    %c0_2 = arith.constant 0 : index
    %1 = vector.load %arg3[%c0_1, %c0_2] : memref<16x512xf32, #tpu.memory_space<vmem>>, vector<16x512xf32>
    %cst = arith.constant dense<0.000000e+00> : vector<64x512xf32>
    %2 = tpu.matmul %0, %1, %cst {dimension_numbers = #tpu.dot_dimension_numbers<[1], [0], [0], [1], [0, 0, 1, 1], [], []>} : vector<64x16xf32>, vector<16x512xf32>, vector<64x512xf32> -> vector<64x512xf32>
    %c0_3 = arith.constant 0 : index
    %c0_4 = arith.constant 0 : index
    %3 = vector.load %arg4[%c0_3, %c0_4] : memref<1x512xf32, #tpu.memory_space<vmem>>, vector<1x512xf32>
    %4 = vector.broadcast %3 : vector<1x512xf32> to vector<64x512xf32>
    %5 = arith.addf %2, %4 : vector<64x512xf32>
    %c0_5 = arith.constant 0 : index
    %c0_6 = arith.constant 0 : index
    %6 = vector.load %arg2[%c0_5, %c0_6] : memref<8x16xf32, #tpu.memory_space<vmem>>, vector<8x16xf32>
    %c0_7 = arith.constant 0 : index
    %c0_8 = arith.constant 0 : index
    %7 = vector.load %arg5[%c0_7, %c0_8] : memref<16x256xf32, #tpu.memory_space<vmem>>, vector<16x256xf32>
    %cst_9 = arith.constant dense<0.000000e+00> : vector<8x256xf32>
    %8 = tpu.matmul %6, %7, %cst_9 {dimension_numbers = #tpu.dot_dimension_numbers<[1], [0], [0], [1], [0, 0, 1, 1], [], []>} : vector<8x16xf32>, vector<16x256xf32>, vector<8x256xf32> -> vector<8x256xf32>
    %c0_10 = arith.constant 0 : index
    %c0_11 = arith.constant 0 : index
    %9 = vector.load %arg6[%c0_10, %c0_11] : memref<1x256xf32, #tpu.memory_space<vmem>>, vector<1x256xf32>
    %10 = vector.broadcast %9 : vector<1x256xf32> to vector<8x256xf32>
    %11 = arith.addf %8, %10 : vector<8x256xf32>
    %12 = vector.extract_strided_slice %5 {offsets = [0, 0], sizes = [64, 256], strides = [1, 1]} : vector<64x512xf32> to vector<64x256xf32>
    %13 = vector.extract_strided_slice %5 {offsets = [0, 256], sizes = [64, 256], strides = [1, 1]} : vector<64x512xf32> to vector<64x256xf32>
    %c0_12 = arith.constant 0 : index
    %c0_13 = arith.constant 0 : index
    %14 = vector.load %arg9[%c0_12, %c0_13] : memref<256x256xf32, #tpu.memory_space<vmem>>, vector<256x256xf32>
    %cst_14 = arith.constant dense<0.000000e+00> : vector<64x256xf32>
    %15 = tpu.matmul %12, %14, %cst_14 {dimension_numbers = #tpu.dot_dimension_numbers<[1], [0], [0], [1], [0, 0, 1, 1], [], []>} : vector<64x256xf32>, vector<256x256xf32>, vector<64x256xf32> -> vector<64x256xf32>
    %16 = vector.shape_cast %12 : vector<64x256xf32> to vector<8x8x256xf32>
    %c0_15 = arith.constant 0 : index
    %c0_16 = arith.constant 0 : index
    %17 = vector.load %arg7[%c0_15, %c0_16] : memref<8x256xf32, #tpu.memory_space<vmem>>, vector<8x256xf32>
    %18 = vector.shape_cast %17 : vector<8x256xf32> to vector<1x8x256xf32>
    %19 = vector.broadcast %18 : vector<1x8x256xf32> to vector<8x8x256xf32>
    %20 = arith.mulf %16, %19 : vector<8x8x256xf32>
    %21 = vector.shape_cast %15 : vector<64x256xf32> to vector<8x8x256xf32>
    %c0_17 = arith.constant 0 : index
    %c0_18 = arith.constant 0 : index
    %22 = vector.load %arg8[%c0_17, %c0_18] : memref<8x256xf32, #tpu.memory_space<vmem>>, vector<8x256xf32>
    %23 = vector.shape_cast %22 : vector<8x256xf32> to vector<1x8x256xf32>
    %24 = vector.broadcast %23 : vector<1x8x256xf32> to vector<8x8x256xf32>
    %25 = arith.mulf %21, %24 : vector<8x8x256xf32>
    %26 = arith.addf %20, %25 : vector<8x8x256xf32>
    %27 = vector.shape_cast %11 : vector<8x256xf32> to vector<8x1x256xf32>
    %28 = vector.broadcast %27 : vector<8x1x256xf32> to vector<8x8x256xf32>
    %29 = arith.mulf %26, %28 : vector<8x8x256xf32>
    %30 = vector.shape_cast %29 : vector<8x8x256xf32> to vector<64x256xf32>
    %c0_19 = arith.constant 0 : index
    %c0_20 = arith.constant 0 : index
    %31 = vector.load %arg10[%c0_19, %c0_20] : memref<256x8xf32, #tpu.memory_space<vmem>>, vector<256x8xf32>
    %cst_21 = arith.constant dense<0.000000e+00> : vector<64x8xf32>
    %32 = tpu.matmul %30, %31, %cst_21 {dimension_numbers = #tpu.dot_dimension_numbers<[1], [0], [0], [1], [0, 0, 1, 1], [], []>} : vector<64x256xf32>, vector<256x8xf32>, vector<64x8xf32> -> vector<64x8xf32>
    %33 = arith.mulf %32, %32 : vector<64x8xf32>
    %34 = arith.mulf %13, %13 : vector<64x256xf32>
    %35 = arith.mulf %34, %13 : vector<64x256xf32>
    %36 = math.absf %35 : vector<64x256xf32>
    %37 = tpu.iota {dimensions = array<i32: 1>} : vector<1x256xi32>
    %c255_i32 = arith.constant 255 : i32
    %38 = tpu.dynamic_rotate %36 by %c255_i32 dim 1 : vector<64x256xf32>, i32 -> vector<64x256xf32>
    %c1_i32 = arith.constant 1 : i32
    %39 = tpu.dynamic_rotate %36 by %c1_i32 dim 1 : vector<64x256xf32>, i32 -> vector<64x256xf32>
    %c1_i32_22 = arith.constant 1 : i32
    %40 = vector.broadcast %c1_i32_22 : i32 to vector<1x256xi32>
    %41 = arith.andi %37, %40 : vector<1x256xi32>
    %c0_i32 = arith.constant 0 : i32
    %42 = vector.broadcast %c0_i32 : i32 to vector<1x256xi32>
    %43 = arith.cmpi eq, %41, %42 : vector<1x256xi32>
    %44 = vector.shape_cast %43 : vector<1x256xi1> to vector<1x256xi1>
    %45 = vector.broadcast %44 : vector<1x256xi1> to vector<64x256xi1>
    %46 = arith.select %45, %38, %39 : vector<64x256xi1>, vector<64x256xf32>
    %47 = arith.maximumf %36, %46 : vector<64x256xf32>
    %c254_i32 = arith.constant 254 : i32
    %48 = tpu.dynamic_rotate %47 by %c254_i32 dim 1 : vector<64x256xf32>, i32 -> vector<64x256xf32>
    %c2_i32 = arith.constant 2 : i32
    %49 = tpu.dynamic_rotate %47 by %c2_i32 dim 1 : vector<64x256xf32>, i32 -> vector<64x256xf32>
    %c2_i32_23 = arith.constant 2 : i32
    %50 = vector.broadcast %c2_i32_23 : i32 to vector<1x256xi32>
    %51 = arith.andi %37, %50 : vector<1x256xi32>
    %c0_i32_24 = arith.constant 0 : i32
    %52 = vector.broadcast %c0_i32_24 : i32 to vector<1x256xi32>
    %53 = arith.cmpi eq, %51, %52 : vector<1x256xi32>
    %54 = vector.shape_cast %53 : vector<1x256xi1> to vector<1x256xi1>
    %55 = vector.broadcast %54 : vector<1x256xi1> to vector<64x256xi1>
    %56 = arith.select %55, %48, %49 : vector<64x256xi1>, vector<64x256xf32>
    %57 = arith.maximumf %47, %56 : vector<64x256xf32>
    %c252_i32 = arith.constant 252 : i32
    %58 = tpu.dynamic_rotate %57 by %c252_i32 dim 1 : vector<64x256xf32>, i32 -> vector<64x256xf32>
    %c4_i32 = arith.constant 4 : i32
    %59 = tpu.dynamic_rotate %57 by %c4_i32 dim 1 : vector<64x256xf32>, i32 -> vector<64x256xf32>
    %c4_i32_25 = arith.constant 4 : i32
    %60 = vector.broadcast %c4_i32_25 : i32 to vector<1x256xi32>
    %61 = arith.andi %37, %60 : vector<1x256xi32>
    %c0_i32_26 = arith.constant 0 : i32
    %62 = vector.broadcast %c0_i32_26 : i32 to vector<1x256xi32>
    %63 = arith.cmpi eq, %61, %62 : vector<1x256xi32>
    %64 = vector.shape_cast %63 : vector<1x256xi1> to vector<1x256xi1>
    %65 = vector.broadcast %64 : vector<1x256xi1> to vector<64x256xi1>
    %66 = arith.select %65, %58, %59 : vector<64x256xi1>, vector<64x256xf32>
    %67 = arith.maximumf %57, %66 : vector<64x256xf32>
    %c248_i32 = arith.constant 248 : i32
    %68 = tpu.dynamic_rotate %67 by %c248_i32 dim 1 : vector<64x256xf32>, i32 -> vector<64x256xf32>
    %c8_i32 = arith.constant 8 : i32
    %69 = tpu.dynamic_rotate %67 by %c8_i32 dim 1 : vector<64x256xf32>, i32 -> vector<64x256xf32>
    %c8_i32_27 = arith.constant 8 : i32
    %70 = vector.broadcast %c8_i32_27 : i32 to vector<1x256xi32>
    %71 = arith.andi %37, %70 : vector<1x256xi32>
    %c0_i32_28 = arith.constant 0 : i32
    %72 = vector.broadcast %c0_i32_28 : i32 to vector<1x256xi32>
    %73 = arith.cmpi eq, %71, %72 : vector<1x256xi32>
    %74 = vector.shape_cast %73 : vector<1x256xi1> to vector<1x256xi1>
    %75 = vector.broadcast %74 : vector<1x256xi1> to vector<64x256xi1>
    %76 = arith.select %75, %68, %69 : vector<64x256xi1>, vector<64x256xf32>
    %77 = arith.maximumf %67, %76 : vector<64x256xf32>
    %c240_i32 = arith.constant 240 : i32
    %78 = tpu.dynamic_rotate %77 by %c240_i32 dim 1 : vector<64x256xf32>, i32 -> vector<64x256xf32>
    %c16_i32 = arith.constant 16 : i32
    %79 = tpu.dynamic_rotate %77 by %c16_i32 dim 1 : vector<64x256xf32>, i32 -> vector<64x256xf32>
    %c16_i32_29 = arith.constant 16 : i32
    %80 = vector.broadcast %c16_i32_29 : i32 to vector<1x256xi32>
    %81 = arith.andi %37, %80 : vector<1x256xi32>
    %c0_i32_30 = arith.constant 0 : i32
    %82 = vector.broadcast %c0_i32_30 : i32 to vector<1x256xi32>
    %83 = arith.cmpi eq, %81, %82 : vector<1x256xi32>
    %84 = vector.shape_cast %83 : vector<1x256xi1> to vector<1x256xi1>
    %85 = vector.broadcast %84 : vector<1x256xi1> to vector<64x256xi1>
    %86 = arith.select %85, %78, %79 : vector<64x256xi1>, vector<64x256xf32>
    %87 = arith.maximumf %77, %86 : vector<64x256xf32>
    %c0_31 = arith.constant 0 : index
    %c0_32 = arith.constant 0 : index
    %88 = vector.load %arg10[%c0_31, %c0_32] : memref<256x8xf32, #tpu.memory_space<vmem>>, vector<256x8xf32>
    %cst_33 = arith.constant dense<0.000000e+00> : vector<64x8xf32>
    %89 = tpu.matmul %87, %88, %cst_33 {dimension_numbers = #tpu.dot_dimension_numbers<[1], [0], [0], [1], [0, 0, 1, 1], [], []>} : vector<64x256xf32>, vector<256x8xf32>, vector<64x8xf32> -> vector<64x8xf32>
    %cst_34 = arith.constant 3.125000e-02 : f32
    %90 = vector.broadcast %cst_34 : f32 to vector<64x8xf32>
    %91 = arith.mulf %89, %90 : vector<64x8xf32>
    %cst_35 = arith.constant 9.99999935E-39 : f32
    %92 = vector.broadcast %cst_35 : f32 to vector<64x8xf32>
    %93 = arith.maximumf %91, %92 : vector<64x8xf32>
    %94 = tpu.reciprocal %93 {approx = true} : vector<64x8xf32> -> vector<64x8xf32>
    %95 = arith.mulf %33, %94 : vector<64x8xf32>
    %c0_36 = arith.constant 0 : index
    %c0_37 = arith.constant 0 : index
    %96 = vector.load %arg11[%c0_36, %c0_37] : memref<8x256xf32, #tpu.memory_space<vmem>>, vector<8x256xf32>
    %cst_38 = arith.constant dense<0.000000e+00> : vector<64x256xf32>
    %97 = tpu.matmul %95, %96, %cst_38 {dimension_numbers = #tpu.dot_dimension_numbers<[1], [0], [0], [1], [0, 0, 1, 1], [], []>} : vector<64x8xf32>, vector<8x256xf32>, vector<64x256xf32> -> vector<64x256xf32>
    %c0_39 = arith.constant 0 : index
    %c0_40 = arith.constant 0 : index
    %98 = vector.load %arg12[%c0_39, %c0_40] : memref<8x64xf32, #tpu.memory_space<vmem>>, vector<8x64xf32>
    %99 = arith.mulf %97, %35 : vector<64x256xf32>
    %cst_41 = arith.constant dense<0.000000e+00> : vector<8x256xf32>
    %100 = tpu.matmul %98, %99, %cst_41 {dimension_numbers = #tpu.dot_dimension_numbers<[1], [0], [0], [1], [0, 0, 1, 1], [], []>} : vector<8x64xf32>, vector<64x256xf32>, vector<8x256xf32> -> vector<8x256xf32>
    %c0_42 = arith.constant 0 : index
    %c0_43 = arith.constant 0 : index
    %101 = vector.load %arg12[%c0_42, %c0_43] : memref<8x64xf32, #tpu.memory_space<vmem>>, vector<8x64xf32>
    %cst_44 = arith.constant dense<0.000000e+00> : vector<8x8xf32>
    %102 = tpu.matmul %101, %33, %cst_44 {dimension_numbers = #tpu.dot_dimension_numbers<[1], [0], [0], [1], [0, 0, 1, 1], [], []>} : vector<8x64xf32>, vector<64x8xf32>, vector<8x8xf32> -> vector<8x8xf32>
    %cst_45 = arith.constant 9.99999935E-39 : f32
    %103 = vector.broadcast %cst_45 : f32 to vector<8x8xf32>
    %104 = arith.maximumf %102, %103 : vector<8x8xf32>
    %105 = tpu.reciprocal %104 {approx = true} : vector<8x8xf32> -> vector<8x8xf32>
    %c0_46 = arith.constant 0 : index
    %c0_47 = arith.constant 0 : index
    %106 = vector.load %arg11[%c0_46, %c0_47] : memref<8x256xf32, #tpu.memory_space<vmem>>, vector<8x256xf32>
    %cst_48 = arith.constant dense<0.000000e+00> : vector<8x256xf32>
    %107 = tpu.matmul %105, %106, %cst_48 {dimension_numbers = #tpu.dot_dimension_numbers<[1], [0], [0], [1], [0, 0, 1, 1], [], []>} : vector<8x8xf32>, vector<8x256xf32>, vector<8x256xf32> -> vector<8x256xf32>
    %108 = arith.mulf %100, %107 : vector<8x256xf32>
    %c0_49 = arith.constant 0 : index
    %c0_50 = arith.constant 0 : index
    %109 = vector.load %arg13[%c0_49, %c0_50] : memref<8x256xf32, #tpu.memory_space<vmem>>, vector<8x256xf32>
    tpu.vector_store %arg13[%c0_49, %c0_50], %108 {strides = array<i32>} : memref<8x256xf32, #tpu.memory_space<vmem>>, vector<8x256xf32>,
    return
  }
  func.func @transform_0(%arg0: i32) -> (i32, i32) {
    %c0_i32 = arith.constant 0 : i32
    %c0_i32_0 = arith.constant 0 : i32
    return %arg0, %c0_i32 : i32, i32
  }
  func.func @transform_1(%arg0: i32) -> (i32, i32) {
    %c0_i32 = arith.constant 0 : i32
    %c0_i32_0 = arith.constant 0 : i32
    return %arg0, %c0_i32 : i32, i32
  }
  func.func @transform_2(%arg0: i32) -> (i32, i32) {
    %c0_i32 = arith.constant 0 : i32
    %c0_i32_0 = arith.constant 0 : i32
    %c0_i32_1 = arith.constant 0 : i32
    return %c0_i32, %c0_i32_0 : i32, i32
  }
  func.func @transform_3(%arg0: i32) -> (i32, i32) {
    %c0_i32 = arith.constant 0 : i32
    %c0_i32_0 = arith.constant 0 : i32
    %c0_i32_1 = arith.constant 0 : i32
    return %c0_i32, %c0_i32_0 : i32, i32
  }
  func.func @transform_4(%arg0: i32) -> (i32, i32) {
    %c0_i32 = arith.constant 0 : i32
    %c0_i32_0 = arith.constant 0 : i32
    %c0_i32_1 = arith.constant 0 : i32
    return %c0_i32, %c0_i32_0 : i32, i32
  }
  func.func @transform_5(%arg0: i32) -> (i32, i32) {
    %c0_i32 = arith.constant 0 : i32
    %c0_i32_0 = arith.constant 0 : i32
    %c0_i32_1 = arith.constant 0 : i32
    return %c0_i32, %c0_i32_0 : i32, i32
  }
  func.func @transform_6(%arg0: i32) -> (i32, i32) {
    %c0_i32 = arith.constant 0 : i32
    %c0_i32_0 = arith.constant 0 : i32
    %c0_i32_1 = arith.constant 0 : i32
    return %c0_i32, %c0_i32_0 : i32, i32
  }
  func.func @transform_7(%arg0: i32) -> (i32, i32) {
    %c0_i32 = arith.constant 0 : i32
    %c0_i32_0 = arith.constant 0 : i32
    %c0_i32_1 = arith.constant 0 : i32
    return %c0_i32, %c0_i32_0 : i32, i32
  }
  func.func @transform_8(%arg0: i32) -> (i32, i32) {
    %c0_i32 = arith.constant 0 : i32
    %c0_i32_0 = arith.constant 0 : i32
    %c0_i32_1 = arith.constant 0 : i32
    return %c0_i32, %c0_i32_0 : i32, i32
  }
  func.func @transform_9(%arg0: i32) -> (i32, i32) {
    %c0_i32 = arith.constant 0 : i32
    %c0_i32_0 = arith.constant 0 : i32
    %c0_i32_1 = arith.constant 0 : i32
    return %c0_i32, %c0_i32_0 : i32, i32
  }
  func.func @transform_10(%arg0: i32) -> (i32, i32) {
    %c0_i32 = arith.constant 0 : i32
    %c0_i32_0 = arith.constant 0 : i32
    %c0_i32_1 = arith.constant 0 : i32
    return %c0_i32, %c0_i32_0 : i32, i32
  }
  func.func @transform_11(%arg0: i32) -> (i32, i32) {
    %c0_i32 = arith.constant 0 : i32
    %c0_i32_0 = arith.constant 0 : i32
    %c0_i32_1 = arith.constant 0 : i32
    return %c0_i32, %c0_i32_0 : i32, i32
  }
  func.func @transform_12(%arg0: i32) -> (i32, i32) {
    %c0_i32 = arith.constant 0 : i32
    %c0_i32_0 = arith.constant 0 : i32
    return %arg0, %c0_i32 : i32, i32
  }
}

module attributes {stable_mosaic.version = 11 : i64} {
  func.func @_top_encoder_kernel(%arg0: i32, %arg1: memref<64x16xf32, #tpu.memory_space<vmem>>, %arg2: memref<8x16xf32, #tpu.memory_space<vmem>>, %arg3: memref<16x512xf32, #tpu.memory_space<vmem>>, %arg4: memref<1x512xf32, #tpu.memory_space<vmem>>, %arg5: memref<16x256xf32, #tpu.memory_space<vmem>>, %arg6: memref<1x256xf32, #tpu.memory_space<vmem>>, %arg7: memref<8x256xf32, #tpu.memory_space<vmem>>, %arg8: memref<8x256xf32, #tpu.memory_space<vmem>>, %arg9: memref<256x256xf32, #tpu.memory_space<vmem>>, %arg10: memref<256x8xf32, #tpu.memory_space<vmem>>, %arg11: memref<8x256xf32, #tpu.memory_space<vmem>>, %arg12: memref<8x64xf32, #tpu.memory_space<vmem>>, %arg13: memref<8x256xf32, #tpu.memory_space<vmem>>) attributes {dimension_semantics = [#tpu.dimension_semantics<parallel>], iteration_bounds = array<i64: 2>, scalar_prefetch = 0 : i64, scratch_operands = 0 : i64, tpu.core_type = #tpu.core_type<tc>, window_params = [{transform_indices = @transform_0, window_bounds = array<i64: 64, 16>}, {transform_indices = @transform_1, window_bounds = array<i64: 8, 16>}, {pipeline_mode = #tpu.pipeline_mode<synchronous>, transform_indices = @transform_2, window_bounds = array<i64: 16, 512>}, {pipeline_mode = #tpu.pipeline_mode<synchronous>, transform_indices = @transform_3, window_bounds = array<i64: 1, 512>}, {pipeline_mode = #tpu.pipeline_mode<synchronous>, transform_indices = @transform_4, window_bounds = array<i64: 16, 256>}, {pipeline_mode = #tpu.pipeline_mode<synchronous>, transform_indices = @transform_5, window_bounds = array<i64: 1, 256>}, {pipeline_mode = #tpu.pipeline_mode<synchronous>, transform_indices = @transform_6, window_bounds = array<i64: 8, 256>}, {pipeline_mode = #tpu.pipeline_mode<synchronous>, transform_indices = @transform_7, window_bounds = array<i64: 8, 256>}, {pipeline_mode = #tpu.pipeline_mode<synchronous>, transform_indices = @transform_8, window_bounds = array<i64: 256, 256>}, {pipeline_mode = #tpu.pipeline_mode<synchronous>, transform_indices = @transform_9, window_bounds = array<i64: 256, 8>}, {pipeline_mode = #tpu.pipeline_mode<synchronous>, transform_indices = @transform_10, window_bounds = array<i64: 8, 256>}, {pipeline_mode = #tpu.pipeline_mode<synchronous>, transform_indices = @transform_11, window_bounds = array<i64: 8, 64>}, {transform_indices = @transform_12, window_bounds = array<i64: 8, 256>}]} {
    %c0 = arith.constant 0 : index
    %c0_0 = arith.constant 0 : index
    %0 = vector.load %arg1[%c0, %c0_0] : memref<64x16xf32, #tpu.memory_space<vmem>>, vector<64x16xf32>
    %c0_1 = arith.constant 0 : index
    %c0_2 = arith.constant 0 : index
    %1 = vector.load %arg3[%c0_1, %c0_2] : memref<16x512xf32, #tpu.memory_space<vmem>>, vector<16x512xf32>
    %cst = arith.constant dense<0.000000e+00> : vector<64x512xf32>
    %2 = tpu.matmul %0, %1, %cst {dimension_numbers = #tpu.dot_dimension_numbers<[1], [0], [0], [1], [0, 0, 1, 1], [], []>} : vector<64x16xf32>, vector<16x512xf32>, vector<64x512xf32> -> vector<64x512xf32>
    %c0_3 = arith.constant 0 : index
    %c0_4 = arith.constant 0 : index
    %3 = vector.load %arg4[%c0_3, %c0_4] : memref<1x512xf32, #tpu.memory_space<vmem>>, vector<1x512xf32>
    %4 = vector.broadcast %3 : vector<1x512xf32> to vector<64x512xf32>
    %5 = arith.addf %2, %4 : vector<64x512xf32>
    %c0_5 = arith.constant 0 : index
    %c0_6 = arith.constant 0 : index
    %6 = vector.load %arg2[%c0_5, %c0_6] : memref<8x16xf32, #tpu.memory_space<vmem>>, vector<8x16xf32>
    %c0_7 = arith.constant 0 : index
    %c0_8 = arith.constant 0 : index
    %7 = vector.load %arg5[%c0_7, %c0_8] : memref<16x256xf32, #tpu.memory_space<vmem>>, vector<16x256xf32>
    %cst_9 = arith.constant dense<0.000000e+00> : vector<8x256xf32>
    %8 = tpu.matmul %6, %7, %cst_9 {dimension_numbers = #tpu.dot_dimension_numbers<[1], [0], [0], [1], [0, 0, 1, 1], [], []>} : vector<8x16xf32>, vector<16x256xf32>, vector<8x256xf32> -> vector<8x256xf32>
    %c0_10 = arith.constant 0 : index
    %c0_11 = arith.constant 0 : index
    %9 = vector.load %arg6[%c0_10, %c0_11] : memref<1x256xf32, #tpu.memory_space<vmem>>, vector<1x256xf32>
    %10 = vector.broadcast %9 : vector<1x256xf32> to vector<8x256xf32>
    %11 = arith.addf %8, %10 : vector<8x256xf32>
    %12 = vector.extract_strided_slice %5 {offsets = [0, 0], sizes = [64, 256], strides = [1, 1]} : vector<64x512xf32> to vector<64x256xf32>
    %13 = vector.extract_strided_slice %5 {offsets = [0, 256], sizes = [64, 256], strides = [1, 1]} : vector<64x512xf32> to vector<64x256xf32>
    %c0_12 = arith.constant 0 : index
    %c0_13 = arith.constant 0 : index
    %14 = vector.load %arg9[%c0_12, %c0_13] : memref<256x256xf32, #tpu.memory_space<vmem>>, vector<256x256xf32>
    %cst_14 = arith.constant dense<0.000000e+00> : vector<64x256xf32>
    %15 = tpu.matmul %12, %14, %cst_14 {dimension_numbers = #tpu.dot_dimension_numbers<[1], [0], [0], [1], [0, 0, 1, 1], [], []>} : vector<64x256xf32>, vector<256x256xf32>, vector<64x256xf32> -> vector<64x256xf32>
    %16 = vector.shape_cast %12 : vector<64x256xf32> to vector<8x8x256xf32>
    %c0_15 = arith.constant 0 : index
    %c0_16 = arith.constant 0 : index
    %17 = vector.load %arg7[%c0_15, %c0_16] : memref<8x256xf32, #tpu.memory_space<vmem>>, vector<8x256xf32>
    %18 = vector.shape_cast %17 : vector<8x256xf32> to vector<1x8x256xf32>
    %19 = vector.broadcast %18 : vector<1x8x256xf32> to vector<8x8x256xf32>
    %20 = arith.mulf %16, %19 : vector<8x8x256xf32>
    %21 = vector.shape_cast %15 : vector<64x256xf32> to vector<8x8x256xf32>
    %c0_17 = arith.constant 0 : index
    %c0_18 = arith.constant 0 : index
    %22 = vector.load %arg8[%c0_17, %c0_18] : memref<8x256xf32, #tpu.memory_space<vmem>>, vector<8x256xf32>
    %23 = vector.shape_cast %22 : vector<8x256xf32> to vector<1x8x256xf32>
    %24 = vector.broadcast %23 : vector<1x8x256xf32> to vector<8x8x256xf32>
    %25 = arith.mulf %21, %24 : vector<8x8x256xf32>
    %26 = arith.addf %20, %25 : vector<8x8x256xf32>
    %27 = vector.shape_cast %11 : vector<8x256xf32> to vector<8x1x256xf32>
    %28 = vector.broadcast %27 : vector<8x1x256xf32> to vector<8x8x256xf32>
    %29 = arith.mulf %26, %28 : vector<8x8x256xf32>
    %30 = vector.shape_cast %29 : vector<8x8x256xf32> to vector<64x256xf32>
    %c0_19 = arith.constant 0 : index
    %c0_20 = arith.constant 0 : index
    %31 = vector.load %arg10[%c0_19, %c0_20] : memref<256x8xf32, #tpu.memory_space<vmem>>, vector<256x8xf32>
    %cst_21 = arith.constant dense<0.000000e+00> : vector<64x8xf32>
    %32 = tpu.matmul %30, %31, %cst_21 {dimension_numbers = #tpu.dot_dimension_numbers<[1], [0], [0], [1], [0, 0, 1, 1], [], []>} : vector<64x256xf32>, vector<256x8xf32>, vector<64x8xf32> -> vector<64x8xf32>
    %33 = arith.mulf %32, %32 : vector<64x8xf32>
    %34 = arith.mulf %13, %13 : vector<64x256xf32>
    %35 = arith.mulf %34, %13 : vector<64x256xf32>
    %36 = math.absf %35 : vector<64x256xf32>
    %37 = tpu.iota {dimensions = array<i32: 1>} : vector<1x256xi32>
    %c255_i32 = arith.constant 255 : i32
    %38 = tpu.dynamic_rotate %36 by %c255_i32 dim 1 : vector<64x256xf32>, i32 -> vector<64x256xf32>
    %c1_i32 = arith.constant 1 : i32
    %39 = tpu.dynamic_rotate %36 by %c1_i32 dim 1 : vector<64x256xf32>, i32 -> vector<64x256xf32>
    %c1_i32_22 = arith.constant 1 : i32
    %40 = vector.broadcast %c1_i32_22 : i32 to vector<1x256xi32>
    %41 = arith.andi %37, %40 : vector<1x256xi32>
    %c0_i32 = arith.constant 0 : i32
    %42 = vector.broadcast %c0_i32 : i32 to vector<1x256xi32>
    %43 = arith.cmpi eq, %41, %42 : vector<1x256xi32>
    %44 = vector.shape_cast %43 : vector<1x256xi1> to vector<1x256xi1>
    %45 = vector.broadcast %44 : vector<1x256xi1> to vector<64x256xi1>
    %46 = arith.select %45, %38, %39 : vector<64x256xi1>, vector<64x256xf32>
    %47 = arith.maximumf %36, %46 : vector<64x256xf32>
    %c254_i32 = arith.constant 254 : i32
    %48 = tpu.dynamic_rotate %47 by %c254_i32 dim 1 : vector<64x256xf32>, i32 -> vector<64x256xf32>
    %c2_i32 = arith.constant 2 : i32
    %49 = tpu.dynamic_rotate %47 by %c2_i32 dim 1 : vector<64x256xf32>, i32 -> vector<64x256xf32>
    %c2_i32_23 = arith.constant 2 : i32
    %50 = vector.broadcast %c2_i32_23 : i32 to vector<1x256xi32>
    %51 = arith.andi %37, %50 : vector<1x256xi32>
    %c0_i32_24 = arith.constant 0 : i32
    %52 = vector.broadcast %c0_i32_24 : i32 to vector<1x256xi32>
    %53 = arith.cmpi eq, %51, %52 : vector<1x256xi32>
    %54 = vector.shape_cast %53 : vector<1x256xi1> to vector<1x256xi1>
    %55 = vector.broadcast %54 : vector<1x256xi1> to vector<64x256xi1>
    %56 = arith.select %55, %48, %49 : vector<64x256xi1>, vector<64x256xf32>
    %57 = arith.maximumf %47, %56 : vector<64x256xf32>
    %c252_i32 = arith.constant 252 : i32
    %58 = tpu.dynamic_rotate %57 by %c252_i32 dim 1 : vector<64x256xf32>, i32 -> vector<64x256xf32>
    %c4_i32 = arith.constant 4 : i32
    %59 = tpu.dynamic_rotate %57 by %c4_i32 dim 1 : vector<64x256xf32>, i32 -> vector<64x256xf32>
    %c4_i32_25 = arith.constant 4 : i32
    %60 = vector.broadcast %c4_i32_25 : i32 to vector<1x256xi32>
    %61 = arith.andi %37, %60 : vector<1x256xi32>
    %c0_i32_26 = arith.constant 0 : i32
    %62 = vector.broadcast %c0_i32_26 : i32 to vector<1x256xi32>
    %63 = arith.cmpi eq, %61, %62 : vector<1x256xi32>
    %64 = vector.shape_cast %63 : vector<1x256xi1> to vector<1x256xi1>
    %65 = vector.broadcast %64 : vector<1x256xi1> to vector<64x256xi1>
    %66 = arith.select %65, %58, %59 : vector<64x256xi1>, vector<64x256xf32>
    %67 = arith.maximumf %57, %66 : vector<64x256xf32>
    %c248_i32 = arith.constant 248 : i32
    %68 = tpu.dynamic_rotate %67 by %c248_i32 dim 1 : vector<64x256xf32>, i32 -> vector<64x256xf32>
    %c8_i32 = arith.constant 8 : i32
    %69 = tpu.dynamic_rotate %67 by %c8_i32 dim 1 : vector<64x256xf32>, i32 -> vector<64x256xf32>
    %c8_i32_27 = arith.constant 8 : i32
    %70 = vector.broadcast %c8_i32_27 : i32 to vector<1x256xi32>
    %71 = arith.andi %37, %70 : vector<1x256xi32>
    %c0_i32_28 = arith.constant 0 : i32
    %72 = vector.broadcast %c0_i32_28 : i32 to vector<1x256xi32>
    %73 = arith.cmpi eq, %71, %72 : vector<1x256xi32>
    %74 = vector.shape_cast %73 : vector<1x256xi1> to vector<1x256xi1>
    %75 = vector.broadcast %74 : vector<1x256xi1> to vector<64x256xi1>
    %76 = arith.select %75, %68, %69 : vector<64x256xi1>, vector<64x256xf32>
    %77 = arith.maximumf %67, %76 : vector<64x256xf32>
    %c240_i32 = arith.constant 240 : i32
    %78 = tpu.dynamic_rotate %77 by %c240_i32 dim 1 : vector<64x256xf32>, i32 -> vector<64x256xf32>
    %c16_i32 = arith.constant 16 : i32
    %79 = tpu.dynamic_rotate %77 by %c16_i32 dim 1 : vector<64x256xf32>, i32 -> vector<64x256xf32>
    %c16_i32_29 = arith.constant 16 : i32
    %80 = vector.broadcast %c16_i32_29 : i32 to vector<1x256xi32>
    %81 = arith.andi %37, %80 : vector<1x256xi32>
    %c0_i32_30 = arith.constant 0 : i32
    %82 = vector.broadcast %c0_i32_30 : i32 to vector<1x256xi32>
    %83 = arith.cmpi eq, %81, %82 : vector<1x256xi32>
    %84 = vector.shape_cast %83 : vector<1x256xi1> to vector<1x256xi1>
    %85 = vector.broadcast %84 : vector<1x256xi1> to vector<64x256xi1>
    %86 = arith.select %85, %78, %79 : vector<64x256xi1>, vector<64x256xf32>
    %87 = arith.maximumf %77, %86 : vector<64x256xf32>
    %c0_31 = arith.constant 0 : index
    %c0_32 = arith.constant 0 : index
    %88 = vector.load %arg10[%c0_31, %c0_32] : memref<256x8xf32, #tpu.memory_space<vmem>>, vector<256x8xf32>
    %cst_33 = arith.constant dense<0.000000e+00> : vector<64x8xf32>
    %89 = tpu.matmul %87, %88, %cst_33 {dimension_numbers = #tpu.dot_dimension_numbers<[1], [0], [0], [1], [0, 0, 1, 1], [], []>} : vector<64x256xf32>, vector<256x8xf32>, vector<64x8xf32> -> vector<64x8xf32>
    %cst_34 = arith.constant 3.125000e-02 : f32
    %90 = vector.broadcast %cst_34 : f32 to vector<64x8xf32>
    %91 = arith.mulf %89, %90 : vector<64x8xf32>
    %cst_35 = arith.constant 9.99999935E-39 : f32
    %92 = vector.broadcast %cst_35 : f32 to vector<64x8xf32>
    %93 = arith.maximumf %91, %92 : vector<64x8xf32>
    %94 = tpu.reciprocal %93 {approx = true} : vector<64x8xf32> -> vector<64x8xf32>
    %95 = arith.mulf %33, %94 : vector<64x8xf32>
    %c0_36 = arith.constant 0 : index
    %c0_37 = arith.constant 0 : index
    %96 = vector.load %arg11[%c0_36, %c0_37] : memref<8x256xf32, #tpu.memory_space<vmem>>, vector<8x256xf32>
    %cst_38 = arith.constant dense<0.000000e+00> : vector<64x256xf32>
    %97 = tpu.matmul %95, %96, %cst_38 {dimension_numbers = #tpu.dot_dimension_numbers<[1], [0], [0], [1], [0, 0, 1, 1], [], []>} : vector<64x8xf32>, vector<8x256xf32>, vector<64x256xf32> -> vector<64x256xf32>
    %c0_39 = arith.constant 0 : index
    %c0_40 = arith.constant 0 : index
    %98 = vector.load %arg12[%c0_39, %c0_40] : memref<8x64xf32, #tpu.memory_space<vmem>>, vector<8x64xf32>
    %99 = arith.mulf %97, %35 : vector<64x256xf32>
    %cst_41 = arith.constant dense<0.000000e+00> : vector<8x256xf32>
    %100 = tpu.matmul %98, %99, %cst_41 {dimension_numbers = #tpu.dot_dimension_numbers<[1], [0], [0], [1], [0, 0, 1, 1], [], []>} : vector<8x64xf32>, vector<64x256xf32>, vector<8x256xf32> -> vector<8x256xf32>
    %c0_42 = arith.constant 0 : index
    %c0_43 = arith.constant 0 : index
    %101 = vector.load %arg12[%c0_42, %c0_43] : memref<8x64xf32, #tpu.memory_space<vmem>>, vector<8x64xf32>
    %cst_44 = arith.constant dense<0.000000e+00> : vector<8x8xf32>
    %102 = tpu.matmul %101, %33, %cst_44 {dimension_numbers = #tpu.dot_dimension_numbers<[1], [0], [0], [1], [0, 0, 1, 1], [], []>} : vector<8x64xf32>, vector<64x8xf32>, vector<8x8xf32> -> vector<8x8xf32>
    %cst_45 = arith.constant 9.99999935E-39 : f32
    %103 = vector.broadcast %cst_45 : f32 to vector<8x8xf32>
    %104 = arith.maximumf %102, %103 : vector<8x8xf32>
    %105 = tpu.reciprocal %104 {approx = true} : vector<8x8xf32> -> vector<8x8xf32>
    %c0_46 = arith.constant 0 : index
    %c0_47 = arith.constant 0 : index
    %106 = vector.load %arg11[%c0_46, %c0_47] : memref<8x256xf32, #tpu.memory_space<vmem>>, vector<8x256xf32>
    %cst_48 = arith.constant dense<0.000000e+00> : vector<8x256xf32>
    %107 = tpu.matmul %105, %106, %cst_48 {dimension_numbers = #tpu.dot_dimension_numbers<[1], [0], [0], [1], [0, 0, 1, 1], [], []>} : vector<8x8xf32>, vector<8x256xf32>, vector<8x256xf32> -> vector<8x256xf32>
    %108 = arith.mulf %100, %107 : vector<8x256xf32>
    %c0_49 = arith.constant 0 : index
    %c0_50 = arith.constant 0 : index
    %109 = vector.load %arg13[%c0_49, %c0_50] : memref<8x256xf32, #tpu.memory_space<vmem>>, vector<8x256xf32>
    tpu.vector_store %arg13[%c0_49, %c0_50], %108 {strides = array<i32>} : memref<8x256xf32, #tpu.memory_space<vmem>>, vector<8x256xf32>,
    return
  }
  func.func @transform_0(%arg0: i32) -> (i32, i32) {
    %c0_i32 = arith.constant 0 : i32
    %c0_i32_0 = arith.constant 0 : i32
    return %arg0, %c0_i32 : i32, i32
  }
  func.func @transform_1(%arg0: i32) -> (i32, i32) {
    %c0_i32 = arith.constant 0 : i32
    %c0_i32_0 = arith.constant 0 : i32
    return %arg0, %c0_i32 : i32, i32
  }
  func.func @transform_2(%arg0: i32) -> (i32, i32) {
    %c0_i32 = arith.constant 0 : i32
    %c0_i32_0 = arith.constant 0 : i32
    %c0_i32_1 = arith.constant 0 : i32
    return %c0_i32, %c0_i32_0 : i32, i32
  }
  func.func @transform_3(%arg0: i32) -> (i32, i32) {
    %c0_i32 = arith.constant 0 : i32
    %c0_i32_0 = arith.constant 0 : i32
    %c0_i32_1 = arith.constant 0 : i32
    return %c0_i32, %c0_i32_0 : i32, i32
  }
  func.func @transform_4(%arg0: i32) -> (i32, i32) {
    %c0_i32 = arith.constant 0 : i32
    %c0_i32_0 = arith.constant 0 : i32
    %c0_i32_1 = arith.constant 0 : i32
    return %c0_i32, %c0_i32_0 : i32, i32
  }
  func.func @transform_5(%arg0: i32) -> (i32, i32) {
    %c0_i32 = arith.constant 0 : i32
    %c0_i32_0 = arith.constant 0 : i32
    %c0_i32_1 = arith.constant 0 : i32
    return %c0_i32, %c0_i32_0 : i32, i32
  }
  func.func @transform_6(%arg0: i32) -> (i32, i32) {
    %c0_i32 = arith.constant 0 : i32
    %c0_i32_0 = arith.constant 0 : i32
    %c0_i32_1 = arith.constant 0 : i32
    return %c0_i32, %c0_i32_0 : i32, i32
  }
  func.func @transform_7(%arg0: i32) -> (i32, i32) {
    %c0_i32 = arith.constant 0 : i32
    %c0_i32_0 = arith.constant 0 : i32
    %c0_i32_1 = arith.constant 0 : i32
    return %c0_i32, %c0_i32_0 : i32, i32
  }
  func.func @transform_8(%arg0: i32) -> (i32, i32) {
    %c0_i32 = arith.constant 0 : i32
    %c0_i32_0 = arith.constant 0 : i32
    %c0_i32_1 = arith.constant 0 : i32
    return %c0_i32, %c0_i32_0 : i32, i32
  }
  func.func @transform_9(%arg0: i32) -> (i32, i32) {
    %c0_i32 = arith.constant 0 : i32
    %c0_i32_0 = arith.constant 0 : i32
    %c0_i32_1 = arith.constant 0 : i32
    return %c0_i32, %c0_i32_0 : i32, i32
  }
  func.func @transform_10(%arg0: i32) -> (i32, i32) {
    %c0_i32 = arith.constant 0 : i32
    %c0_i32_0 = arith.constant 0 : i32
    %c0_i32_1 = arith.constant 0 : i32
    return %c0_i32, %c0_i32_0 : i32, i32
  }
  func.func @transform_11(%arg0: i32) -> (i32, i32) {
    %c0_i32 = arith.constant 0 : i32
    %c0_i32_0 = arith.constant 0 : i32
    %c0_i32_1 = arith.constant 0 : i32
    return %c0_i32, %c0_i32_0 : i32, i32
  }
  func.func @transform_12(%arg0: i32) -> (i32, i32) {
    %c0_i32 = arith.constant 0 : i32
    %c0_i32_0 = arith.constant 0 : i32
    return %arg0, %c0_i32 : i32, i32
  }
}

</mosaic_0001>

<llo_original>
// kernel: tpu_custom_call.1
$region0: #{tpu_custom_call.1}
  #allocation0 [shape = 'u32[]', space=smem, size = 0x4, offset = 0x4, fixed_abs, tag = 'smem constant byte address 0x4 - core index']
  #allocation1 [shape = 'u32[144,128]{1,0:T(1,128)}', space=vmem, size = 0x12000, scoped, tag = 'internal scratch']
  %s0 = inlined_call_operand.vmem [shape: f32[128,16], index: 0, kind: input, shape index: {}]
  %s1 = inlined_call_operand.vmem [shape: f32[16,16], index: 1, kind: input, shape index: {}]
  %s2 = inlined_call_operand.vmem [shape: f32[16,512], index: 2, kind: input, shape index: {}]
  %s3 = inlined_call_operand.vmem [shape: f32[1,512], index: 3, kind: input, shape index: {}]
  %s4 = inlined_call_operand.vmem [shape: f32[16,256], index: 4, kind: input, shape index: {}]
  %s5 = inlined_call_operand.vmem [shape: f32[1,256], index: 5, kind: input, shape index: {}]
  %s6 = inlined_call_operand.vmem [shape: f32[8,256], index: 6, kind: input, shape index: {}]
  %s7 = inlined_call_operand.vmem [shape: f32[8,256], index: 7, kind: input, shape index: {}]
  %s8 = inlined_call_operand.hbm [shape: f32[256,256], index: 8, kind: input, shape index: {}]
  %s9 = inlined_call_operand.vmem [shape: f32[256,8], index: 9, kind: input, shape index: {}]
  %s10 = inlined_call_operand.vmem [shape: f32[8,256], index: 10, kind: input, shape index: {}]
  %s11 = inlined_call_operand.vmem [shape: f32[8,64], index: 11, kind: input, shape index: {}]
  %s12 = inlined_call_operand.hbm [shape: f32[16,256], index: 12, kind: output, shape index: {}]
  %s13 = sld [smem:[#allocation0]]
  $region85: #{tpu_custom_call.1} parent=0
    _
  %s15 = ssub.s32 1, %s13
  %s16 = scalar_select 0, %s15, %s13
  $region1: #{tpu_custom_call.1} parent=0
    #allocation2 [shape = 'u8[262144]{0}', space=vmem, size = 0x40000, scoped, tag = 'input window, operand 8, single buffered']
    #allocation3 [shape = 's32[2]{0}', space=sflag, size = 0x8, scoped, tag = 'scoped memory for tpu_custom_call.1']
    #allocation4 [shape = 's32[2]{0}', space=sflag, size = 0x8, scoped, tag = 'scoped memory for tpu_custom_call.1']
    #allocation5 [shape = 'u8[16384]{0}', space=vmem, size = 0x4000, scoped, tag = 'output window, operand 0']
    %17 = vsyncpa [#allocation3], 0
    %18 = vsyncpa [#allocation4], 0
    %s19 = scalar_lea.sflag [#allocation4], 1
    %20 = vsyncpa %s19, 0
    loop: start=0, step=1, limit=4
    $region2: #{tpu_custom_call.1} parent=1 // loop_pre_header
      _
    $region3: #{tpu_custom_call.1} parent=1 // loop_header
      %s22 = sphi 0, %s26
      %p23 = scmp.ge.s32.totalorder %s22, 4
      %s32 = sphi 0, %s34
      %s35 = sphi 0, %s32
      %s36 = sphi 0, %s35
      %s52 = sphi 0, %s36
      %s58 = sphi 0, %s60
      %s61 = sphi 0, %s58
      %s62 = sphi 0, %s61
      %s78 = sphi 0, %s62
      %s82 = sphi 0, %s82
      %s84 = sphi 0, %s82
      %s85 = sphi 0, %s84
      %s99 = sphi 0, %s85
      %s103 = sphi 0, %s103
      %s105 = sphi 0, %s103
      %s106 = sphi 0, %s105
      %s120 = sphi 0, %s106
      %s124 = sphi 0, %s124
      %s126 = sphi 0, %s124
      %s127 = sphi 0, %s126
      %s141 = sphi 0, %s127
      %s145 = sphi 0, %s145
      %s147 = sphi 0, %s145
      %s148 = sphi 0, %s147
      %s162 = sphi 0, %s148
      %s166 = sphi 0, %s166
      %s168 = sphi 0, %s166
      %s169 = sphi 0, %s168
      %s183 = sphi 0, %s169
      %s187 = sphi 0, %s187
      %s189 = sphi 0, %s187
      %s190 = sphi 0, %s189
      %s204 = sphi 0, %s190
      %s208 = sphi 0, %s208
      %s210 = sphi 0, %s208
      %s211 = sphi 0, %s210
      %s225 = sphi 0, %s211
      %s229 = sphi 0, %s229
      %s231 = sphi 0, %s229
      %s232 = sphi 0, %s231
      %s246 = sphi 0, %s232
      %s250 = sphi 0, %s250
      %s252 = sphi 0, %s250
      %s253 = sphi 0, %s252
      %s267 = sphi 0, %s253
      %s271 = sphi 0, %s271
      %s273 = sphi 0, %s271
      %s274 = sphi 0, %s273
      %s288 = sphi 0, %s274
      %s294 = sphi 0, %s296
      %s297 = sphi 0, %s294
      %s298 = sphi 0, %s297
      %s314 = sphi 0, %s298
    $region4: #{tpu_custom_call.1} parent=1 // loop_header_branch
      %25 = sbr.rel (%p23) target = $region8
    $region5: #{tpu_custom_call.1} parent=1 // loop_body
      %s27 = ssub.s32 %s22, 1
      %s28 = ssub.s32 %s22, 2
      %s29 = sadd.s32 %s22, 1
      %s30 = ssub.s32 %s22, %s29
      %p31 = scmp.eq.s32.totalorder %s30, 0
      %s33 = sadd.s32 %s32, 1
      %s34 = scalar_select %p31, %s32, %s33
      %p37 = pneg %p31
      %p38 = scmp.eq.s32.totalorder %s22, 1
      %p39 = por %p37, %p38
      %p40 = scmp.ne.s32.totalorder %s32, %s35
      %p41 = scmp.eq.s32.totalorder %s22, 0
      %p42 = por %p40, %p41
      %p43 = scmp.ne.s32.totalorder %s32, %s35
      %p44 = scmp.eq.s32.totalorder %s27, 1
      %p45 = por %p43, %p44
      %p46 = scmp.ne.s32.totalorder %s35, %s36
      %p47 = scmp.eq.s32.totalorder %s27, 0
      %p48 = por %p46, %p47
      %p49 = scmp.ne.s32.totalorder %s35, %s36
      %p50 = scmp.eq.s32.totalorder %s28, 1
      %p51 = por %p49, %p50
      %p53 = scmp.ne.s32.totalorder %s36, %s52
      %p54 = scmp.eq.s32.totalorder %s28, 0
      %p55 = por %p53, %p54
      %s56 = ssub.s32 %s22, %s29
      %p57 = scmp.eq.s32.totalorder %s56, 0
      %s59 = sadd.s32 %s58, 1
      %s60 = scalar_select %p57, %s58, %s59
      %p63 = pneg %p57
      %p64 = scmp.eq.s32.totalorder %s22, 1
      %p65 = por %p63, %p64
      %p66 = scmp.ne.s32.totalorder %s58, %s61
      %p67 = scmp.eq.s32.totalorder %s22, 0
      %p68 = por %p66, %p67
      %p69 = scmp.ne.s32.totalorder %s58, %s61
      %p70 = scmp.eq.s32.totalorder %s27, 1
      %p71 = por %p69, %p70
      %p72 = scmp.ne.s32.totalorder %s61, %s62
      %p73 = scmp.eq.s32.totalorder %s27, 0
      %p74 = por %p72, %p73
      %p75 = scmp.ne.s32.totalorder %s61, %s62
      %p76 = scmp.eq.s32.totalorder %s28, 1
      %p77 = por %p75, %p76
      %p79 = scmp.ne.s32.totalorder %s62, %s78
      %p80 = scmp.eq.s32.totalorder %s28, 0
      %p81 = por %p79, %p80
      %s83 = sadd.s32 %s82, 1
      %p86 = scmp.eq.s32.totalorder %s22, 1
      %p87 = scmp.ne.s32.totalorder %s82, %s84
      %p88 = scmp.eq.s32.totalorder %s22, 0
      %p89 = por %p87, %p88
      %p90 = scmp.ne.s32.totalorder %s82, %s84
      %p91 = scmp.eq.s32.totalorder %s27, 1
      %p92 = por %p90, %p91
      %p93 = scmp.ne.s32.totalorder %s84, %s85
      %p94 = scmp.eq.s32.totalorder %s27, 0
      %p95 = por %p93, %p94
      %p96 = scmp.ne.s32.totalorder %s84, %s85
      %p97 = scmp.eq.s32.totalorder %s28, 1
      %p98 = por %p96, %p97
      %p100 = scmp.ne.s32.totalorder %s85, %s99
      %p101 = scmp.eq.s32.totalorder %s28, 0
      %p102 = por %p100, %p101
      %s104 = sadd.s32 %s103, 1
      %p107 = scmp.eq.s32.totalorder %s22, 1
      %p108 = scmp.ne.s32.totalorder %s103, %s105
      %p109 = scmp.eq.s32.totalorder %s22, 0
      %p110 = por %p108, %p109
      %p111 = scmp.ne.s32.totalorder %s103, %s105
      %p112 = scmp.eq.s32.totalorder %s27, 1
      %p113 = por %p111, %p112
      %p114 = scmp.ne.s32.totalorder %s105, %s106
      %p115 = scmp.eq.s32.totalorder %s27, 0
      %p116 = por %p114, %p115
      %p117 = scmp.ne.s32.totalorder %s105, %s106
      %p118 = scmp.eq.s32.totalorder %s28, 1
      %p119 = por %p117, %p118
      %p121 = scmp.ne.s32.totalorder %s106, %s120
      %p122 = scmp.eq.s32.totalorder %s28, 0
      %p123 = por %p121, %p122
      %s125 = sadd.s32 %s124, 1
      %p128 = scmp.eq.s32.totalorder %s22, 1
      %p129 = scmp.ne.s32.totalorder %s124, %s126
      %p130 = scmp.eq.s32.totalorder %s22, 0
      %p131 = por %p129, %p130
      %p132 = scmp.ne.s32.totalorder %s124, %s126
      %p133 = scmp.eq.s32.totalorder %s27, 1
      %p134 = por %p132, %p133
      %p135 = scmp.ne.s32.totalorder %s126, %s127
      %p136 = scmp.eq.s32.totalorder %s27, 0
      %p137 = por %p135, %p136
      %p138 = scmp.ne.s32.totalorder %s126, %s127
      %p139 = scmp.eq.s32.totalorder %s28, 1
      %p140 = por %p138, %p139
      %p142 = scmp.ne.s32.totalorder %s127, %s141
      %p143 = scmp.eq.s32.totalorder %s28, 0
      %p144 = por %p142, %p143
      %s146 = sadd.s32 %s145, 1
      %p149 = scmp.eq.s32.totalorder %s22, 1
      %p150 = scmp.ne.s32.totalorder %s145, %s147
      %p151 = scmp.eq.s32.totalorder %s22, 0
      %p152 = por %p150, %p151
      %p153 = scmp.ne.s32.totalorder %s145, %s147
      %p154 = scmp.eq.s32.totalorder %s27, 1
      %p155 = por %p153, %p154
      %p156 = scmp.ne.s32.totalorder %s147, %s148
      %p157 = scmp.eq.s32.totalorder %s27, 0
      %p158 = por %p156, %p157
      %p159 = scmp.ne.s32.totalorder %s147, %s148
      %p160 = scmp.eq.s32.totalorder %s28, 1
      %p161 = por %p159, %p160
      %p163 = scmp.ne.s32.totalorder %s148, %s162
      %p164 = scmp.eq.s32.totalorder %s28, 0
      %p165 = por %p163, %p164
      %s167 = sadd.s32 %s166, 1
      %p170 = scmp.eq.s32.totalorder %s22, 1
      %p171 = scmp.ne.s32.totalorder %s166, %s168
      %p172 = scmp.eq.s32.totalorder %s22, 0
      %p173 = por %p171, %p172
      %p174 = scmp.ne.s32.totalorder %s166, %s168
      %p175 = scmp.eq.s32.totalorder %s27, 1
      %p176 = por %p174, %p175
      %p177 = scmp.ne.s32.totalorder %s168, %s169
      %p178 = scmp.eq.s32.totalorder %s27, 0
      %p179 = por %p177, %p178
      %p180 = scmp.ne.s32.totalorder %s168, %s169
      %p181 = scmp.eq.s32.totalorder %s28, 1
      %p182 = por %p180, %p181
      %p184 = scmp.ne.s32.totalorder %s169, %s183
      %p185 = scmp.eq.s32.totalorder %s28, 0
      %p186 = por %p184, %p185
      %s188 = sadd.s32 %s187, 1
      %p191 = scmp.eq.s32.totalorder %s22, 1
      %p192 = scmp.ne.s32.totalorder %s187, %s189
      %p193 = scmp.eq.s32.totalorder %s22, 0
      %p194 = por %p192, %p193
      %p195 = scmp.ne.s32.totalorder %s187, %s189
      %p196 = scmp.eq.s32.totalorder %s27, 1
      %p197 = por %p195, %p196
      %p198 = scmp.ne.s32.totalorder %s189, %s190
      %p199 = scmp.eq.s32.totalorder %s27, 0
      %p200 = por %p198, %p199
      %p201 = scmp.ne.s32.totalorder %s189, %s190
      %p202 = scmp.eq.s32.totalorder %s28, 1
      %p203 = por %p201, %p202
      %p205 = scmp.ne.s32.totalorder %s190, %s204
      %p206 = scmp.eq.s32.totalorder %s28, 0
      %p207 = por %p205, %p206
      %s209 = sadd.s32 %s208, 1
      %p212 = scmp.eq.s32.totalorder %s22, 1
      %p213 = scmp.ne.s32.totalorder %s208, %s210
      %p214 = scmp.eq.s32.totalorder %s22, 0
      %p215 = por %p213, %p214
      %p216 = scmp.ne.s32.totalorder %s208, %s210
      %p217 = scmp.eq.s32.totalorder %s27, 1
      %p218 = por %p216, %p217
      %p219 = scmp.ne.s32.totalorder %s210, %s211
      %p220 = scmp.eq.s32.totalorder %s27, 0
      %p221 = por %p219, %p220
      %p222 = scmp.ne.s32.totalorder %s210, %s211
      %p223 = scmp.eq.s32.totalorder %s28, 1
      %p224 = por %p222, %p223
      %p226 = scmp.ne.s32.totalorder %s211, %s225
      %p227 = scmp.eq.s32.totalorder %s28, 0
      %p228 = por %p226, %p227
      %s230 = sadd.s32 %s229, 1
      %p233 = scmp.eq.s32.totalorder %s22, 1
      %p234 = scmp.ne.s32.totalorder %s229, %s231
      %p235 = scmp.eq.s32.totalorder %s22, 0
      %p236 = por %p234, %p235
      %p237 = scmp.ne.s32.totalorder %s229, %s231
      %p238 = scmp.eq.s32.totalorder %s27, 1
      %p239 = por %p237, %p238
      %p240 = scmp.ne.s32.totalorder %s231, %s232
      %p241 = scmp.eq.s32.totalorder %s27, 0
      %p242 = por %p240, %p241
      %p243 = scmp.ne.s32.totalorder %s231, %s232
      %p244 = scmp.eq.s32.totalorder %s28, 1
      %p245 = por %p243, %p244
      %p247 = scmp.ne.s32.totalorder %s232, %s246
      %p248 = scmp.eq.s32.totalorder %s28, 0
      %p249 = por %p247, %p248
      %s251 = sadd.s32 %s250, 1
      %p254 = scmp.eq.s32.totalorder %s22, 1
      %p255 = scmp.ne.s32.totalorder %s250, %s252
      %p256 = scmp.eq.s32.totalorder %s22, 0
      %p257 = por %p255, %p256
      %p258 = scmp.ne.s32.totalorder %s250, %s252
      %p259 = scmp.eq.s32.totalorder %s27, 1
      %p260 = por %p258, %p259
      %p261 = scmp.ne.s32.totalorder %s252, %s253
      %p262 = scmp.eq.s32.totalorder %s27, 0
      %p263 = por %p261, %p262
      %p264 = scmp.ne.s32.totalorder %s252, %s253
      %p265 = scmp.eq.s32.totalorder %s28, 1
      %p266 = por %p264, %p265
      %p268 = scmp.ne.s32.totalorder %s253, %s267
      %p269 = scmp.eq.s32.totalorder %s28, 0
      %p270 = por %p268, %p269
      %s272 = sadd.s32 %s271, 1
      %p275 = scmp.eq.s32.totalorder %s22, 1
      %p276 = scmp.ne.s32.totalorder %s271, %s273
      %p277 = scmp.eq.s32.totalorder %s22, 0
      %p278 = por %p276, %p277
      %p279 = scmp.ne.s32.totalorder %s271, %s273
      %p280 = scmp.eq.s32.totalorder %s27, 1
      %p281 = por %p279, %p280
      %p282 = scmp.ne.s32.totalorder %s273, %s274
      %p283 = scmp.eq.s32.totalorder %s27, 0
      %p284 = por %p282, %p283
      %p285 = scmp.ne.s32.totalorder %s273, %s274
      %p286 = scmp.eq.s32.totalorder %s28, 1
      %p287 = por %p285, %p286
      %p289 = scmp.ne.s32.totalorder %s274, %s288
      %p290 = scmp.eq.s32.totalorder %s28, 0
      %p291 = por %p289, %p290
      %s292 = ssub.s32 %s22, %s29
      %p293 = scmp.eq.s32.totalorder %s292, 0
      %s295 = sadd.s32 %s294, 1
      %s296 = scalar_select %p293, %s294, %s295
      %p299 = pneg %p293
      %p300 = scmp.eq.s32.totalorder %s22, 1
      %p301 = por %p299, %p300
      %p302 = scmp.ne.s32.totalorder %s294, %s297
      %p303 = scmp.eq.s32.totalorder %s22, 0
      %p304 = por %p302, %p303
      %p305 = scmp.ne.s32.totalorder %s294, %s297
      %p306 = scmp.eq.s32.totalorder %s27, 1
      %p307 = por %p305, %p306
      %p308 = scmp.ne.s32.totalorder %s297, %s298
      %p309 = scmp.eq.s32.totalorder %s27, 0
      %p310 = por %p308, %p309
      %p311 = scmp.ne.s32.totalorder %s297, %s298
      %p312 = scmp.eq.s32.totalorder %s28, 1
      %p313 = por %p311, %p312
      %p315 = scmp.ne.s32.totalorder %s298, %s314
      %p316 = scmp.eq.s32.totalorder %s28, 0
      %p317 = por %p315, %p316
      %p318 = scmp.le.s32.totalorder 1, %s22
      %p319 = scmp.lt.s32.totalorder %s22, 3
      %p320 = pnand %p318, %p319
      %p321 = pneg %p320
      // Predicated region
      $region9: #{tpu_custom_call.1} parent=5 // pred_check
        _
      $region10: #{tpu_custom_call.1} parent=5 // pred_check_branch
        %323 = sbr.rel (%p320) target = $region12
      $region11: #{tpu_custom_call.1} parent=5 // pred_region
        %s324 = ssub.s32 %s22, 1
        // Predicated region
        $region13: #{tpu_custom_call.1} parent=11 // pred_check
          %p325 = pneg %p95
        $region14: #{tpu_custom_call.1} parent=11 // pred_check_branch
          %327 = sbr.rel (%p325) target = $region16
        $region15: #{tpu_custom_call.1} parent=11 // pred_region
          _
        $region16: #{tpu_custom_call.1} parent=11 // pred_fallthru
          _
        // Predicated region
        $region17: #{tpu_custom_call.1} parent=11 // pred_check
          %p328 = pneg %p116
        $region18: #{tpu_custom_call.1} parent=11 // pred_check_branch
          %330 = sbr.rel (%p328) target = $region20
        $region19: #{tpu_custom_call.1} parent=11 // pred_region
          _
        $region20: #{tpu_custom_call.1} parent=11 // pred_fallthru
          _
        // Predicated region
        $region21: #{tpu_custom_call.1} parent=11 // pred_check
          %p331 = pneg %p137
        $region22: #{tpu_custom_call.1} parent=11 // pred_check_branch
          %333 = sbr.rel (%p331) target = $region24
        $region23: #{tpu_custom_call.1} parent=11 // pred_region
          _
        $region24: #{tpu_custom_call.1} parent=11 // pred_fallthru
          _
        // Predicated region
        $region25: #{tpu_custom_call.1} parent=11 // pred_check
          %p334 = pneg %p158
        $region26: #{tpu_custom_call.1} parent=11 // pred_check_branch
          %336 = sbr.rel (%p334) target = $region28
        $region27: #{tpu_custom_call.1} parent=11 // pred_region
          _
        $region28: #{tpu_custom_call.1} parent=11 // pred_fallthru
          _
        // Predicated region
        $region29: #{tpu_custom_call.1} parent=11 // pred_check
          %p337 = pneg %p179
        $region30: #{tpu_custom_call.1} parent=11 // pred_check_branch
          %339 = sbr.rel (%p337) target = $region32
        $region31: #{tpu_custom_call.1} parent=11 // pred_region
          _
        $region32: #{tpu_custom_call.1} parent=11 // pred_fallthru
          _
        // Predicated region
        $region33: #{tpu_custom_call.1} parent=11 // pred_check
          %p340 = pneg %p200
        $region34: #{tpu_custom_call.1} parent=11 // pred_check_branch
          %342 = sbr.rel (%p340) target = $region36
        $region35: #{tpu_custom_call.1} parent=11 // pred_region
          _
        $region36: #{tpu_custom_call.1} parent=11 // pred_fallthru
          _
        // Predicated region
        $region37: #{tpu_custom_call.1} parent=11 // pred_check
          %p343 = pneg %p221
        $region38: #{tpu_custom_call.1} parent=11 // pred_check_branch
          %345 = sbr.rel (%p343) target = $region40
        $region39: #{tpu_custom_call.1} parent=11 // pred_region
          %s347 = ssub.s32 8192, 8192
          %348 = vsyncadd [#allocation3], %s347
          %s349 = sshll.u32 [#allocation2], 4
          %s350 = int_to_ptr.vmem [resolvable:$true] %s349
          %355 = dma.hbm_to_vmem [thread:$0]  %s8, 8192, %s350, [#allocation3], 256, 256, 16
        $region40: #{tpu_custom_call.1} parent=11 // pred_fallthru
          _
        // Predicated region
        $region41: #{tpu_custom_call.1} parent=11 // pred_check
          %p356 = pneg %p242
        $region42: #{tpu_custom_call.1} parent=11 // pred_check_branch
          %358 = sbr.rel (%p356) target = $region44
        $region43: #{tpu_custom_call.1} parent=11 // pred_region
          _
        $region44: #{tpu_custom_call.1} parent=11 // pred_fallthru
          _
        // Predicated region
        $region45: #{tpu_custom_call.1} parent=11 // pred_check
          %p359 = pneg %p263
        $region46: #{tpu_custom_call.1} parent=11 // pred_check_branch
          %361 = sbr.rel (%p359) target = $region48
        $region47: #{tpu_custom_call.1} parent=11 // pred_region
          _
        $region48: #{tpu_custom_call.1} parent=11 // pred_fallthru
          _
        // Predicated region
        $region49: #{tpu_custom_call.1} parent=11 // pred_check
          %p362 = pneg %p284
        $region50: #{tpu_custom_call.1} parent=11 // pred_check_branch
          %364 = sbr.rel (%p362) target = $region52
        $region51: #{tpu_custom_call.1} parent=11 // pred_region
          _
        $region52: #{tpu_custom_call.1} parent=11 // pred_fallthru
          _
      $region12: #{tpu_custom_call.1} parent=5 // pred_fallthru
        _
      %p365 = scmp.lt.s32.totalorder %s22, 2
      // Predicated region
      $region53: #{tpu_custom_call.1} parent=5 // pred_check
        %p366 = pneg %p365
      $region54: #{tpu_custom_call.1} parent=5 // pred_check_branch
        %368 = sbr.rel (%p366) target = $region56
      $region55: #{tpu_custom_call.1} parent=5 // pred_region
        // Predicated region
        $region57: #{tpu_custom_call.1} parent=55 // pred_check
          %p369 = pneg %p42
        $region58: #{tpu_custom_call.1} parent=55 // pred_check_branch
          %371 = sbr.rel (%p369) target = $region60
        $region59: #{tpu_custom_call.1} parent=55 // pred_region
          %s372 = smul.u32 8, %s22
          %p373 = scmp.lt.s32.totalorder %s372, 15
          %s374 = scalar_select %p373, %s372, 15
          %s375 = smul.addr %s374, 8
          %s376 = scalar_lea.vmem %s0, %s375
          %s377 = smul.u32 8, %s22
        $region60: #{tpu_custom_call.1} parent=55 // pred_fallthru
          _
        // Predicated region
        $region61: #{tpu_custom_call.1} parent=55 // pred_check
          %p378 = pneg %p68
        $region62: #{tpu_custom_call.1} parent=55 // pred_check_branch
          %380 = sbr.rel (%p378) target = $region64
        $region63: #{tpu_custom_call.1} parent=55 // pred_region
          %p381 = scmp.lt.s32.totalorder %s22, 1
          %s382 = scalar_select %p381, %s22, 1
          %s383 = smul.addr %s382, 8
          %s384 = scalar_lea.vmem %s1, %s383
        $region64: #{tpu_custom_call.1} parent=55 // pred_fallthru
          _
      $region56: #{tpu_custom_call.1} parent=5 // pred_fallthru
        _
      %p385 = scmp.le.s32.totalorder 1, %s22
      %p386 = scmp.lt.s32.totalorder %s22, 3
      %p387 = pnand %p385, %p386
      %p388 = pneg %p387
      // Predicated region
      $region65: #{tpu_custom_call.1} parent=5 // pred_check
        _
      $region66: #{tpu_custom_call.1} parent=5 // pred_check_branch
        %390 = sbr.rel (%p387) target = $region68
      $region67: #{tpu_custom_call.1} parent=5 // pred_region
        %s391 = ssub.s32 %s22, 1
        // Predicated region
        $region69: #{tpu_custom_call.1} parent=67 // pred_check
          %p392 = pneg %p221
        $region70: #{tpu_custom_call.1} parent=67 // pred_check_branch
          %394 = sbr.rel (%p392) target = $region72
        $region71: #{tpu_custom_call.1} parent=67 // pred_region
          %395 = dma.done [#allocation3], 8192
        $region72: #{tpu_custom_call.1} parent=67 // pred_fallthru
          _
        %s396 = smul.u32 8, %s27
        %p397 = scmp.lt.s32.totalorder %s396, 15
        %s398 = scalar_select %p397, %s396, 15
        %s399 = smul.addr %s398, 8
        %s400 = scalar_lea.vmem %s0, %s399
        %p401 = pneg %p48
        %p402 = pneg %p45
        %p403 = scmp.lt.s32.totalorder %s27, 1
        %s404 = scalar_select %p403, %s27, 1
        %s405 = smul.addr %s404, 8
        %s406 = scalar_lea.vmem %s1, %s405
        %p407 = pneg %p74
        %p408 = pneg %p71
        %p409 = pneg %p95
        %p410 = pneg %p92
        %p411 = pneg %p116
        %p412 = pneg %p113
        %p413 = pneg %p137
        %p414 = pneg %p134
        %p415 = pneg %p158
        %p416 = pneg %p155
        %p417 = pneg %p179
        %p418 = pneg %p176
        %p419 = pneg %p200
        %p420 = pneg %p197
        %p421 = pneg %p221
        %p422 = pneg %p218
        %p423 = pneg %p242
        %p424 = pneg %p239
        %p425 = pneg %p263
        %p426 = pneg %p260
        %p427 = pneg %p284
        %p428 = pneg %p281
        %p429 = pneg %p310
        %p430 = pneg %p307
        %s431 = sand.u32 %s297, 1
        %s432 = scalar_lea.sflag [#allocation4], %s431
        %s433 = sand.u32 %s297, 1
        %s434 = smul.addr %s433, 16
        %s435 = scalar_lea.vmem [#allocation5], %s434
        %s436 = smul.u32 8, %s27
        %p437 = scmp.lt.s32.totalorder %s436, 15
        %s438 = scalar_select %p437, %s436, 15
        %s439 = smul.addr %s438, 8
        %s440 = scalar_lea.vmem %s0, %s439
        %s441 = smul.u32 8, %s27
        %p442 = scmp.lt.s32.totalorder %s27, 1
        %s443 = scalar_select %p442, %s27, 1
        %s444 = smul.addr %s443, 8
        %s445 = scalar_lea.vmem %s1, %s444
        %v446 = vld [vmem:[%s440] sm:$0xff]
        %v447 = vld [vmem:[%s440 + $0x8] sm:$0xff]
        %v448 = vld [vmem:[%s440 + $0x10] sm:$0xff]
        %v449 = vld [vmem:[%s440 + $0x18] sm:$0xff]
        %v450 = vld [vmem:[%s440 + $0x20] sm:$0xff]
        %v451 = vld [vmem:[%s440 + $0x28] sm:$0xff]
        %v452 = vld [vmem:[%s440 + $0x30] sm:$0xff]
        %v453 = vld [vmem:[%s440 + $0x38] sm:$0xff]
        %v454 = vld [vmem:[%s2] sm:$0xff]
        %v455 = vld [vmem:[%s2 + $0x8] sm:$0xff]
        %v456 = vld [vmem:[%s2 + $0x10] sm:$0xff]
        %v457 = vld [vmem:[%s2 + $0x18] sm:$0xff]
        %v458 = vld [vmem:[%s2 + $0x20] sm:$0xff]
        %v459 = vld [vmem:[%s2 + $0x28] sm:$0xff]
        %v460 = vld [vmem:[%s2 + $0x30] sm:$0xff]
        %v461 = vld [vmem:[%s2 + $0x38] sm:$0xff]
        %v462 = vld [vmem:[%s3] sm:$0xf]
        %v464 = vlaneseq
        %v465 = vshrl.u32 %v464, 7
        %v466 = vsub.s32 0, %v465
        %v467 = vrot.slane %v462, %v466
        %v468 = vlaneseq
        %v469 = vshrl.u32 %v468, 7
        %v470 = vsub.s32 1, %v469
        %v471 = vrot.slane %v462, %v470
        %v472 = vlaneseq
        %v473 = vshrl.u32 %v472, 7
        %v474 = vsub.s32 2, %v473
        %v475 = vrot.slane %v462, %v474
        %v476 = vlaneseq
        %v477 = vshrl.u32 %v476, 7
        %v478 = vsub.s32 3, %v477
        %v479 = vrot.slane %v462, %v478
        %vm484 = vcmask 130048
        %v486 = vsel %vm484, %v446, 0
        %v489 = vsel %vm484, %v447, 0
        %v492 = vsel %vm484, %v448, 0
        %v495 = vsel %vm484, %v449, 0
        %v498 = vsel %vm484, %v450, 0
        %v501 = vsel %vm484, %v451, 0
        %v504 = vsel %vm484, %v452, 0
        %v507 = vsel %vm484, %v453, 0
        %509 = vmatprep.subr.mxu0 0.0
        %510 = vmatpush1.msra.mxu0 0.0
        %511 = vmatprep.subr.mxu0 0.0
        %512 = vmatpush1.msra.mxu0 0.0
        %513 = vmatprep.subr.mxu0 0.0
        %514 = vmatpush1.msra.mxu0 0.0
        %515 = vmatprep.subr.mxu0 0.0
        %516 = vmatpush1.msra.mxu0 0.0
        %517 = vmatprep.subr.mxu0 0.0
        %518 = vmatpush1.msra.mxu0 0.0
        %519 = vmatprep.subr.mxu0 0.0
        %520 = vmatpush1.msra.mxu0 0.0
        %521 = vmatprep.subr.mxu0 0.0
        %522 = vmatpush1.msra.mxu0 0.0
        %523 = vmatprep.subr.mxu0 0.0
        %524 = vmatpush1.msra.mxu0 0.0
        %525 = vmatprep.subr.mxu0 0.0
        %526 = vmatpush1.msra.mxu0 0.0
        %527 = vmatprep.subr.mxu0 0.0
        %528 = vmatpush1.msra.mxu0 0.0
        %529 = vmatprep.subr.mxu0 0.0
        %530 = vmatpush1.msra.mxu0 0.0
        %531 = vmatprep.subr.mxu0 0.0
        %532 = vmatpush1.msra.mxu0 0.0
        %533 = vmatprep.subr.mxu0 0.0
        %534 = vmatpush1.msra.mxu0 0.0
        %535 = vmatprep.subr.mxu0 0.0
        %536 = vmatpush1.msra.mxu0 0.0
        %537 = vmatprep.subr.mxu0 %v459
        %538 = vmatpush1.msra.mxu0 %v458
        %539 = vmatprep.subr.mxu0 %v455
        %540 = vmatpush1.msra.mxu0 %v454
        %541 = vmatprep.subr.mxu0 0.0
        %542 = vmatpush2.msra.mxu0 0.0
        %543 = vmatprep.subr.mxu0 0.0
        %544 = vmatpush2.msra.mxu0 0.0
        %545 = vmatprep.subr.mxu0 0.0
        %546 = vmatpush2.msra.mxu0 0.0
        %547 = vmatprep.subr.mxu0 0.0
        %548 = vmatpush2.msra.mxu0 0.0
        %549 = vmatprep.subr.mxu0 0.0
        %550 = vmatpush2.msra.mxu0 0.0
        %551 = vmatprep.subr.mxu0 0.0
        %552 = vmatpush2.msra.mxu0 0.0
        %553 = vmatprep.subr.mxu0 0.0
        %554 = vmatpush2.msra.mxu0 0.0
        %555 = vmatprep.subr.mxu0 0.0
        %556 = vmatpush2.msra.mxu0 0.0
        %557 = vmatprep.subr.mxu0 0.0
        %558 = vmatpush2.msra.mxu0 0.0
        %559 = vmatprep.subr.mxu0 0.0
        %560 = vmatpush2.msra.mxu0 0.0
        %561 = vmatprep.subr.mxu0 0.0
        %562 = vmatpush2.msra.mxu0 0.0
        %563 = vmatprep.subr.mxu0 0.0
        %564 = vmatpush2.msra.mxu0 0.0
        %565 = vmatprep.subr.mxu0 0.0
        %566 = vmatpush2.msra.mxu0 0.0
        %567 = vmatprep.subr.mxu0 0.0
        %568 = vmatpush2.msra.mxu0 0.0
        %569 = vmatprep.subr.mxu0 0.0
        %570 = vmatpush2.msra.mxu0 0.0
        %571 = vmatprep.subr.mxu0 0.0
        %572 = vmatpush2.msra.mxu0 0.0
        %573 = vmatprep.mubr.f32.mxu0 0.0
        %574 = vmatmul.mubr.f32.gmra.mxu0 %v486
        %v575 = vpop.f32.mrf.mxu0
        %v576 = vadd.f32 %v467, %v575
        %v577 = vpop.f32.mrf.mxu0
        %v578 = vadd.f32 %v471, %v577
        %579 = vmatprep.mubr.f32.mxu0 0.0
        %580 = vmatmul.mubr.f32.gmra.mxu0 %v489
        %v581 = vpop.f32.mrf.mxu0
        %v582 = vadd.f32 %v467, %v581
        %v583 = vpop.f32.mrf.mxu0
        %v584 = vadd.f32 %v471, %v583
        %585 = vmatprep.mubr.f32.mxu0 0.0
        %586 = vmatmul.mubr.f32.gmra.mxu0 %v492
        %v587 = vpop.f32.mrf.mxu0
        %v588 = vadd.f32 %v467, %v587
        %v589 = vpop.f32.mrf.mxu0
        %v590 = vadd.f32 %v471, %v589
        %591 = vmatprep.mubr.f32.mxu0 0.0
        %592 = vmatmul.mubr.f32.gmra.mxu0 %v495
        %v593 = vpop.f32.mrf.mxu0
        %v594 = vadd.f32 %v467, %v593
        %v595 = vpop.f32.mrf.mxu0
        %v596 = vadd.f32 %v471, %v595
        %597 = vmatprep.mubr.f32.mxu0 0.0
        %598 = vmatmul.mubr.f32.gmra.mxu0 %v498
        %v599 = vpop.f32.mrf.mxu0
        %v600 = vadd.f32 %v467, %v599
        %v601 = vpop.f32.mrf.mxu0
        %v602 = vadd.f32 %v471, %v601
        %603 = vmatprep.mubr.f32.mxu0 0.0
        %604 = vmatmul.mubr.f32.gmra.mxu0 %v501
        %v605 = vpop.f32.mrf.mxu0
        %v606 = vadd.f32 %v467, %v605
        %v607 = vpop.f32.mrf.mxu0
        %v608 = vadd.f32 %v471, %v607
        %609 = vmatprep.mubr.f32.mxu0 0.0
        %610 = vmatmul.mubr.f32.gmra.mxu0 %v504
        %v611 = vpop.f32.mrf.mxu0
        %v612 = vadd.f32 %v467, %v611
        %v613 = vpop.f32.mrf.mxu0
        %v614 = vadd.f32 %v471, %v613
        %615 = vmatprep.mubr.f32.mxu0 0.0
        %616 = vmatmul.mubr.f32.gmra.mxu0 %v507
        %v617 = vpop.f32.mrf.mxu0
        %v618 = vadd.f32 %v467, %v617
        %v619 = vpop.f32.mrf.mxu0
        %v620 = vadd.f32 %v471, %v619
        %621 = vdwg.mxu0
        %622 = vmatprep.subr.mxu0 0.0
        %623 = vmatpush1.msra.mxu0 0.0
        %624 = vmatprep.subr.mxu0 0.0
        %625 = vmatpush1.msra.mxu0 0.0
        %626 = vmatprep.subr.mxu0 0.0
        %627 = vmatpush1.msra.mxu0 0.0
        %628 = vmatprep.subr.mxu0 0.0
        %629 = vmatpush1.msra.mxu0 0.0
        %630 = vmatprep.subr.mxu0 0.0
        %631 = vmatpush1.msra.mxu0 0.0
        %632 = vmatprep.subr.mxu0 0.0
        %633 = vmatpush1.msra.mxu0 0.0
        %634 = vmatprep.subr.mxu0 0.0
        %635 = vmatpush1.msra.mxu0 0.0
        %636 = vmatprep.subr.mxu0 0.0
        %637 = vmatpush1.msra.mxu0 0.0
        %638 = vmatprep.subr.mxu0 0.0
        %639 = vmatpush1.msra.mxu0 0.0
        %640 = vmatprep.subr.mxu0 0.0
        %641 = vmatpush1.msra.mxu0 0.0
        %642 = vmatprep.subr.mxu0 0.0
        %643 = vmatpush1.msra.mxu0 0.0
        %644 = vmatprep.subr.mxu0 0.0
        %645 = vmatpush1.msra.mxu0 0.0
        %646 = vmatprep.subr.mxu0 0.0
        %647 = vmatpush1.msra.mxu0 0.0
        %648 = vmatprep.subr.mxu0 0.0
        %649 = vmatpush1.msra.mxu0 0.0
        %650 = vmatprep.subr.mxu0 %v461
        %651 = vmatpush1.msra.mxu0 %v460
        %652 = vmatprep.subr.mxu0 %v457
        %653 = vmatpush1.msra.mxu0 %v456
        %654 = vmatprep.subr.mxu0 0.0
        %655 = vmatpush2.msra.mxu0 0.0
        %656 = vmatprep.subr.mxu0 0.0
        %657 = vmatpush2.msra.mxu0 0.0
        %658 = vmatprep.subr.mxu0 0.0
        %659 = vmatpush2.msra.mxu0 0.0
        %660 = vmatprep.subr.mxu0 0.0
        %661 = vmatpush2.msra.mxu0 0.0
        %662 = vmatprep.subr.mxu0 0.0
        %663 = vmatpush2.msra.mxu0 0.0
        %664 = vmatprep.subr.mxu0 0.0
        %665 = vmatpush2.msra.mxu0 0.0
        %666 = vmatprep.subr.mxu0 0.0
        %667 = vmatpush2.msra.mxu0 0.0
        %668 = vmatprep.subr.mxu0 0.0
        %669 = vmatpush2.msra.mxu0 0.0
        %670 = vmatprep.subr.mxu0 0.0
        %671 = vmatpush2.msra.mxu0 0.0
        %672 = vmatprep.subr.mxu0 0.0
        %673 = vmatpush2.msra.mxu0 0.0
        %674 = vmatprep.subr.mxu0 0.0
        %675 = vmatpush2.msra.mxu0 0.0
        %676 = vmatprep.subr.mxu0 0.0
        %677 = vmatpush2.msra.mxu0 0.0
        %678 = vmatprep.subr.mxu0 0.0
        %679 = vmatpush2.msra.mxu0 0.0
        %680 = vmatprep.subr.mxu0 0.0
        %681 = vmatpush2.msra.mxu0 0.0
        %682 = vmatprep.subr.mxu0 0.0
        %683 = vmatpush2.msra.mxu0 0.0
        %684 = vmatprep.subr.mxu0 0.0
        %685 = vmatpush2.msra.mxu0 0.0
        %686 = vmatprep.mubr.f32.mxu0 0.0
        %687 = vmatmul.mubr.f32.gmra.mxu0 %v486
        %v688 = vpop.f32.mrf.mxu0
        %v689 = vadd.f32 %v475, %v688
        %v690 = vpop.f32.mrf.mxu0
        %v691 = vadd.f32 %v479, %v690
        %692 = vmatprep.mubr.f32.mxu0 0.0
        %693 = vmatmul.mubr.f32.gmra.mxu0 %v489
        %v694 = vpop.f32.mrf.mxu0
        %v695 = vadd.f32 %v475, %v694
        %v696 = vpop.f32.mrf.mxu0
        %v697 = vadd.f32 %v479, %v696
        %698 = vmatprep.mubr.f32.mxu0 0.0
        %699 = vmatmul.mubr.f32.gmra.mxu0 %v492
        %v700 = vpop.f32.mrf.mxu0
        %v701 = vadd.f32 %v475, %v700
        %v702 = vpop.f32.mrf.mxu0
        %v703 = vadd.f32 %v479, %v702
        %704 = vmatprep.mubr.f32.mxu0 0.0
        %705 = vmatmul.mubr.f32.gmra.mxu0 %v495
        %v706 = vpop.f32.mrf.mxu0
        %v707 = vadd.f32 %v475, %v706
        %v708 = vpop.f32.mrf.mxu0
        %v709 = vadd.f32 %v479, %v708
        %710 = vmatprep.mubr.f32.mxu0 0.0
        %711 = vmatmul.mubr.f32.gmra.mxu0 %v498
        %v712 = vpop.f32.mrf.mxu0
        %v713 = vadd.f32 %v475, %v712
        %v714 = vpop.f32.mrf.mxu0
        %v715 = vadd.f32 %v479, %v714
        %716 = vmatprep.mubr.f32.mxu0 0.0
        %717 = vmatmul.mubr.f32.gmra.mxu0 %v501
        %v718 = vpop.f32.mrf.mxu0
        %v719 = vadd.f32 %v475, %v718
        %v720 = vpop.f32.mrf.mxu0
        %v721 = vadd.f32 %v479, %v720
        %722 = vmatprep.mubr.f32.mxu0 0.0
        %723 = vmatmul.mubr.f32.gmra.mxu0 %v504
        %v724 = vpop.f32.mrf.mxu0
        %v725 = vadd.f32 %v475, %v724
        %v726 = vpop.f32.mrf.mxu0
        %v727 = vadd.f32 %v479, %v726
        %728 = vmatprep.mubr.f32.mxu0 0.0
        %729 = vmatmul.mubr.f32.gmra.mxu0 %v507
        %v730 = vpop.f32.mrf.mxu0
        %v731 = vadd.f32 %v475, %v730
        %v732 = vpop.f32.mrf.mxu0
        %v733 = vadd.f32 %v479, %v732
        %734 = vdwg.mxu0
        %v735 = vld [vmem:[%s445] sm:$0xff]
        %v736 = vld [vmem:[%s4] sm:$0xff]
        %v737 = vld [vmem:[%s4 + $0x8] sm:$0xff]
        %v738 = vld [vmem:[%s4 + $0x10] sm:$0xff]
        %v739 = vld [vmem:[%s4 + $0x18] sm:$0xff]
        %v740 = vld [vmem:[%s5] sm:$0x3]
        %v742 = vlaneseq
        %v743 = vshrl.u32 %v742, 7
        %v744 = vsub.s32 0, %v743
        %v745 = vrot.slane %v740, %v744
        %v746 = vlaneseq
        %v747 = vshrl.u32 %v746, 7
        %v748 = vsub.s32 1, %v747
        %v749 = vrot.slane %v740, %v748
        %v753 = vsel %vm484, %v735, 0
        %755 = vmatprep.subr.mxu0 0.0
        %756 = vmatpush1.msra.mxu0 0.0
        %757 = vmatprep.subr.mxu0 0.0
        %758 = vmatpush1.msra.mxu0 0.0
        %759 = vmatprep.subr.mxu0 0.0
        %760 = vmatpush1.msra.mxu0 0.0
        %761 = vmatprep.subr.mxu0 0.0
        %762 = vmatpush1.msra.mxu0 0.0
        %763 = vmatprep.subr.mxu0 0.0
        %764 = vmatpush1.msra.mxu0 0.0
        %765 = vmatprep.subr.mxu0 0.0
        %766 = vmatpush1.msra.mxu0 0.0
        %767 = vmatprep.subr.mxu0 0.0
        %768 = vmatpush1.msra.mxu0 0.0
        %769 = vmatprep.subr.mxu0 0.0
        %770 = vmatpush1.msra.mxu0 0.0
        %771 = vmatprep.subr.mxu0 0.0
        %772 = vmatpush1.msra.mxu0 0.0
        %773 = vmatprep.subr.mxu0 0.0
        %774 = vmatpush1.msra.mxu0 0.0
        %775 = vmatprep.subr.mxu0 0.0
        %776 = vmatpush1.msra.mxu0 0.0
        %777 = vmatprep.subr.mxu0 0.0
        %778 = vmatpush1.msra.mxu0 0.0
        %779 = vmatprep.subr.mxu0 0.0
        %780 = vmatpush1.msra.mxu0 0.0
        %781 = vmatprep.subr.mxu0 0.0
        %782 = vmatpush1.msra.mxu0 0.0
        %783 = vmatprep.subr.mxu0 %v739
        %784 = vmatpush1.msra.mxu0 %v738
        %785 = vmatprep.subr.mxu0 %v737
        %786 = vmatpush1.msra.mxu0 %v736
        %787 = vmatprep.subr.mxu0 0.0
        %788 = vmatpush2.msra.mxu0 0.0
        %789 = vmatprep.subr.mxu0 0.0
        %790 = vmatpush2.msra.mxu0 0.0
        %791 = vmatprep.subr.mxu0 0.0
        %792 = vmatpush2.msra.mxu0 0.0
        %793 = vmatprep.subr.mxu0 0.0
        %794 = vmatpush2.msra.mxu0 0.0
        %795 = vmatprep.subr.mxu0 0.0
        %796 = vmatpush2.msra.mxu0 0.0
        %797 = vmatprep.subr.mxu0 0.0
        %798 = vmatpush2.msra.mxu0 0.0
        %799 = vmatprep.subr.mxu0 0.0
        %800 = vmatpush2.msra.mxu0 0.0
        %801 = vmatprep.subr.mxu0 0.0
        %802 = vmatpush2.msra.mxu0 0.0
        %803 = vmatprep.subr.mxu0 0.0
        %804 = vmatpush2.msra.mxu0 0.0
        %805 = vmatprep.subr.mxu0 0.0
        %806 = vmatpush2.msra.mxu0 0.0
        %807 = vmatprep.subr.mxu0 0.0
        %808 = vmatpush2.msra.mxu0 0.0
        %809 = vmatprep.subr.mxu0 0.0
        %810 = vmatpush2.msra.mxu0 0.0
        %811 = vmatprep.subr.mxu0 0.0
        %812 = vmatpush2.msra.mxu0 0.0
        %813 = vmatprep.subr.mxu0 0.0
        %814 = vmatpush2.msra.mxu0 0.0
        %815 = vmatprep.subr.mxu0 0.0
        %816 = vmatpush2.msra.mxu0 0.0
        %817 = vmatprep.subr.mxu0 0.0
        %818 = vmatpush2.msra.mxu0 0.0
        %819 = vmatprep.mubr.f32.mxu0 0.0
        %820 = vmatmul.mubr.f32.gmra.mxu0 %v753
        %v821 = vpop.f32.mrf.mxu0
        %v822 = vadd.f32 %v745, %v821
        %v823 = vpop.f32.mrf.mxu0
        %v824 = vadd.f32 %v749, %v823
        %825 = vdwg.mxu0
        %v826 = vld [vmem:[#allocation2] sm:$0xff]
        %v827 = vld [vmem:[#allocation2 + $0x8] sm:$0xff]
        %v828 = vld [vmem:[#allocation2 + $0x10] sm:$0xff]
        %v829 = vld [vmem:[#allocation2 + $0x18] sm:$0xff]
        %v830 = vld [vmem:[#allocation2 + $0x20] sm:$0xff]
        %v831 = vld [vmem:[#allocation2 + $0x28] sm:$0xff]
        %v832 = vld [vmem:[#allocation2 + $0x30] sm:$0xff]
        %v833 = vld [vmem:[#allocation2 + $0x38] sm:$0xff]
        %v834 = vld [vmem:[#allocation2 + $0x40] sm:$0xff]
        %v835 = vld [vmem:[#allocation2 + $0x48] sm:$0xff]
        %v836 = vld [vmem:[#allocation2 + $0x50] sm:$0xff]
        %v837 = vld [vmem:[#allocation2 + $0x58] sm:$0xff]
        %v838 = vld [vmem:[#allocation2 + $0x60] sm:$0xff]
        %v839 = vld [vmem:[#allocation2 + $0x68] sm:$0xff]
        %v840 = vld [vmem:[#allocation2 + $0x70] sm:$0xff]
        %v841 = vld [vmem:[#allocation2 + $0x78] sm:$0xff]
        %v842 = vld [vmem:[#allocation2 + $0x80] sm:$0xff]
        %v843 = vld [vmem:[#allocation2 + $0x88] sm:$0xff]
        %v844 = vld [vmem:[#allocation2 + $0x90] sm:$0xff]
        %v845 = vld [vmem:[#allocation2 + $0x98] sm:$0xff]
        %v846 = vld [vmem:[#allocation2 + $0xa0] sm:$0xff]
        %v847 = vld [vmem:[#allocation2 + $0xa8] sm:$0xff]
        %v848 = vld [vmem:[#allocation2 + $0xb0] sm:$0xff]
        %v849 = vld [vmem:[#allocation2 + $0xb8] sm:$0xff]
        %v850 = vld [vmem:[#allocation2 + $0xc0] sm:$0xff]
        %v851 = vld [vmem:[#allocation2 + $0xc8] sm:$0xff]
        %v852 = vld [vmem:[#allocation2 + $0xd0] sm:$0xff]
        %v853 = vld [vmem:[#allocation2 + $0xd8] sm:$0xff]
        %v854 = vld [vmem:[#allocation2 + $0xe0] sm:$0xff]
        %v855 = vld [vmem:[#allocation2 + $0xe8] sm:$0xff]
        %v856 = vld [vmem:[#allocation2 + $0xf0] sm:$0xff]
        %v857 = vld [vmem:[#allocation2 + $0xf8] sm:$0xff]
        %v858 = vld [vmem:[#allocation2 + $0x100] sm:$0xff]
        %v859 = vld [vmem:[#allocation2 + $0x108] sm:$0xff]
        %v860 = vld [vmem:[#allocation2 + $0x110] sm:$0xff]
        %v861 = vld [vmem:[#allocation2 + $0x118] sm:$0xff]
        %v862 = vld [vmem:[#allocation2 + $0x120] sm:$0xff]
        %v863 = vld [vmem:[#allocation2 + $0x128] sm:$0xff]
        %v864 = vld [vmem:[#allocation2 + $0x130] sm:$0xff]
        %v865 = vld [vmem:[#allocation2 + $0x138] sm:$0xff]
        %v866 = vld [vmem:[#allocation2 + $0x140] sm:$0xff]
        %v867 = vld [vmem:[#allocation2 + $0x148] sm:$0xff]
        %v868 = vld [vmem:[#allocation2 + $0x150] sm:$0xff]
        %v869 = vld [vmem:[#allocation2 + $0x158] sm:$0xff]
        %v870 = vld [vmem:[#allocation2 + $0x160] sm:$0xff]
        %v871 = vld [vmem:[#allocation2 + $0x168] sm:$0xff]
        %v872 = vld [vmem:[#allocation2 + $0x170] sm:$0xff]
        %v873 = vld [vmem:[#allocation2 + $0x178] sm:$0xff]
        %v874 = vld [vmem:[#allocation2 + $0x180] sm:$0xff]
        %v875 = vld [vmem:[#allocation2 + $0x188] sm:$0xff]
        %v876 = vld [vmem:[#allocation2 + $0x190] sm:$0xff]
        %v877 = vld [vmem:[#allocation2 + $0x198] sm:$0xff]
        %v878 = vld [vmem:[#allocation2 + $0x1a0] sm:$0xff]
        %v879 = vld [vmem:[#allocation2 + $0x1a8] sm:$0xff]
        %v880 = vld [vmem:[#allocation2 + $0x1b0] sm:$0xff]
        %v881 = vld [vmem:[#allocation2 + $0x1b8] sm:$0xff]
        %v882 = vld [vmem:[#allocation2 + $0x1c0] sm:$0xff]
        %v883 = vld [vmem:[#allocation2 + $0x1c8] sm:$0xff]
        %v884 = vld [vmem:[#allocation2 + $0x1d0] sm:$0xff]
        %v885 = vld [vmem:[#allocation2 + $0x1d8] sm:$0xff]
        %v886 = vld [vmem:[#allocation2 + $0x1e0] sm:$0xff]
        %v887 = vld [vmem:[#allocation2 + $0x1e8] sm:$0xff]
        %v888 = vld [vmem:[#allocation2 + $0x1f0] sm:$0xff]
        %v889 = vld [vmem:[#allocation2 + $0x1f8] sm:$0xff]
        %890 = vmatprep.subr.mxu0 %v857
        %891 = vmatpush1.msra.mxu0 %v856
        %892 = vmatprep.subr.mxu0 %v855
        %893 = vmatpush1.msra.mxu0 %v854
        %894 = vmatprep.subr.mxu0 %v853
        %895 = vmatpush1.msra.mxu0 %v852
        %896 = vmatprep.subr.mxu0 %v851
        %897 = vmatpush1.msra.mxu0 %v850
        %898 = vmatprep.subr.mxu0 %v849
        %899 = vmatpush1.msra.mxu0 %v848
        %900 = vmatprep.subr.mxu0 %v847
        %901 = vmatpush1.msra.mxu0 %v846
        %902 = vmatprep.subr.mxu0 %v845
        %903 = vmatpush1.msra.mxu0 %v844
        %904 = vmatprep.subr.mxu0 %v843
        %905 = vmatpush1.msra.mxu0 %v842
        %906 = vmatprep.subr.mxu0 %v841
        %907 = vmatpush1.msra.mxu0 %v840
        %908 = vmatprep.subr.mxu0 %v839
        %909 = vmatpush1.msra.mxu0 %v838
        %910 = vmatprep.subr.mxu0 %v837
        %911 = vmatpush1.msra.mxu0 %v836
        %912 = vmatprep.subr.mxu0 %v835
        %913 = vmatpush1.msra.mxu0 %v834
        %914 = vmatprep.subr.mxu0 %v833
        %915 = vmatpush1.msra.mxu0 %v832
        %916 = vmatprep.subr.mxu0 %v831
        %917 = vmatpush1.msra.mxu0 %v830
        %918 = vmatprep.subr.mxu0 %v829
        %919 = vmatpush1.msra.mxu0 %v828
        %920 = vmatprep.subr.mxu0 %v827
        %921 = vmatpush1.msra.mxu0 %v826
        %922 = vmatprep.subr.mxu0 %v889
        %923 = vmatpush2.msra.mxu0 %v888
        %924 = vmatprep.subr.mxu0 %v887
        %925 = vmatpush2.msra.mxu0 %v886
        %926 = vmatprep.subr.mxu0 %v885
        %927 = vmatpush2.msra.mxu0 %v884
        %928 = vmatprep.subr.mxu0 %v883
        %929 = vmatpush2.msra.mxu0 %v882
        %930 = vmatprep.subr.mxu0 %v881
        %931 = vmatpush2.msra.mxu0 %v880
        %932 = vmatprep.subr.mxu0 %v879
        %933 = vmatpush2.msra.mxu0 %v878
        %934 = vmatprep.subr.mxu0 %v877
        %935 = vmatpush2.msra.mxu0 %v876
        %936 = vmatprep.subr.mxu0 %v875
        %937 = vmatpush2.msra.mxu0 %v874
        %938 = vmatprep.subr.mxu0 %v873
        %939 = vmatpush2.msra.mxu0 %v872
        %940 = vmatprep.subr.mxu0 %v871
        %941 = vmatpush2.msra.mxu0 %v870
        %942 = vmatprep.subr.mxu0 %v869
        %943 = vmatpush2.msra.mxu0 %v868
        %944 = vmatprep.subr.mxu0 %v867
        %945 = vmatpush2.msra.mxu0 %v866
        %946 = vmatprep.subr.mxu0 %v865
        %947 = vmatpush2.msra.mxu0 %v864
        %948 = vmatprep.subr.mxu0 %v863
        %949 = vmatpush2.msra.mxu0 %v862
        %950 = vmatprep.subr.mxu0 %v861
        %951 = vmatpush2.msra.mxu0 %v860
        %952 = vmatprep.subr.mxu0 %v859
        %953 = vmatpush2.msra.mxu0 %v858
        %954 = vmatprep.mubr.f32.mxu0 %v578
        %955 = vmatmul.mubr.f32.gmra.mxu0 %v576
        %v956 = vpop.f32.mrf.mxu0
        %v957 = vadd.f32 0.0, %v956
        %v958 = vpop.f32.mrf.mxu0
        %v959 = vadd.f32 0.0, %v958
        %960 = vmatprep.mubr.f32.mxu0 %v584
        %961 = vmatmul.mubr.f32.gmra.mxu0 %v582
        %v962 = vpop.f32.mrf.mxu0
        %v963 = vadd.f32 0.0, %v962
        %v964 = vpop.f32.mrf.mxu0
        %v965 = vadd.f32 0.0, %v964
        %966 = vmatprep.mubr.f32.mxu0 %v590
        %967 = vmatmul.mubr.f32.gmra.mxu0 %v588
        %v968 = vpop.f32.mrf.mxu0
        %v969 = vadd.f32 0.0, %v968
        %v970 = vpop.f32.mrf.mxu0
        %v971 = vadd.f32 0.0, %v970
        %972 = vmatprep.mubr.f32.mxu0 %v596
        %973 = vmatmul.mubr.f32.gmra.mxu0 %v594
        %v974 = vpop.f32.mrf.mxu0
        %v975 = vadd.f32 0.0, %v974
        %v976 = vpop.f32.mrf.mxu0
        %v977 = vadd.f32 0.0, %v976
        %978 = vmatprep.mubr.f32.mxu0 %v602
        %979 = vmatmul.mubr.f32.gmra.mxu0 %v600
        %v980 = vpop.f32.mrf.mxu0
        %v981 = vadd.f32 0.0, %v980
        %v982 = vpop.f32.mrf.mxu0
        %v983 = vadd.f32 0.0, %v982
        %984 = vmatprep.mubr.f32.mxu0 %v608
        %985 = vmatmul.mubr.f32.gmra.mxu0 %v606
        %v986 = vpop.f32.mrf.mxu0
        %v987 = vadd.f32 0.0, %v986
        %v988 = vpop.f32.mrf.mxu0
        %v989 = vadd.f32 0.0, %v988
        %990 = vmatprep.mubr.f32.mxu0 %v614
        %991 = vmatmul.mubr.f32.gmra.mxu0 %v612
        %v992 = vpop.f32.mrf.mxu0
        %v993 = vadd.f32 0.0, %v992
        %v994 = vpop.f32.mrf.mxu0
        %v995 = vadd.f32 0.0, %v994
        %996 = vmatprep.mubr.f32.mxu0 %v620
        %997 = vmatmul.mubr.f32.gmra.mxu0 %v618
        %v998 = vpop.f32.mrf.mxu0
        %v999 = vadd.f32 0.0, %v998
        %v1000 = vpop.f32.mrf.mxu0
        %v1001 = vadd.f32 0.0, %v1000
        %1002 = vdwg.mxu0
        %v1003 = vld [vmem:[%s6] sm:$0xff]
        %v1004 = vld [vmem:[%s6 + $0x8] sm:$0xff]
        %v1005 = vmul.f32 %v576, %v1003
        %v1006 = vmul.f32 %v578, %v1004
        %v1007 = vmul.f32 %v582, %v1003
        %v1008 = vmul.f32 %v584, %v1004
        %v1009 = vmul.f32 %v588, %v1003
        %v1010 = vmul.f32 %v590, %v1004
        %v1011 = vmul.f32 %v594, %v1003
        %v1012 = vmul.f32 %v596, %v1004
        %v1013 = vmul.f32 %v600, %v1003
        %v1014 = vmul.f32 %v602, %v1004
        %v1015 = vmul.f32 %v606, %v1003
        %v1016 = vmul.f32 %v608, %v1004
        %v1017 = vmul.f32 %v612, %v1003
        %v1018 = vmul.f32 %v614, %v1004
        %v1019 = vmul.f32 %v618, %v1003
        %v1020 = vmul.f32 %v620, %v1004
        %v1021 = vld [vmem:[%s7] sm:$0xff]
        %v1022 = vld [vmem:[%s7 + $0x8] sm:$0xff]
        %v1023 = vmul.f32 %v957, %v1021
        %v1024 = vmul.f32 %v959, %v1022
        %v1025 = vmul.f32 %v963, %v1021
        %v1026 = vmul.f32 %v965, %v1022
        %v1027 = vmul.f32 %v969, %v1021
        %v1028 = vmul.f32 %v971, %v1022
        %v1029 = vmul.f32 %v975, %v1021
        %v1030 = vmul.f32 %v977, %v1022
        %v1031 = vmul.f32 %v981, %v1021
        %v1032 = vmul.f32 %v983, %v1022
        %v1033 = vmul.f32 %v987, %v1021
        %v1034 = vmul.f32 %v989, %v1022
        %v1035 = vmul.f32 %v993, %v1021
        %v1036 = vmul.f32 %v995, %v1022
        %v1037 = vmul.f32 %v999, %v1021
        %v1038 = vmul.f32 %v1001, %v1022
        %v1039 = vadd.f32 %v1005, %v1023
        %v1040 = vadd.f32 %v1006, %v1024
        %v1041 = vadd.f32 %v1007, %v1025
        %v1042 = vadd.f32 %v1008, %v1026
        %v1043 = vadd.f32 %v1009, %v1027
        %v1044 = vadd.f32 %v1010, %v1028
        %v1045 = vadd.f32 %v1011, %v1029
        %v1046 = vadd.f32 %v1012, %v1030
        %v1047 = vadd.f32 %v1013, %v1031
        %v1048 = vadd.f32 %v1014, %v1032
        %v1049 = vadd.f32 %v1015, %v1033
        %v1050 = vadd.f32 %v1016, %v1034
        %v1051 = vadd.f32 %v1017, %v1035
        %v1052 = vadd.f32 %v1018, %v1036
        %v1053 = vadd.f32 %v1019, %v1037
        %v1054 = vadd.f32 %v1020, %v1038
        %v1057 = vcombine.low %v822, %v824
        %v1058 = vcombine.high %v822, %v824
        %v1060 = vunpack.c.l.s4 1966171168
        %v1061 = vunpack.c.0.s8 %v1060
        %v1062 = vlaneseq
        %v1063 = vshrl.u32 %v1062, 7
        %v1064 = vsub.s32 %v1061, %v1063
        %v1065 = vrot.slane %v1057, %v1064
        %v1067 = vunpack.c.l.s4 1966171168
        %v1068 = vunpack.c.0.s8 %v1067
        %v1069 = vlaneseq
        %v1070 = vshrl.u32 %v1069, 7
        %v1071 = vsub.s32 %v1068, %v1070
        %v1072 = vrot.slane %v1058, %v1071
        %v1073 = vcombine.high %v1065, %v1065
        %v1074 = vcombine.high %v1072, %v1072
        %v1076 = vunpack.c.l.s4 1966171168
        %v1077 = vunpack.c.0.s8 %v1076
        %v1078 = vlaneseq
        %v1079 = vshrl.u32 %v1078, 7
        %v1080 = vsub.s32 %v1077, %v1079
        %v1081 = vrot.slane %v1065, %v1080
        %v1083 = vunpack.c.l.s4 1966171168
        %v1084 = vunpack.c.0.s8 %v1083
        %v1085 = vlaneseq
        %v1086 = vshrl.u32 %v1085, 7
        %v1087 = vsub.s32 %v1084, %v1086
        %v1088 = vrot.slane %v1072, %v1087
        %v1090 = vunpack.c.l.s4 1966171168
        %v1091 = vunpack.c.0.s8 %v1090
        %v1092 = vlaneseq
        %v1093 = vshrl.u32 %v1092, 7
        %v1094 = vsub.s32 %v1091, %v1093
        %v1095 = vrot.slane %v1073, %v1094
        %v1097 = vunpack.c.l.s4 1966171168
        %v1098 = vunpack.c.0.s8 %v1097
        %v1099 = vlaneseq
        %v1100 = vshrl.u32 %v1099, 7
        %v1101 = vsub.s32 %v1098, %v1100
        %v1102 = vrot.slane %v1074, %v1101
        %v1103 = vcombine.high %v1081, %v1081
        %v1104 = vcombine.high %v1088, %v1088
        %v1105 = vcombine.high %v1095, %v1095
        %v1106 = vcombine.high %v1102, %v1102
        %v1107 = vlaneseq
        %v1108 = vshrl.u32 %v1107, 7
        %v1109 = vsub.s32 0, %v1108
        %v1110 = vrot.slane %v1081, %v1109
        %v1111 = vlaneseq
        %v1112 = vshrl.u32 %v1111, 7
        %v1113 = vsub.s32 1, %v1112
        %v1114 = vrot.slane %v1081, %v1113
        %v1115 = vlaneseq
        %v1116 = vshrl.u32 %v1115, 7
        %v1117 = vsub.s32 0, %v1116
        %v1118 = vrot.slane %v1095, %v1117
        %v1119 = vlaneseq
        %v1120 = vshrl.u32 %v1119, 7
        %v1121 = vsub.s32 1, %v1120
        %v1122 = vrot.slane %v1095, %v1121
        %v1123 = vlaneseq
        %v1124 = vshrl.u32 %v1123, 7
        %v1125 = vsub.s32 0, %v1124
        %v1126 = vrot.slane %v1103, %v1125
        %v1127 = vlaneseq
        %v1128 = vshrl.u32 %v1127, 7
        %v1129 = vsub.s32 1, %v1128
        %v1130 = vrot.slane %v1103, %v1129
        %v1131 = vlaneseq
        %v1132 = vshrl.u32 %v1131, 7
        %v1133 = vsub.s32 0, %v1132
        %v1134 = vrot.slane %v1105, %v1133
        %v1135 = vlaneseq
        %v1136 = vshrl.u32 %v1135, 7
        %v1137 = vsub.s32 1, %v1136
        %v1138 = vrot.slane %v1105, %v1137
        %v1139 = vlaneseq
        %v1140 = vshrl.u32 %v1139, 7
        %v1141 = vsub.s32 0, %v1140
        %v1142 = vrot.slane %v1088, %v1141
        %v1143 = vlaneseq
        %v1144 = vshrl.u32 %v1143, 7
        %v1145 = vsub.s32 1, %v1144
        %v1146 = vrot.slane %v1088, %v1145
        %v1147 = vlaneseq
        %v1148 = vshrl.u32 %v1147, 7
        %v1149 = vsub.s32 0, %v1148
        %v1150 = vrot.slane %v1102, %v1149
        %v1151 = vlaneseq
        %v1152 = vshrl.u32 %v1151, 7
        %v1153 = vsub.s32 1, %v1152
        %v1154 = vrot.slane %v1102, %v1153
        %v1155 = vlaneseq
        %v1156 = vshrl.u32 %v1155, 7
        %v1157 = vsub.s32 0, %v1156
        %v1158 = vrot.slane %v1104, %v1157
        %v1159 = vlaneseq
        %v1160 = vshrl.u32 %v1159, 7
        %v1161 = vsub.s32 1, %v1160
        %v1162 = vrot.slane %v1104, %v1161
        %v1163 = vlaneseq
        %v1164 = vshrl.u32 %v1163, 7
        %v1165 = vsub.s32 0, %v1164
        %v1166 = vrot.slane %v1106, %v1165
        %v1167 = vlaneseq
        %v1168 = vshrl.u32 %v1167, 7
        %v1169 = vsub.s32 1, %v1168
        %v1170 = vrot.slane %v1106, %v1169
        %v1187 = vmul.f32 %v1039, %v1110
        %v1188 = vmul.f32 %v1040, %v1114
        %v1189 = vmul.f32 %v1041, %v1118
        %v1190 = vmul.f32 %v1042, %v1122
        %v1191 = vmul.f32 %v1043, %v1126
        %v1192 = vmul.f32 %v1044, %v1130
        %v1193 = vmul.f32 %v1045, %v1134
        %v1194 = vmul.f32 %v1046, %v1138
        %v1195 = vmul.f32 %v1047, %v1142
        %v1196 = vmul.f32 %v1048, %v1146
        %v1197 = vmul.f32 %v1049, %v1150
        %v1198 = vmul.f32 %v1050, %v1154
        %v1199 = vmul.f32 %v1051, %v1158
        %v1200 = vmul.f32 %v1052, %v1162
        %v1201 = vmul.f32 %v1053, %v1166
        %v1202 = vmul.f32 %v1054, %v1170
        %v1203 = vld [vmem:[%s9] sm:$0xff]
        %v1204 = vld [vmem:[%s9 + $0x8] sm:$0xff]
        %v1205 = vld [vmem:[%s9 + $0x10] sm:$0xff]
        %v1206 = vld [vmem:[%s9 + $0x18] sm:$0xff]
        %v1207 = vld [vmem:[%s9 + $0x20] sm:$0xff]
        %v1208 = vld [vmem:[%s9 + $0x28] sm:$0xff]
        %v1209 = vld [vmem:[%s9 + $0x30] sm:$0xff]
        %v1210 = vld [vmem:[%s9 + $0x38] sm:$0xff]
        %v1211 = vld [vmem:[%s9 + $0x40] sm:$0xff]
        %v1212 = vld [vmem:[%s9 + $0x48] sm:$0xff]
        %v1213 = vld [vmem:[%s9 + $0x50] sm:$0xff]
        %v1214 = vld [vmem:[%s9 + $0x58] sm:$0xff]
        %v1215 = vld [vmem:[%s9 + $0x60] sm:$0xff]
        %v1216 = vld [vmem:[%s9 + $0x68] sm:$0xff]
        %v1217 = vld [vmem:[%s9 + $0x70] sm:$0xff]
        %v1218 = vld [vmem:[%s9 + $0x78] sm:$0xff]
        %v1219 = vld [vmem:[%s9 + $0x80] sm:$0xff]
        %v1220 = vld [vmem:[%s9 + $0x88] sm:$0xff]
        %v1221 = vld [vmem:[%s9 + $0x90] sm:$0xff]
        %v1222 = vld [vmem:[%s9 + $0x98] sm:$0xff]
        %v1223 = vld [vmem:[%s9 + $0xa0] sm:$0xff]
        %v1224 = vld [vmem:[%s9 + $0xa8] sm:$0xff]
        %v1225 = vld [vmem:[%s9 + $0xb0] sm:$0xff]
        %v1226 = vld [vmem:[%s9 + $0xb8] sm:$0xff]
        %v1227 = vld [vmem:[%s9 + $0xc0] sm:$0xff]
        %v1228 = vld [vmem:[%s9 + $0xc8] sm:$0xff]
        %v1229 = vld [vmem:[%s9 + $0xd0] sm:$0xff]
        %v1230 = vld [vmem:[%s9 + $0xd8] sm:$0xff]
        %v1231 = vld [vmem:[%s9 + $0xe0] sm:$0xff]
        %v1232 = vld [vmem:[%s9 + $0xe8] sm:$0xff]
        %v1233 = vld [vmem:[%s9 + $0xf0] sm:$0xff]
        %v1234 = vld [vmem:[%s9 + $0xf8] sm:$0xff]
        %1235 = vmatprep.subr.mxu0 0.0
        %1236 = vmatpush1.msra.mxu0 %v1218
        %1237 = vmatprep.subr.mxu0 0.0
        %1238 = vmatpush1.msra.mxu0 %v1217
        %1239 = vmatprep.subr.mxu0 0.0
        %1240 = vmatpush1.msra.mxu0 %v1216
        %1241 = vmatprep.subr.mxu0 0.0
        %1242 = vmatpush1.msra.mxu0 %v1215
        %1243 = vmatprep.subr.mxu0 0.0
        %1244 = vmatpush1.msra.mxu0 %v1214
        %1245 = vmatprep.subr.mxu0 0.0
        %1246 = vmatpush1.msra.mxu0 %v1213
        %1247 = vmatprep.subr.mxu0 0.0
        %1248 = vmatpush1.msra.mxu0 %v1212
        %1249 = vmatprep.subr.mxu0 0.0
        %1250 = vmatpush1.msra.mxu0 %v1211
        %1251 = vmatprep.subr.mxu0 0.0
        %1252 = vmatpush1.msra.mxu0 %v1210
        %1253 = vmatprep.subr.mxu0 0.0
        %1254 = vmatpush1.msra.mxu0 %v1209
        %1255 = vmatprep.subr.mxu0 0.0
        %1256 = vmatpush1.msra.mxu0 %v1208
        %1257 = vmatprep.subr.mxu0 0.0
        %1258 = vmatpush1.msra.mxu0 %v1207
        %1259 = vmatprep.subr.mxu0 0.0
        %1260 = vmatpush1.msra.mxu0 %v1206
        %1261 = vmatprep.subr.mxu0 0.0
        %1262 = vmatpush1.msra.mxu0 %v1205
        %1263 = vmatprep.subr.mxu0 0.0
        %1264 = vmatpush1.msra.mxu0 %v1204
        %1265 = vmatprep.subr.mxu0 0.0
        %1266 = vmatpush1.msra.mxu0 %v1203
        %1267 = vmatprep.subr.mxu0 0.0
        %1268 = vmatpush2.msra.mxu0 %v1234
        %1269 = vmatprep.subr.mxu0 0.0
        %1270 = vmatpush2.msra.mxu0 %v1233
        %1271 = vmatprep.subr.mxu0 0.0
        %1272 = vmatpush2.msra.mxu0 %v1232
        %1273 = vmatprep.subr.mxu0 0.0
        %1274 = vmatpush2.msra.mxu0 %v1231
        %1275 = vmatprep.subr.mxu0 0.0
        %1276 = vmatpush2.msra.mxu0 %v1230
        %1277 = vmatprep.subr.mxu0 0.0
        %1278 = vmatpush2.msra.mxu0 %v1229
        %1279 = vmatprep.subr.mxu0 0.0
        %1280 = vmatpush2.msra.mxu0 %v1228
        %1281 = vmatprep.subr.mxu0 0.0
        %1282 = vmatpush2.msra.mxu0 %v1227
        %1283 = vmatprep.subr.mxu0 0.0
        %1284 = vmatpush2.msra.mxu0 %v1226
        %1285 = vmatprep.subr.mxu0 0.0
        %1286 = vmatpush2.msra.mxu0 %v1225
        %1287 = vmatprep.subr.mxu0 0.0
        %1288 = vmatpush2.msra.mxu0 %v1224
        %1289 = vmatprep.subr.mxu0 0.0
        %1290 = vmatpush2.msra.mxu0 %v1223
        %1291 = vmatprep.subr.mxu0 0.0
        %1292 = vmatpush2.msra.mxu0 %v1222
        %1293 = vmatprep.subr.mxu0 0.0
        %1294 = vmatpush2.msra.mxu0 %v1221
        %1295 = vmatprep.subr.mxu0 0.0
        %1296 = vmatpush2.msra.mxu0 %v1220
        %1297 = vmatprep.subr.mxu0 0.0
        %1298 = vmatpush2.msra.mxu0 %v1219
        %1299 = vmatprep.mubr.f32.mxu0 %v1188
        %1300 = vmatmul.mubr.f32.gmra.mxu0 %v1187
        %v1301 = vpop.f32.mrf.mxu0
        %v1302 = vadd.f32 0.0, %v1301
        %v1303 = vpop.f32.mrf.mxu0
        %1304 = vmatprep.mubr.f32.mxu0 %v1190
        %1305 = vmatmul.mubr.f32.gmra.mxu0 %v1189
        %v1306 = vpop.f32.mrf.mxu0
        %v1307 = vadd.f32 0.0, %v1306
        %v1308 = vpop.f32.mrf.mxu0
        %1309 = vmatprep.mubr.f32.mxu0 %v1192
        %1310 = vmatmul.mubr.f32.gmra.mxu0 %v1191
        %v1311 = vpop.f32.mrf.mxu0
        %v1312 = vadd.f32 0.0, %v1311
        %v1313 = vpop.f32.mrf.mxu0
        %1314 = vmatprep.mubr.f32.mxu0 %v1194
        %1315 = vmatmul.mubr.f32.gmra.mxu0 %v1193
        %v1316 = vpop.f32.mrf.mxu0
        %v1317 = vadd.f32 0.0, %v1316
        %v1318 = vpop.f32.mrf.mxu0
        %1319 = vmatprep.mubr.f32.mxu0 %v1196
        %1320 = vmatmul.mubr.f32.gmra.mxu0 %v1195
        %v1321 = vpop.f32.mrf.mxu0
        %v1322 = vadd.f32 0.0, %v1321
        %v1323 = vpop.f32.mrf.mxu0
        %1324 = vmatprep.mubr.f32.mxu0 %v1198
        %1325 = vmatmul.mubr.f32.gmra.mxu0 %v1197
        %v1326 = vpop.f32.mrf.mxu0
        %v1327 = vadd.f32 0.0, %v1326
        %v1328 = vpop.f32.mrf.mxu0
        %1329 = vmatprep.mubr.f32.mxu0 %v1200
        %1330 = vmatmul.mubr.f32.gmra.mxu0 %v1199
        %v1331 = vpop.f32.mrf.mxu0
        %v1332 = vadd.f32 0.0, %v1331
        %v1333 = vpop.f32.mrf.mxu0
        %1334 = vmatprep.mubr.f32.mxu0 %v1202
        %1335 = vmatmul.mubr.f32.gmra.mxu0 %v1201
        %v1336 = vpop.f32.mrf.mxu0
        %v1337 = vadd.f32 0.0, %v1336
        %v1338 = vpop.f32.mrf.mxu0
        %1339 = vdwg.mxu0
        %v1340 = vmul.f32 %v1302, %v1302
        %v1341 = vmul.f32 %v1307, %v1307
        %v1342 = vmul.f32 %v1312, %v1312
        %v1343 = vmul.f32 %v1317, %v1317
        %v1344 = vmul.f32 %v1322, %v1322
        %v1345 = vmul.f32 %v1327, %v1327
        %v1346 = vmul.f32 %v1332, %v1332
        %v1347 = vmul.f32 %v1337, %v1337
        %v1348 = vmul.f32 %v689, %v689
        %v1349 = vmul.f32 %v691, %v691
        %v1350 = vmul.f32 %v695, %v695
        %v1351 = vmul.f32 %v697, %v697
        %v1352 = vmul.f32 %v701, %v701
        %v1353 = vmul.f32 %v703, %v703
        %v1354 = vmul.f32 %v707, %v707
        %v1355 = vmul.f32 %v709, %v709
        %v1356 = vmul.f32 %v713, %v713
        %v1357 = vmul.f32 %v715, %v715
        %v1358 = vmul.f32 %v719, %v719
        %v1359 = vmul.f32 %v721, %v721
        %v1360 = vmul.f32 %v725, %v725
        %v1361 = vmul.f32 %v727, %v727
        %v1362 = vmul.f32 %v731, %v731
        %v1363 = vmul.f32 %v733, %v733
        %v1364 = vmul.f32 %v1348, %v689
        %v1365 = vmul.f32 %v1349, %v691
        %v1366 = vmul.f32 %v1350, %v695
        %v1367 = vmul.f32 %v1351, %v697
        %v1368 = vmul.f32 %v1352, %v701
        %v1369 = vmul.f32 %v1353, %v703
        %v1370 = vmul.f32 %v1354, %v707
        %v1371 = vmul.f32 %v1355, %v709
        %v1372 = vmul.f32 %v1356, %v713
        %v1373 = vmul.f32 %v1357, %v715
        %v1374 = vmul.f32 %v1358, %v719
        %v1375 = vmul.f32 %v1359, %v721
        %v1376 = vmul.f32 %v1360, %v725
        %v1377 = vmul.f32 %v1361, %v727
        %v1378 = vmul.f32 %v1362, %v731
        %v1379 = vmul.f32 %v1363, %v733
        %v1380 = vand.u32 2147483647, %v1364
        %v1381 = vand.u32 2147483647, %v1365
        %v1382 = vand.u32 2147483647, %v1366
        %v1383 = vand.u32 2147483647, %v1367
        %v1384 = vand.u32 2147483647, %v1368
        %v1385 = vand.u32 2147483647, %v1369
        %v1386 = vand.u32 2147483647, %v1370
        %v1387 = vand.u32 2147483647, %v1371
        %v1388 = vand.u32 2147483647, %v1372
        %v1389 = vand.u32 2147483647, %v1373
        %v1390 = vand.u32 2147483647, %v1374
        %v1391 = vand.u32 2147483647, %v1375
        %v1392 = vand.u32 2147483647, %v1376
        %v1393 = vand.u32 2147483647, %v1377
        %v1394 = vand.u32 2147483647, %v1378
        %v1395 = vand.u32 2147483647, %v1379
        %v1396 = vlaneseq
        %v1397 = vand.u32 %v1396, 127
        %v1398 = vadd.s32 %v1397, 128
        %1399 = vrot.lane.b32.xlu0 %v1380, 127
        %v1400 = vpop.permute.xlu0 %1399
        %1401 = vrot.lane.b32.xlu0 %v1382, 127
        %v1402 = vpop.permute.xlu0 %1401
        %1403 = vrot.lane.b32.xlu0 %v1384, 127
        %v1404 = vpop.permute.xlu0 %1403
        %1405 = vrot.lane.b32.xlu0 %v1386, 127
        %v1406 = vpop.permute.xlu0 %1405
        %1407 = vrot.lane.b32.xlu0 %v1388, 127
        %v1408 = vpop.permute.xlu0 %1407
        %1409 = vrot.lane.b32.xlu0 %v1390, 127
        %v1410 = vpop.permute.xlu0 %1409
        %1411 = vrot.lane.b32.xlu0 %v1392, 127
        %v1412 = vpop.permute.xlu0 %1411
        %1413 = vrot.lane.b32.xlu0 %v1394, 127
        %v1414 = vpop.permute.xlu0 %1413
        %1415 = vrot.lane.b32.xlu0 %v1381, 127
        %v1416 = vpop.permute.xlu0 %1415
        %1417 = vrot.lane.b32.xlu0 %v1383, 127
        %v1418 = vpop.permute.xlu0 %1417
        %1419 = vrot.lane.b32.xlu0 %v1385, 127
        %v1420 = vpop.permute.xlu0 %1419
        %1421 = vrot.lane.b32.xlu0 %v1387, 127
        %v1422 = vpop.permute.xlu0 %1421
        %1423 = vrot.lane.b32.xlu0 %v1389, 127
        %v1424 = vpop.permute.xlu0 %1423
        %1425 = vrot.lane.b32.xlu0 %v1391, 127
        %v1426 = vpop.permute.xlu0 %1425
        %1427 = vrot.lane.b32.xlu0 %v1393, 127
        %v1428 = vpop.permute.xlu0 %1427
        %1429 = vrot.lane.b32.xlu0 %v1395, 127
        %v1430 = vpop.permute.xlu0 %1429
        %vm1431 = vcmp.lt.s32.totalorder %v1397, 127
        %v1432 = vsel %vm1431, %v1400, %v1416
        %v1433 = vsel %vm1431, %v1402, %v1418
        %v1434 = vsel %vm1431, %v1404, %v1420
        %v1435 = vsel %vm1431, %v1406, %v1422
        %v1436 = vsel %vm1431, %v1408, %v1424
        %v1437 = vsel %vm1431, %v1410, %v1426
        %v1438 = vsel %vm1431, %v1412, %v1428
        %v1439 = vsel %vm1431, %v1414, %v1430
        %v1440 = vsel %vm1431, %v1416, %v1400
        %v1441 = vsel %vm1431, %v1418, %v1402
        %v1442 = vsel %vm1431, %v1420, %v1404
        %v1443 = vsel %vm1431, %v1422, %v1406
        %v1444 = vsel %vm1431, %v1424, %v1408
        %v1445 = vsel %vm1431, %v1426, %v1410
        %v1446 = vsel %vm1431, %v1428, %v1412
        %v1447 = vsel %vm1431, %v1430, %v1414
        %1448 = vrot.lane.b32.xlu0 %v1380, 1
        %v1449 = vpop.permute.xlu0 %1448
        %1450 = vrot.lane.b32.xlu0 %v1382, 1
        %v1451 = vpop.permute.xlu0 %1450
        %1452 = vrot.lane.b32.xlu0 %v1384, 1
        %v1453 = vpop.permute.xlu0 %1452
        %1454 = vrot.lane.b32.xlu0 %v1386, 1
        %v1455 = vpop.permute.xlu0 %1454
        %1456 = vrot.lane.b32.xlu0 %v1388, 1
        %v1457 = vpop.permute.xlu0 %1456
        %1458 = vrot.lane.b32.xlu0 %v1390, 1
        %v1459 = vpop.permute.xlu0 %1458
        %1460 = vrot.lane.b32.xlu0 %v1392, 1
        %v1461 = vpop.permute.xlu0 %1460
        %1462 = vrot.lane.b32.xlu0 %v1394, 1
        %v1463 = vpop.permute.xlu0 %1462
        %1464 = vrot.lane.b32.xlu0 %v1381, 1
        %v1465 = vpop.permute.xlu0 %1464
        %1466 = vrot.lane.b32.xlu0 %v1383, 1
        %v1467 = vpop.permute.xlu0 %1466
        %1468 = vrot.lane.b32.xlu0 %v1385, 1
        %v1469 = vpop.permute.xlu0 %1468
        %1470 = vrot.lane.b32.xlu0 %v1387, 1
        %v1471 = vpop.permute.xlu0 %1470
        %1472 = vrot.lane.b32.xlu0 %v1389, 1
        %v1473 = vpop.permute.xlu0 %1472
        %1474 = vrot.lane.b32.xlu0 %v1391, 1
        %v1475 = vpop.permute.xlu0 %1474
        %1476 = vrot.lane.b32.xlu0 %v1393, 1
        %v1477 = vpop.permute.xlu0 %1476
        %1478 = vrot.lane.b32.xlu0 %v1395, 1
        %v1479 = vpop.permute.xlu0 %1478
        %vm1480 = vcmp.lt.s32.totalorder %v1397, 1
        %v1481 = vsel %vm1480, %v1449, %v1465
        %v1482 = vsel %vm1480, %v1451, %v1467
        %v1483 = vsel %vm1480, %v1453, %v1469
        %v1484 = vsel %vm1480, %v1455, %v1471
        %v1485 = vsel %vm1480, %v1457, %v1473
        %v1486 = vsel %vm1480, %v1459, %v1475
        %v1487 = vsel %vm1480, %v1461, %v1477
        %v1488 = vsel %vm1480, %v1463, %v1479
        %v1489 = vsel %vm1480, %v1465, %v1449
        %v1490 = vsel %vm1480, %v1467, %v1451
        %v1491 = vsel %vm1480, %v1469, %v1453
        %v1492 = vsel %vm1480, %v1471, %v1455
        %v1493 = vsel %vm1480, %v1473, %v1457
        %v1494 = vsel %vm1480, %v1475, %v1459
        %v1495 = vsel %vm1480, %v1477, %v1461
        %v1496 = vsel %vm1480, %v1479, %v1463
        %v1497 = vand.u32 %v1397, 1
        %v1498 = vand.u32 %v1398, 1
        %vm1499 = vcmp.eq.s32.totalorder %v1497, 0
        %vm1500 = vcmp.eq.s32.totalorder %v1498, 0
        %v1501 = vsel %vm1499, 1, 0
        %v1502 = vsel %vm1500, 1, 0
        %vm1503 = vcmp.eq.s32.totalorder %v1501, 1
        %vm1504 = vcmp.eq.s32.totalorder %v1502, 1
        %v1505 = vsel %vm1503, %v1432, %v1489
        %v1506 = vsel %vm1504, %v1440, %v1481
        %v1507 = vsel %vm1503, %v1433, %v1490
        %v1508 = vsel %vm1504, %v1441, %v1482
        %v1509 = vsel %vm1503, %v1434, %v1491
        %v1510 = vsel %vm1504, %v1442, %v1483
        %v1511 = vsel %vm1503, %v1435, %v1492
        %v1512 = vsel %vm1504, %v1443, %v1484
        %v1513 = vsel %vm1503, %v1436, %v1493
        %v1514 = vsel %vm1504, %v1444, %v1485
        %v1515 = vsel %vm1503, %v1437, %v1494
        %v1516 = vsel %vm1504, %v1445, %v1486
        %v1517 = vsel %vm1503, %v1438, %v1495
        %v1518 = vsel %vm1504, %v1446, %v1487
        %v1519 = vsel %vm1503, %v1439, %v1496
        %v1520 = vsel %vm1504, %v1447, %v1488
        %v1521 = vmax.f32 %v1380, %v1505
        %v1522 = vmax.f32 %v1381, %v1506
        %v1523 = vmax.f32 %v1382, %v1507
        %v1524 = vmax.f32 %v1383, %v1508
        %v1525 = vmax.f32 %v1384, %v1509
        %v1526 = vmax.f32 %v1385, %v1510
        %v1527 = vmax.f32 %v1386, %v1511
        %v1528 = vmax.f32 %v1387, %v1512
        %v1529 = vmax.f32 %v1388, %v1513
        %v1530 = vmax.f32 %v1389, %v1514
        %v1531 = vmax.f32 %v1390, %v1515
        %v1532 = vmax.f32 %v1391, %v1516
        %v1533 = vmax.f32 %v1392, %v1517
        %v1534 = vmax.f32 %v1393, %v1518
        %v1535 = vmax.f32 %v1394, %v1519
        %v1536 = vmax.f32 %v1395, %v1520
        %1537 = vrot.lane.b32.xlu0 %v1521, 126
        %v1538 = vpop.permute.xlu0 %1537
        %1539 = vrot.lane.b32.xlu0 %v1523, 126
        %v1540 = vpop.permute.xlu0 %1539
        %1541 = vrot.lane.b32.xlu0 %v1525, 126
        %v1542 = vpop.permute.xlu0 %1541
        %1543 = vrot.lane.b32.xlu0 %v1527, 126
        %v1544 = vpop.permute.xlu0 %1543
        %1545 = vrot.lane.b32.xlu0 %v1529, 126
        %v1546 = vpop.permute.xlu0 %1545
        %1547 = vrot.lane.b32.xlu0 %v1531, 126
        %v1548 = vpop.permute.xlu0 %1547
        %1549 = vrot.lane.b32.xlu0 %v1533, 126
        %v1550 = vpop.permute.xlu0 %1549
        %1551 = vrot.lane.b32.xlu0 %v1535, 126
        %v1552 = vpop.permute.xlu0 %1551
        %1553 = vrot.lane.b32.xlu0 %v1522, 126
        %v1554 = vpop.permute.xlu0 %1553
        %1555 = vrot.lane.b32.xlu0 %v1524, 126
        %v1556 = vpop.permute.xlu0 %1555
        %1557 = vrot.lane.b32.xlu0 %v1526, 126
        %v1558 = vpop.permute.xlu0 %1557
        %1559 = vrot.lane.b32.xlu0 %v1528, 126
        %v1560 = vpop.permute.xlu0 %1559
        %1561 = vrot.lane.b32.xlu0 %v1530, 126
        %v1562 = vpop.permute.xlu0 %1561
        %1563 = vrot.lane.b32.xlu0 %v1532, 126
        %v1564 = vpop.permute.xlu0 %1563
        %1565 = vrot.lane.b32.xlu0 %v1534, 126
        %v1566 = vpop.permute.xlu0 %1565
        %1567 = vrot.lane.b32.xlu0 %v1536, 126
        %v1568 = vpop.permute.xlu0 %1567
        %vm1569 = vcmp.lt.s32.totalorder %v1397, 126
        %v1570 = vsel %vm1569, %v1538, %v1554
        %v1571 = vsel %vm1569, %v1540, %v1556
        %v1572 = vsel %vm1569, %v1542, %v1558
        %v1573 = vsel %vm1569, %v1544, %v1560
        %v1574 = vsel %vm1569, %v1546, %v1562
        %v1575 = vsel %vm1569, %v1548, %v1564
        %v1576 = vsel %vm1569, %v1550, %v1566
        %v1577 = vsel %vm1569, %v1552, %v1568
        %v1578 = vsel %vm1569, %v1554, %v1538
        %v1579 = vsel %vm1569, %v1556, %v1540
        %v1580 = vsel %vm1569, %v1558, %v1542
        %v1581 = vsel %vm1569, %v1560, %v1544
        %v1582 = vsel %vm1569, %v1562, %v1546
        %v1583 = vsel %vm1569, %v1564, %v1548
        %v1584 = vsel %vm1569, %v1566, %v1550
        %v1585 = vsel %vm1569, %v1568, %v1552
        %1586 = vrot.lane.b32.xlu0 %v1521, 2
        %v1587 = vpop.permute.xlu0 %1586
        %1588 = vrot.lane.b32.xlu0 %v1523, 2
        %v1589 = vpop.permute.xlu0 %1588
        %1590 = vrot.lane.b32.xlu0 %v1525, 2
        %v1591 = vpop.permute.xlu0 %1590
        %1592 = vrot.lane.b32.xlu0 %v1527, 2
        %v1593 = vpop.permute.xlu0 %1592
        %1594 = vrot.lane.b32.xlu0 %v1529, 2
        %v1595 = vpop.permute.xlu0 %1594
        %1596 = vrot.lane.b32.xlu0 %v1531, 2
        %v1597 = vpop.permute.xlu0 %1596
        %1598 = vrot.lane.b32.xlu0 %v1533, 2
        %v1599 = vpop.permute.xlu0 %1598
        %1600 = vrot.lane.b32.xlu0 %v1535, 2
        %v1601 = vpop.permute.xlu0 %1600
        %1602 = vrot.lane.b32.xlu0 %v1522, 2
        %v1603 = vpop.permute.xlu0 %1602
        %1604 = vrot.lane.b32.xlu0 %v1524, 2
        %v1605 = vpop.permute.xlu0 %1604
        %1606 = vrot.lane.b32.xlu0 %v1526, 2
        %v1607 = vpop.permute.xlu0 %1606
        %1608 = vrot.lane.b32.xlu0 %v1528, 2
        %v1609 = vpop.permute.xlu0 %1608
        %1610 = vrot.lane.b32.xlu0 %v1530, 2
        %v1611 = vpop.permute.xlu0 %1610
        %1612 = vrot.lane.b32.xlu0 %v1532, 2
        %v1613 = vpop.permute.xlu0 %1612
        %1614 = vrot.lane.b32.xlu0 %v1534, 2
        %v1615 = vpop.permute.xlu0 %1614
        %1616 = vrot.lane.b32.xlu0 %v1536, 2
        %v1617 = vpop.permute.xlu0 %1616
        %vm1618 = vcmp.lt.s32.totalorder %v1397, 2
        %v1619 = vsel %vm1618, %v1587, %v1603
        %v1620 = vsel %vm1618, %v1589, %v1605
        %v1621 = vsel %vm1618, %v1591, %v1607
        %v1622 = vsel %vm1618, %v1593, %v1609
        %v1623 = vsel %vm1618, %v1595, %v1611
        %v1624 = vsel %vm1618, %v1597, %v1613
        %v1625 = vsel %vm1618, %v1599, %v1615
        %v1626 = vsel %vm1618, %v1601, %v1617
        %v1627 = vsel %vm1618, %v1603, %v1587
        %v1628 = vsel %vm1618, %v1605, %v1589
        %v1629 = vsel %vm1618, %v1607, %v1591
        %v1630 = vsel %vm1618, %v1609, %v1593
        %v1631 = vsel %vm1618, %v1611, %v1595
        %v1632 = vsel %vm1618, %v1613, %v1597
        %v1633 = vsel %vm1618, %v1615, %v1599
        %v1634 = vsel %vm1618, %v1617, %v1601
        %v1635 = vand.u32 %v1397, 2
        %v1636 = vand.u32 %v1398, 2
        %vm1637 = vcmp.eq.s32.totalorder %v1635, 0
        %vm1638 = vcmp.eq.s32.totalorder %v1636, 0
        %v1639 = vsel %vm1637, 1, 0
        %v1640 = vsel %vm1638, 1, 0
        %vm1641 = vcmp.eq.s32.totalorder %v1639, 1
        %vm1642 = vcmp.eq.s32.totalorder %v1640, 1
        %v1643 = vsel %vm1641, %v1570, %v1627
        %v1644 = vsel %vm1642, %v1578, %v1619
        %v1645 = vsel %vm1641, %v1571, %v1628
        %v1646 = vsel %vm1642, %v1579, %v1620
        %v1647 = vsel %vm1641, %v1572, %v1629
        %v1648 = vsel %vm1642, %v1580, %v1621
        %v1649 = vsel %vm1641, %v1573, %v1630
        %v1650 = vsel %vm1642, %v1581, %v1622
        %v1651 = vsel %vm1641, %v1574, %v1631
        %v1652 = vsel %vm1642, %v1582, %v1623
        %v1653 = vsel %vm1641, %v1575, %v1632
        %v1654 = vsel %vm1642, %v1583, %v1624
        %v1655 = vsel %vm1641, %v1576, %v1633
        %v1656 = vsel %vm1642, %v1584, %v1625
        %v1657 = vsel %vm1641, %v1577, %v1634
        %v1658 = vsel %vm1642, %v1585, %v1626
        %v1659 = vmax.f32 %v1521, %v1643
        %v1660 = vmax.f32 %v1522, %v1644
        %v1661 = vmax.f32 %v1523, %v1645
        %v1662 = vmax.f32 %v1524, %v1646
        %v1663 = vmax.f32 %v1525, %v1647
        %v1664 = vmax.f32 %v1526, %v1648
        %v1665 = vmax.f32 %v1527, %v1649
        %v1666 = vmax.f32 %v1528, %v1650
        %v1667 = vmax.f32 %v1529, %v1651
        %v1668 = vmax.f32 %v1530, %v1652
        %v1669 = vmax.f32 %v1531, %v1653
        %v1670 = vmax.f32 %v1532, %v1654
        %v1671 = vmax.f32 %v1533, %v1655
        %v1672 = vmax.f32 %v1534, %v1656
        %v1673 = vmax.f32 %v1535, %v1657
        %v1674 = vmax.f32 %v1536, %v1658
        %1675 = vrot.lane.b32.xlu0 %v1659, 124
        %v1676 = vpop.permute.xlu0 %1675
        %1677 = vrot.lane.b32.xlu0 %v1661, 124
        %v1678 = vpop.permute.xlu0 %1677
        %1679 = vrot.lane.b32.xlu0 %v1663, 124
        %v1680 = vpop.permute.xlu0 %1679
        %1681 = vrot.lane.b32.xlu0 %v1665, 124
        %v1682 = vpop.permute.xlu0 %1681
        %1683 = vrot.lane.b32.xlu0 %v1667, 124
        %v1684 = vpop.permute.xlu0 %1683
        %1685 = vrot.lane.b32.xlu0 %v1669, 124
        %v1686 = vpop.permute.xlu0 %1685
        %1687 = vrot.lane.b32.xlu0 %v1671, 124
        %v1688 = vpop.permute.xlu0 %1687
        %1689 = vrot.lane.b32.xlu0 %v1673, 124
        %v1690 = vpop.permute.xlu0 %1689
        %1691 = vrot.lane.b32.xlu0 %v1660, 124
        %v1692 = vpop.permute.xlu0 %1691
        %1693 = vrot.lane.b32.xlu0 %v1662, 124
        %v1694 = vpop.permute.xlu0 %1693
        %1695 = vrot.lane.b32.xlu0 %v1664, 124
        %v1696 = vpop.permute.xlu0 %1695
        %1697 = vrot.lane.b32.xlu0 %v1666, 124
        %v1698 = vpop.permute.xlu0 %1697
        %1699 = vrot.lane.b32.xlu0 %v1668, 124
        %v1700 = vpop.permute.xlu0 %1699
        %1701 = vrot.lane.b32.xlu0 %v1670, 124
        %v1702 = vpop.permute.xlu0 %1701
        %1703 = vrot.lane.b32.xlu0 %v1672, 124
        %v1704 = vpop.permute.xlu0 %1703
        %1705 = vrot.lane.b32.xlu0 %v1674, 124
        %v1706 = vpop.permute.xlu0 %1705
        %vm1707 = vcmp.lt.s32.totalorder %v1397, 124
        %v1708 = vsel %vm1707, %v1676, %v1692
        %v1709 = vsel %vm1707, %v1678, %v1694
        %v1710 = vsel %vm1707, %v1680, %v1696
        %v1711 = vsel %vm1707, %v1682, %v1698
        %v1712 = vsel %vm1707, %v1684, %v1700
        %v1713 = vsel %vm1707, %v1686, %v1702
        %v1714 = vsel %vm1707, %v1688, %v1704
        %v1715 = vsel %vm1707, %v1690, %v1706
        %v1716 = vsel %vm1707, %v1692, %v1676
        %v1717 = vsel %vm1707, %v1694, %v1678
        %v1718 = vsel %vm1707, %v1696, %v1680
        %v1719 = vsel %vm1707, %v1698, %v1682
        %v1720 = vsel %vm1707, %v1700, %v1684
        %v1721 = vsel %vm1707, %v1702, %v1686
        %v1722 = vsel %vm1707, %v1704, %v1688
        %v1723 = vsel %vm1707, %v1706, %v1690
        %1724 = vrot.lane.b32.xlu0 %v1659, 4
        %v1725 = vpop.permute.xlu0 %1724
        %1726 = vrot.lane.b32.xlu0 %v1661, 4
        %v1727 = vpop.permute.xlu0 %1726
        %1728 = vrot.lane.b32.xlu0 %v1663, 4
        %v1729 = vpop.permute.xlu0 %1728
        %1730 = vrot.lane.b32.xlu0 %v1665, 4
        %v1731 = vpop.permute.xlu0 %1730
        %1732 = vrot.lane.b32.xlu0 %v1667, 4
        %v1733 = vpop.permute.xlu0 %1732
        %1734 = vrot.lane.b32.xlu0 %v1669, 4
        %v1735 = vpop.permute.xlu0 %1734
        %1736 = vrot.lane.b32.xlu0 %v1671, 4
        %v1737 = vpop.permute.xlu0 %1736
        %1738 = vrot.lane.b32.xlu0 %v1673, 4
        %v1739 = vpop.permute.xlu0 %1738
        %1740 = vrot.lane.b32.xlu0 %v1660, 4
        %v1741 = vpop.permute.xlu0 %1740
        %1742 = vrot.lane.b32.xlu0 %v1662, 4
        %v1743 = vpop.permute.xlu0 %1742
        %1744 = vrot.lane.b32.xlu0 %v1664, 4
        %v1745 = vpop.permute.xlu0 %1744
        %1746 = vrot.lane.b32.xlu0 %v1666, 4
        %v1747 = vpop.permute.xlu0 %1746
        %1748 = vrot.lane.b32.xlu0 %v1668, 4
        %v1749 = vpop.permute.xlu0 %1748
        %1750 = vrot.lane.b32.xlu0 %v1670, 4
        %v1751 = vpop.permute.xlu0 %1750
        %1752 = vrot.lane.b32.xlu0 %v1672, 4
        %v1753 = vpop.permute.xlu0 %1752
        %1754 = vrot.lane.b32.xlu0 %v1674, 4
        %v1755 = vpop.permute.xlu0 %1754
        %vm1756 = vcmp.lt.s32.totalorder %v1397, 4
        %v1757 = vsel %vm1756, %v1725, %v1741
        %v1758 = vsel %vm1756, %v1727, %v1743
        %v1759 = vsel %vm1756, %v1729, %v1745
        %v1760 = vsel %vm1756, %v1731, %v1747
        %v1761 = vsel %vm1756, %v1733, %v1749
        %v1762 = vsel %vm1756, %v1735, %v1751
        %v1763 = vsel %vm1756, %v1737, %v1753
        %v1764 = vsel %vm1756, %v1739, %v1755
        %v1765 = vsel %vm1756, %v1741, %v1725
        %v1766 = vsel %vm1756, %v1743, %v1727
        %v1767 = vsel %vm1756, %v1745, %v1729
        %v1768 = vsel %vm1756, %v1747, %v1731
        %v1769 = vsel %vm1756, %v1749, %v1733
        %v1770 = vsel %vm1756, %v1751, %v1735
        %v1771 = vsel %vm1756, %v1753, %v1737
        %v1772 = vsel %vm1756, %v1755, %v1739
        %v1773 = vand.u32 %v1397, 4
        %v1774 = vand.u32 %v1398, 4
        %vm1775 = vcmp.eq.s32.totalorder %v1773, 0
        %vm1776 = vcmp.eq.s32.totalorder %v1774, 0
        %v1777 = vsel %vm1775, 1, 0
        %v1778 = vsel %vm1776, 1, 0
        %vm1779 = vcmp.eq.s32.totalorder %v1777, 1
        %vm1780 = vcmp.eq.s32.totalorder %v1778, 1
        %v1781 = vsel %vm1779, %v1708, %v1765
        %v1782 = vsel %vm1780, %v1716, %v1757
        %v1783 = vsel %vm1779, %v1709, %v1766
        %v1784 = vsel %vm1780, %v1717, %v1758
        %v1785 = vsel %vm1779, %v1710, %v1767
        %v1786 = vsel %vm1780, %v1718, %v1759
        %v1787 = vsel %vm1779, %v1711, %v1768
        %v1788 = vsel %vm1780, %v1719, %v1760
        %v1789 = vsel %vm1779, %v1712, %v1769
        %v1790 = vsel %vm1780, %v1720, %v1761
        %v1791 = vsel %vm1779, %v1713, %v1770
        %v1792 = vsel %vm1780, %v1721, %v1762
        %v1793 = vsel %vm1779, %v1714, %v1771
        %v1794 = vsel %vm1780, %v1722, %v1763
        %v1795 = vsel %vm1779, %v1715, %v1772
        %v1796 = vsel %vm1780, %v1723, %v1764
        %v1797 = vmax.f32 %v1659, %v1781
        %v1798 = vmax.f32 %v1660, %v1782
        %v1799 = vmax.f32 %v1661, %v1783
        %v1800 = vmax.f32 %v1662, %v1784
        %v1801 = vmax.f32 %v1663, %v1785
        %v1802 = vmax.f32 %v1664, %v1786
        %v1803 = vmax.f32 %v1665, %v1787
        %v1804 = vmax.f32 %v1666, %v1788
        %v1805 = vmax.f32 %v1667, %v1789
        %v1806 = vmax.f32 %v1668, %v1790
        %v1807 = vmax.f32 %v1669, %v1791
        %v1808 = vmax.f32 %v1670, %v1792
        %v1809 = vmax.f32 %v1671, %v1793
        %v1810 = vmax.f32 %v1672, %v1794
        %v1811 = vmax.f32 %v1673, %v1795
        %v1812 = vmax.f32 %v1674, %v1796
        %1813 = vrot.lane.b32.xlu0 %v1797, 120
        %v1814 = vpop.permute.xlu0 %1813
        %1815 = vrot.lane.b32.xlu0 %v1799, 120
        %v1816 = vpop.permute.xlu0 %1815
        %1817 = vrot.lane.b32.xlu0 %v1801, 120
        %v1818 = vpop.permute.xlu0 %1817
        %1819 = vrot.lane.b32.xlu0 %v1803, 120
        %v1820 = vpop.permute.xlu0 %1819
        %1821 = vrot.lane.b32.xlu0 %v1805, 120
        %v1822 = vpop.permute.xlu0 %1821
        %1823 = vrot.lane.b32.xlu0 %v1807, 120
        %v1824 = vpop.permute.xlu0 %1823
        %1825 = vrot.lane.b32.xlu0 %v1809, 120
        %v1826 = vpop.permute.xlu0 %1825
        %1827 = vrot.lane.b32.xlu0 %v1811, 120
        %v1828 = vpop.permute.xlu0 %1827
        %1829 = vrot.lane.b32.xlu0 %v1798, 120
        %v1830 = vpop.permute.xlu0 %1829
        %1831 = vrot.lane.b32.xlu0 %v1800, 120
        %v1832 = vpop.permute.xlu0 %1831
        %1833 = vrot.lane.b32.xlu0 %v1802, 120
        %v1834 = vpop.permute.xlu0 %1833
        %1835 = vrot.lane.b32.xlu0 %v1804, 120
        %v1836 = vpop.permute.xlu0 %1835
        %1837 = vrot.lane.b32.xlu0 %v1806, 120
        %v1838 = vpop.permute.xlu0 %1837
        %1839 = vrot.lane.b32.xlu0 %v1808, 120
        %v1840 = vpop.permute.xlu0 %1839
        %1841 = vrot.lane.b32.xlu0 %v1810, 120
        %v1842 = vpop.permute.xlu0 %1841
        %1843 = vrot.lane.b32.xlu0 %v1812, 120
        %v1844 = vpop.permute.xlu0 %1843
        %vm1845 = vcmp.lt.s32.totalorder %v1397, 120
        %v1846 = vsel %vm1845, %v1814, %v1830
        %v1847 = vsel %vm1845, %v1816, %v1832
        %v1848 = vsel %vm1845, %v1818, %v1834
        %v1849 = vsel %vm1845, %v1820, %v1836
        %v1850 = vsel %vm1845, %v1822, %v1838
        %v1851 = vsel %vm1845, %v1824, %v1840
        %v1852 = vsel %vm1845, %v1826, %v1842
        %v1853 = vsel %vm1845, %v1828, %v1844
        %v1854 = vsel %vm1845, %v1830, %v1814
        %v1855 = vsel %vm1845, %v1832, %v1816
        %v1856 = vsel %vm1845, %v1834, %v1818
        %v1857 = vsel %vm1845, %v1836, %v1820
        %v1858 = vsel %vm1845, %v1838, %v1822
        %v1859 = vsel %vm1845, %v1840, %v1824
        %v1860 = vsel %vm1845, %v1842, %v1826
        %v1861 = vsel %vm1845, %v1844, %v1828
        %1862 = vrot.lane.b32.xlu0 %v1797, 8
        %v1863 = vpop.permute.xlu0 %1862
        %1864 = vrot.lane.b32.xlu0 %v1799, 8
        %v1865 = vpop.permute.xlu0 %1864
        %1866 = vrot.lane.b32.xlu0 %v1801, 8
        %v1867 = vpop.permute.xlu0 %1866
        %1868 = vrot.lane.b32.xlu0 %v1803, 8
        %v1869 = vpop.permute.xlu0 %1868
        %1870 = vrot.lane.b32.xlu0 %v1805, 8
        %v1871 = vpop.permute.xlu0 %1870
        %1872 = vrot.lane.b32.xlu0 %v1807, 8
        %v1873 = vpop.permute.xlu0 %1872
        %1874 = vrot.lane.b32.xlu0 %v1809, 8
        %v1875 = vpop.permute.xlu0 %1874
        %1876 = vrot.lane.b32.xlu0 %v1811, 8
        %v1877 = vpop.permute.xlu0 %1876
        %1878 = vrot.lane.b32.xlu0 %v1798, 8
        %v1879 = vpop.permute.xlu0 %1878
        %1880 = vrot.lane.b32.xlu0 %v1800, 8
        %v1881 = vpop.permute.xlu0 %1880
        %1882 = vrot.lane.b32.xlu0 %v1802, 8
        %v1883 = vpop.permute.xlu0 %1882
        %1884 = vrot.lane.b32.xlu0 %v1804, 8
        %v1885 = vpop.permute.xlu0 %1884
        %1886 = vrot.lane.b32.xlu0 %v1806, 8
        %v1887 = vpop.permute.xlu0 %1886
        %1888 = vrot.lane.b32.xlu0 %v1808, 8
        %v1889 = vpop.permute.xlu0 %1888
        %1890 = vrot.lane.b32.xlu0 %v1810, 8
        %v1891 = vpop.permute.xlu0 %1890
        %1892 = vrot.lane.b32.xlu0 %v1812, 8
        %v1893 = vpop.permute.xlu0 %1892
        %vm1894 = vcmp.lt.s32.totalorder %v1397, 8
        %v1895 = vsel %vm1894, %v1863, %v1879
        %v1896 = vsel %vm1894, %v1865, %v1881
        %v1897 = vsel %vm1894, %v1867, %v1883
        %v1898 = vsel %vm1894, %v1869, %v1885
        %v1899 = vsel %vm1894, %v1871, %v1887
        %v1900 = vsel %vm1894, %v1873, %v1889
        %v1901 = vsel %vm1894, %v1875, %v1891
        %v1902 = vsel %vm1894, %v1877, %v1893
        %v1903 = vsel %vm1894, %v1879, %v1863
        %v1904 = vsel %vm1894, %v1881, %v1865
        %v1905 = vsel %vm1894, %v1883, %v1867
        %v1906 = vsel %vm1894, %v1885, %v1869
        %v1907 = vsel %vm1894, %v1887, %v1871
        %v1908 = vsel %vm1894, %v1889, %v1873
        %v1909 = vsel %vm1894, %v1891, %v1875
        %v1910 = vsel %vm1894, %v1893, %v1877
        %v1911 = vand.u32 %v1397, 8
        %v1912 = vand.u32 %v1398, 8
        %vm1913 = vcmp.eq.s32.totalorder %v1911, 0
        %vm1914 = vcmp.eq.s32.totalorder %v1912, 0
        %v1915 = vsel %vm1913, 1, 0
        %v1916 = vsel %vm1914, 1, 0
        %vm1917 = vcmp.eq.s32.totalorder %v1915, 1
        %vm1918 = vcmp.eq.s32.totalorder %v1916, 1
        %v1919 = vsel %vm1917, %v1846, %v1903
        %v1920 = vsel %vm1918, %v1854, %v1895
        %v1921 = vsel %vm1917, %v1847, %v1904
        %v1922 = vsel %vm1918, %v1855, %v1896
        %v1923 = vsel %vm1917, %v1848, %v1905
        %v1924 = vsel %vm1918, %v1856, %v1897
        %v1925 = vsel %vm1917, %v1849, %v1906
        %v1926 = vsel %vm1918, %v1857, %v1898
        %v1927 = vsel %vm1917, %v1850, %v1907
        %v1928 = vsel %vm1918, %v1858, %v1899
        %v1929 = vsel %vm1917, %v1851, %v1908
        %v1930 = vsel %vm1918, %v1859, %v1900
        %v1931 = vsel %vm1917, %v1852, %v1909
        %v1932 = vsel %vm1918, %v1860, %v1901
        %v1933 = vsel %vm1917, %v1853, %v1910
        %v1934 = vsel %vm1918, %v1861, %v1902
        %v1935 = vmax.f32 %v1797, %v1919
        %v1936 = vmax.f32 %v1798, %v1920
        %v1937 = vmax.f32 %v1799, %v1921
        %v1938 = vmax.f32 %v1800, %v1922
        %v1939 = vmax.f32 %v1801, %v1923
        %v1940 = vmax.f32 %v1802, %v1924
        %v1941 = vmax.f32 %v1803, %v1925
        %v1942 = vmax.f32 %v1804, %v1926
        %v1943 = vmax.f32 %v1805, %v1927
        %v1944 = vmax.f32 %v1806, %v1928
        %v1945 = vmax.f32 %v1807, %v1929
        %v1946 = vmax.f32 %v1808, %v1930
        %v1947 = vmax.f32 %v1809, %v1931
        %v1948 = vmax.f32 %v1810, %v1932
        %v1949 = vmax.f32 %v1811, %v1933
        %v1950 = vmax.f32 %v1812, %v1934
        %1951 = vrot.lane.b32.xlu0 %v1935, 112
        %v1952 = vpop.permute.xlu0 %1951
        %1953 = vrot.lane.b32.xlu0 %v1937, 112
        %v1954 = vpop.permute.xlu0 %1953
        %1955 = vrot.lane.b32.xlu0 %v1939, 112
        %v1956 = vpop.permute.xlu0 %1955
        %1957 = vrot.lane.b32.xlu0 %v1941, 112
        %v1958 = vpop.permute.xlu0 %1957
        %1959 = vrot.lane.b32.xlu0 %v1943, 112
        %v1960 = vpop.permute.xlu0 %1959
        %1961 = vrot.lane.b32.xlu0 %v1945, 112
        %v1962 = vpop.permute.xlu0 %1961
        %1963 = vrot.lane.b32.xlu0 %v1947, 112
        %v1964 = vpop.permute.xlu0 %1963
        %1965 = vrot.lane.b32.xlu0 %v1949, 112
        %v1966 = vpop.permute.xlu0 %1965
        %1967 = vrot.lane.b32.xlu0 %v1936, 112
        %v1968 = vpop.permute.xlu0 %1967
        %1969 = vrot.lane.b32.xlu0 %v1938, 112
        %v1970 = vpop.permute.xlu0 %1969
        %1971 = vrot.lane.b32.xlu0 %v1940, 112
        %v1972 = vpop.permute.xlu0 %1971
        %1973 = vrot.lane.b32.xlu0 %v1942, 112
        %v1974 = vpop.permute.xlu0 %1973
        %1975 = vrot.lane.b32.xlu0 %v1944, 112
        %v1976 = vpop.permute.xlu0 %1975
        %1977 = vrot.lane.b32.xlu0 %v1946, 112
        %v1978 = vpop.permute.xlu0 %1977
        %1979 = vrot.lane.b32.xlu0 %v1948, 112
        %v1980 = vpop.permute.xlu0 %1979
        %1981 = vrot.lane.b32.xlu0 %v1950, 112
        %v1982 = vpop.permute.xlu0 %1981
        %vm1983 = vcmp.lt.s32.totalorder %v1397, 112
        %v1984 = vsel %vm1983, %v1952, %v1968
        %v1985 = vsel %vm1983, %v1954, %v1970
        %v1986 = vsel %vm1983, %v1956, %v1972
        %v1987 = vsel %vm1983, %v1958, %v1974
        %v1988 = vsel %vm1983, %v1960, %v1976
        %v1989 = vsel %vm1983, %v1962, %v1978
        %v1990 = vsel %vm1983, %v1964, %v1980
        %v1991 = vsel %vm1983, %v1966, %v1982
        %v1992 = vsel %vm1983, %v1968, %v1952
        %v1993 = vsel %vm1983, %v1970, %v1954
        %v1994 = vsel %vm1983, %v1972, %v1956
        %v1995 = vsel %vm1983, %v1974, %v1958
        %v1996 = vsel %vm1983, %v1976, %v1960
        %v1997 = vsel %vm1983, %v1978, %v1962
        %v1998 = vsel %vm1983, %v1980, %v1964
        %v1999 = vsel %vm1983, %v1982, %v1966
        %2000 = vrot.lane.b32.xlu0 %v1935, 16
        %v2001 = vpop.permute.xlu0 %2000
        %2002 = vrot.lane.b32.xlu0 %v1937, 16
        %v2003 = vpop.permute.xlu0 %2002
        %2004 = vrot.lane.b32.xlu0 %v1939, 16
        %v2005 = vpop.permute.xlu0 %2004
        %2006 = vrot.lane.b32.xlu0 %v1941, 16
        %v2007 = vpop.permute.xlu0 %2006
        %2008 = vrot.lane.b32.xlu0 %v1943, 16
        %v2009 = vpop.permute.xlu0 %2008
        %2010 = vrot.lane.b32.xlu0 %v1945, 16
        %v2011 = vpop.permute.xlu0 %2010
        %2012 = vrot.lane.b32.xlu0 %v1947, 16
        %v2013 = vpop.permute.xlu0 %2012
        %2014 = vrot.lane.b32.xlu0 %v1949, 16
        %v2015 = vpop.permute.xlu0 %2014
        %2016 = vrot.lane.b32.xlu0 %v1936, 16
        %v2017 = vpop.permute.xlu0 %2016
        %2018 = vrot.lane.b32.xlu0 %v1938, 16
        %v2019 = vpop.permute.xlu0 %2018
        %2020 = vrot.lane.b32.xlu0 %v1940, 16
        %v2021 = vpop.permute.xlu0 %2020
        %2022 = vrot.lane.b32.xlu0 %v1942, 16
        %v2023 = vpop.permute.xlu0 %2022
        %2024 = vrot.lane.b32.xlu0 %v1944, 16
        %v2025 = vpop.permute.xlu0 %2024
        %2026 = vrot.lane.b32.xlu0 %v1946, 16
        %v2027 = vpop.permute.xlu0 %2026
        %2028 = vrot.lane.b32.xlu0 %v1948, 16
        %v2029 = vpop.permute.xlu0 %2028
        %2030 = vrot.lane.b32.xlu0 %v1950, 16
        %v2031 = vpop.permute.xlu0 %2030
        %vm2032 = vcmp.lt.s32.totalorder %v1397, 16
        %v2033 = vsel %vm2032, %v2001, %v2017
        %v2034 = vsel %vm2032, %v2003, %v2019
        %v2035 = vsel %vm2032, %v2005, %v2021
        %v2036 = vsel %vm2032, %v2007, %v2023
        %v2037 = vsel %vm2032, %v2009, %v2025
        %v2038 = vsel %vm2032, %v2011, %v2027
        %v2039 = vsel %vm2032, %v2013, %v2029
        %v2040 = vsel %vm2032, %v2015, %v2031
        %v2041 = vsel %vm2032, %v2017, %v2001
        %v2042 = vsel %vm2032, %v2019, %v2003
        %v2043 = vsel %vm2032, %v2021, %v2005
        %v2044 = vsel %vm2032, %v2023, %v2007
        %v2045 = vsel %vm2032, %v2025, %v2009
        %v2046 = vsel %vm2032, %v2027, %v2011
        %v2047 = vsel %vm2032, %v2029, %v2013
        %v2048 = vsel %vm2032, %v2031, %v2015
        %v2049 = vand.u32 %v1397, 16
        %v2050 = vand.u32 %v1398, 16
        %vm2051 = vcmp.eq.s32.totalorder %v2049, 0
        %vm2052 = vcmp.eq.s32.totalorder %v2050, 0
        %v2053 = vsel %vm2051, 1, 0
        %v2054 = vsel %vm2052, 1, 0
        %vm2055 = vcmp.eq.s32.totalorder %v2053, 1
        %vm2056 = vcmp.eq.s32.totalorder %v2054, 1
        %v2057 = vsel %vm2055, %v1984, %v2041
        %v2058 = vsel %vm2056, %v1992, %v2033
        %v2059 = vsel %vm2055, %v1985, %v2042
        %v2060 = vsel %vm2056, %v1993, %v2034
        %v2061 = vsel %vm2055, %v1986, %v2043
        %v2062 = vsel %vm2056, %v1994, %v2035
        %v2063 = vsel %vm2055, %v1987, %v2044
        %v2064 = vsel %vm2056, %v1995, %v2036
        %v2065 = vsel %vm2055, %v1988, %v2045
        %v2066 = vsel %vm2056, %v1996, %v2037
        %v2067 = vsel %vm2055, %v1989, %v2046
        %v2068 = vsel %vm2056, %v1997, %v2038
        %v2069 = vsel %vm2055, %v1990, %v2047
        %v2070 = vsel %vm2056, %v1998, %v2039
        %v2071 = vsel %vm2055, %v1991, %v2048
        %v2072 = vsel %vm2056, %v1999, %v2040
        %v2073 = vmax.f32 %v1935, %v2057
        %v2074 = vmax.f32 %v1936, %v2058
        %v2075 = vmax.f32 %v1937, %v2059
        %v2076 = vmax.f32 %v1938, %v2060
        %v2077 = vmax.f32 %v1939, %v2061
        %v2078 = vmax.f32 %v1940, %v2062
        %v2079 = vmax.f32 %v1941, %v2063
        %v2080 = vmax.f32 %v1942, %v2064
        %v2081 = vmax.f32 %v1943, %v2065
        %v2082 = vmax.f32 %v1944, %v2066
        %v2083 = vmax.f32 %v1945, %v2067
        %v2084 = vmax.f32 %v1946, %v2068
        %v2085 = vmax.f32 %v1947, %v2069
        %v2086 = vmax.f32 %v1948, %v2070
        %v2087 = vmax.f32 %v1949, %v2071
        %v2088 = vmax.f32 %v1950, %v2072
        %2089 = vmatprep.subr.mxu0 0.0
        %2090 = vmatpush1.msra.mxu0 %v1218
        %2091 = vmatprep.subr.mxu0 0.0
        %2092 = vmatpush1.msra.mxu0 %v1217
        %2093 = vmatprep.subr.mxu0 0.0
        %2094 = vmatpush1.msra.mxu0 %v1216
        %2095 = vmatprep.subr.mxu0 0.0
        %2096 = vmatpush1.msra.mxu0 %v1215
        %2097 = vmatprep.subr.mxu0 0.0
        %2098 = vmatpush1.msra.mxu0 %v1214
        %2099 = vmatprep.subr.mxu0 0.0
        %2100 = vmatpush1.msra.mxu0 %v1213
        %2101 = vmatprep.subr.mxu0 0.0
        %2102 = vmatpush1.msra.mxu0 %v1212
        %2103 = vmatprep.subr.mxu0 0.0
        %2104 = vmatpush1.msra.mxu0 %v1211
        %2105 = vmatprep.subr.mxu0 0.0
        %2106 = vmatpush1.msra.mxu0 %v1210
        %2107 = vmatprep.subr.mxu0 0.0
        %2108 = vmatpush1.msra.mxu0 %v1209
        %2109 = vmatprep.subr.mxu0 0.0
        %2110 = vmatpush1.msra.mxu0 %v1208
        %2111 = vmatprep.subr.mxu0 0.0
        %2112 = vmatpush1.msra.mxu0 %v1207
        %2113 = vmatprep.subr.mxu0 0.0
        %2114 = vmatpush1.msra.mxu0 %v1206
        %2115 = vmatprep.subr.mxu0 0.0
        %2116 = vmatpush1.msra.mxu0 %v1205
        %2117 = vmatprep.subr.mxu0 0.0
        %2118 = vmatpush1.msra.mxu0 %v1204
        %2119 = vmatprep.subr.mxu0 0.0
        %2120 = vmatpush1.msra.mxu0 %v1203
        %2121 = vmatprep.subr.mxu0 0.0
        %2122 = vmatpush2.msra.mxu0 %v1234
        %2123 = vmatprep.subr.mxu0 0.0
        %2124 = vmatpush2.msra.mxu0 %v1233
        %2125 = vmatprep.subr.mxu0 0.0
        %2126 = vmatpush2.msra.mxu0 %v1232
        %2127 = vmatprep.subr.mxu0 0.0
        %2128 = vmatpush2.msra.mxu0 %v1231
        %2129 = vmatprep.subr.mxu0 0.0
        %2130 = vmatpush2.msra.mxu0 %v1230
        %2131 = vmatprep.subr.mxu0 0.0
        %2132 = vmatpush2.msra.mxu0 %v1229
        %2133 = vmatprep.subr.mxu0 0.0
        %2134 = vmatpush2.msra.mxu0 %v1228
        %2135 = vmatprep.subr.mxu0 0.0
        %2136 = vmatpush2.msra.mxu0 %v1227
        %2137 = vmatprep.subr.mxu0 0.0
        %2138 = vmatpush2.msra.mxu0 %v1226
        %2139 = vmatprep.subr.mxu0 0.0
        %2140 = vmatpush2.msra.mxu0 %v1225
        %2141 = vmatprep.subr.mxu0 0.0
        %2142 = vmatpush2.msra.mxu0 %v1224
        %2143 = vmatprep.subr.mxu0 0.0
        %2144 = vmatpush2.msra.mxu0 %v1223
        %2145 = vmatprep.subr.mxu0 0.0
        %2146 = vmatpush2.msra.mxu0 %v1222
        %2147 = vmatprep.subr.mxu0 0.0
        %2148 = vmatpush2.msra.mxu0 %v1221
        %2149 = vmatprep.subr.mxu0 0.0
        %2150 = vmatpush2.msra.mxu0 %v1220
        %2151 = vmatprep.subr.mxu0 0.0
        %2152 = vmatpush2.msra.mxu0 %v1219
        %2153 = vmatprep.mubr.f32.mxu0 %v2074
        %2154 = vmatmul.mubr.f32.gmra.mxu0 %v2073
        %v2155 = vpop.f32.mrf.mxu0
        %v2156 = vadd.f32 0.0, %v2155
        %v2157 = vpop.f32.mrf.mxu0
        %2158 = vmatprep.mubr.f32.mxu0 %v2076
        %2159 = vmatmul.mubr.f32.gmra.mxu0 %v2075
        %v2160 = vpop.f32.mrf.mxu0
        %v2161 = vadd.f32 0.0, %v2160
        %v2162 = vpop.f32.mrf.mxu0
        %2163 = vmatprep.mubr.f32.mxu0 %v2078
        %2164 = vmatmul.mubr.f32.gmra.mxu0 %v2077
        %v2165 = vpop.f32.mrf.mxu0
        %v2166 = vadd.f32 0.0, %v2165
        %v2167 = vpop.f32.mrf.mxu0
        %2168 = vmatprep.mubr.f32.mxu0 %v2080
        %2169 = vmatmul.mubr.f32.gmra.mxu0 %v2079
        %v2170 = vpop.f32.mrf.mxu0
        %v2171 = vadd.f32 0.0, %v2170
        %v2172 = vpop.f32.mrf.mxu0
        %2173 = vmatprep.mubr.f32.mxu0 %v2082
        %2174 = vmatmul.mubr.f32.gmra.mxu0 %v2081
        %v2175 = vpop.f32.mrf.mxu0
        %v2176 = vadd.f32 0.0, %v2175
        %v2177 = vpop.f32.mrf.mxu0
        %2178 = vmatprep.mubr.f32.mxu0 %v2084
        %2179 = vmatmul.mubr.f32.gmra.mxu0 %v2083
        %v2180 = vpop.f32.mrf.mxu0
        %v2181 = vadd.f32 0.0, %v2180
        %v2182 = vpop.f32.mrf.mxu0
        %2183 = vmatprep.mubr.f32.mxu0 %v2086
        %2184 = vmatmul.mubr.f32.gmra.mxu0 %v2085
        %v2185 = vpop.f32.mrf.mxu0
        %v2186 = vadd.f32 0.0, %v2185
        %v2187 = vpop.f32.mrf.mxu0
        %2188 = vmatprep.mubr.f32.mxu0 %v2088
        %2189 = vmatmul.mubr.f32.gmra.mxu0 %v2087
        %v2190 = vpop.f32.mrf.mxu0
        %v2191 = vadd.f32 0.0, %v2190
        %v2192 = vpop.f32.mrf.mxu0
        %2193 = vdwg.mxu0
        %v2194 = vmul.f32 %v2156, 0.03125
        %v2195 = vmul.f32 %v2161, 0.03125
        %v2196 = vmul.f32 %v2166, 0.03125
        %v2197 = vmul.f32 %v2171, 0.03125
        %v2198 = vmul.f32 %v2176, 0.03125
        %v2199 = vmul.f32 %v2181, 0.03125
        %v2200 = vmul.f32 %v2186, 0.03125
        %v2201 = vmul.f32 %v2191, 0.03125
        %v2202 = vmax.f32 %v2194, 1e-38
        %v2203 = vmax.f32 %v2195, 1e-38
        %v2204 = vmax.f32 %v2196, 1e-38
        %v2205 = vmax.f32 %v2197, 1e-38
        %v2206 = vmax.f32 %v2198, 1e-38
        %v2207 = vmax.f32 %v2199, 1e-38
        %v2208 = vmax.f32 %v2200, 1e-38
        %v2209 = vmax.f32 %v2201, 1e-38
        %v2210 = vrcp.pop %v2202
        %v2211 = vrcp.pop %v2203
        %v2212 = vrcp.pop %v2204
        %v2213 = vrcp.pop %v2205
        %v2214 = vrcp.pop %v2206
        %v2215 = vrcp.pop %v2207
        %v2216 = vrcp.pop %v2208
        %v2217 = vrcp.pop %v2209
        %v2218 = vmul.f32 %v1340, %v2210
        %v2219 = vmul.f32 %v1341, %v2211
        %v2220 = vmul.f32 %v1342, %v2212
        %v2221 = vmul.f32 %v1343, %v2213
        %v2222 = vmul.f32 %v1344, %v2214
        %v2223 = vmul.f32 %v1345, %v2215
        %v2224 = vmul.f32 %v1346, %v2216
        %v2225 = vmul.f32 %v1347, %v2217
        %v2226 = vld [vmem:[%s10] sm:$0xff]
        %v2227 = vld [vmem:[%s10 + $0x8] sm:$0xff]
        %vm2228 = vcmask 64512
        %v2230 = vsel %vm2228, %v2218, 0
        %v2233 = vsel %vm2228, %v2219, 0
        %v2236 = vsel %vm2228, %v2220, 0
        %v2239 = vsel %vm2228, %v2221, 0
        %v2242 = vsel %vm2228, %v2222, 0
        %v2245 = vsel %vm2228, %v2223, 0
        %v2248 = vsel %vm2228, %v2224, 0
        %v2251 = vsel %vm2228, %v2225, 0
        %2253 = vmatprep.subr.mxu0 0.0
        %2254 = vmatpush1.msra.mxu0 0.0
        %2255 = vmatprep.subr.mxu0 0.0
        %2256 = vmatpush1.msra.mxu0 0.0
        %2257 = vmatprep.subr.mxu0 0.0
        %2258 = vmatpush1.msra.mxu0 0.0
        %2259 = vmatprep.subr.mxu0 0.0
        %2260 = vmatpush1.msra.mxu0 0.0
        %2261 = vmatprep.subr.mxu0 0.0
        %2262 = vmatpush1.msra.mxu0 0.0
        %2263 = vmatprep.subr.mxu0 0.0
        %2264 = vmatpush1.msra.mxu0 0.0
        %2265 = vmatprep.subr.mxu0 0.0
        %2266 = vmatpush1.msra.mxu0 0.0
        %2267 = vmatprep.subr.mxu0 0.0
        %2268 = vmatpush1.msra.mxu0 0.0
        %2269 = vmatprep.subr.mxu0 0.0
        %2270 = vmatpush1.msra.mxu0 0.0
        %2271 = vmatprep.subr.mxu0 0.0
        %2272 = vmatpush1.msra.mxu0 0.0
        %2273 = vmatprep.subr.mxu0 0.0
        %2274 = vmatpush1.msra.mxu0 0.0
        %2275 = vmatprep.subr.mxu0 0.0
        %2276 = vmatpush1.msra.mxu0 0.0
        %2277 = vmatprep.subr.mxu0 0.0
        %2278 = vmatpush1.msra.mxu0 0.0
        %2279 = vmatprep.subr.mxu0 0.0
        %2280 = vmatpush1.msra.mxu0 0.0
        %2281 = vmatprep.subr.mxu0 0.0
        %2282 = vmatpush1.msra.mxu0 0.0
        %2283 = vmatprep.subr.mxu0 %v2227
        %2284 = vmatpush1.msra.mxu0 %v2226
        %2285 = vmatprep.subr.mxu0 0.0
        %2286 = vmatpush2.msra.mxu0 0.0
        %2287 = vmatprep.subr.mxu0 0.0
        %2288 = vmatpush2.msra.mxu0 0.0
        %2289 = vmatprep.subr.mxu0 0.0
        %2290 = vmatpush2.msra.mxu0 0.0
        %2291 = vmatprep.subr.mxu0 0.0
        %2292 = vmatpush2.msra.mxu0 0.0
        %2293 = vmatprep.subr.mxu0 0.0
        %2294 = vmatpush2.msra.mxu0 0.0
        %2295 = vmatprep.subr.mxu0 0.0
        %2296 = vmatpush2.msra.mxu0 0.0
        %2297 = vmatprep.subr.mxu0 0.0
        %2298 = vmatpush2.msra.mxu0 0.0
        %2299 = vmatprep.subr.mxu0 0.0
        %2300 = vmatpush2.msra.mxu0 0.0
        %2301 = vmatprep.subr.mxu0 0.0
        %2302 = vmatpush2.msra.mxu0 0.0
        %2303 = vmatprep.subr.mxu0 0.0
        %2304 = vmatpush2.msra.mxu0 0.0
        %2305 = vmatprep.subr.mxu0 0.0
        %2306 = vmatpush2.msra.mxu0 0.0
        %2307 = vmatprep.subr.mxu0 0.0
        %2308 = vmatpush2.msra.mxu0 0.0
        %2309 = vmatprep.subr.mxu0 0.0
        %2310 = vmatpush2.msra.mxu0 0.0
        %2311 = vmatprep.subr.mxu0 0.0
        %2312 = vmatpush2.msra.mxu0 0.0
        %2313 = vmatprep.subr.mxu0 0.0
        %2314 = vmatpush2.msra.mxu0 0.0
        %2315 = vmatprep.subr.mxu0 0.0
        %2316 = vmatpush2.msra.mxu0 0.0
        %2317 = vmatprep.mubr.f32.mxu0 0.0
        %2318 = vmatmul.mubr.f32.gmra.mxu0 %v2230
        %v2319 = vpop.f32.mrf.mxu0
        %v2320 = vadd.f32 0.0, %v2319
        %v2321 = vpop.f32.mrf.mxu0
        %v2322 = vadd.f32 0.0, %v2321
        %2323 = vmatprep.mubr.f32.mxu0 0.0
        %2324 = vmatmul.mubr.f32.gmra.mxu0 %v2233
        %v2325 = vpop.f32.mrf.mxu0
        %v2326 = vadd.f32 0.0, %v2325
        %v2327 = vpop.f32.mrf.mxu0
        %v2328 = vadd.f32 0.0, %v2327
        %2329 = vmatprep.mubr.f32.mxu0 0.0
        %2330 = vmatmul.mubr.f32.gmra.mxu0 %v2236
        %v2331 = vpop.f32.mrf.mxu0
        %v2332 = vadd.f32 0.0, %v2331
        %v2333 = vpop.f32.mrf.mxu0
        %v2334 = vadd.f32 0.0, %v2333
        %2335 = vmatprep.mubr.f32.mxu0 0.0
        %2336 = vmatmul.mubr.f32.gmra.mxu0 %v2239
        %v2337 = vpop.f32.mrf.mxu0
        %v2338 = vadd.f32 0.0, %v2337
        %v2339 = vpop.f32.mrf.mxu0
        %v2340 = vadd.f32 0.0, %v2339
        %2341 = vmatprep.mubr.f32.mxu0 0.0
        %2342 = vmatmul.mubr.f32.gmra.mxu0 %v2242
        %v2343 = vpop.f32.mrf.mxu0
        %v2344 = vadd.f32 0.0, %v2343
        %v2345 = vpop.f32.mrf.mxu0
        %v2346 = vadd.f32 0.0, %v2345
        %2347 = vmatprep.mubr.f32.mxu0 0.0
        %2348 = vmatmul.mubr.f32.gmra.mxu0 %v2245
        %v2349 = vpop.f32.mrf.mxu0
        %v2350 = vadd.f32 0.0, %v2349
        %v2351 = vpop.f32.mrf.mxu0
        %v2352 = vadd.f32 0.0, %v2351
        %2353 = vmatprep.mubr.f32.mxu0 0.0
        %2354 = vmatmul.mubr.f32.gmra.mxu0 %v2248
        %v2355 = vpop.f32.mrf.mxu0
        %v2356 = vadd.f32 0.0, %v2355
        %v2357 = vpop.f32.mrf.mxu0
        %v2358 = vadd.f32 0.0, %v2357
        %2359 = vmatprep.mubr.f32.mxu0 0.0
        %2360 = vmatmul.mubr.f32.gmra.mxu0 %v2251
        %v2361 = vpop.f32.mrf.mxu0
        %v2362 = vadd.f32 0.0, %v2361
        %v2363 = vpop.f32.mrf.mxu0
        %v2364 = vadd.f32 0.0, %v2363
        %2365 = vdwg.mxu0
        %v2366 = vld [vmem:[%s11] sm:$0xff]
        %v2367 = vmul.f32 %v2320, %v1364
        %v2368 = vmul.f32 %v2322, %v1365
        %v2369 = vmul.f32 %v2326, %v1366
        %v2370 = vmul.f32 %v2328, %v1367
        %v2371 = vmul.f32 %v2332, %v1368
        %v2372 = vmul.f32 %v2334, %v1369
        %v2373 = vmul.f32 %v2338, %v1370
        %v2374 = vmul.f32 %v2340, %v1371
        %v2375 = vmul.f32 %v2344, %v1372
        %v2376 = vmul.f32 %v2346, %v1373
        %v2377 = vmul.f32 %v2350, %v1374
        %v2378 = vmul.f32 %v2352, %v1375
        %v2379 = vmul.f32 %v2356, %v1376
        %v2380 = vmul.f32 %v2358, %v1377
        %v2381 = vmul.f32 %v2362, %v1378
        %v2382 = vmul.f32 %v2364, %v1379
        %vm2383 = vcmask 523264
        %v2385 = vsel %vm2383, %v2366, 0
        %2387 = vmatprep.subr.mxu0 0.0
        %2388 = vmatpush1.msra.mxu0 0.0
        %2389 = vmatprep.subr.mxu0 0.0
        %2390 = vmatpush1.msra.mxu0 0.0
        %2391 = vmatprep.subr.mxu0 0.0
        %2392 = vmatpush1.msra.mxu0 0.0
        %2393 = vmatprep.subr.mxu0 0.0
        %2394 = vmatpush1.msra.mxu0 0.0
        %2395 = vmatprep.subr.mxu0 0.0
        %2396 = vmatpush1.msra.mxu0 0.0
        %2397 = vmatprep.subr.mxu0 0.0
        %2398 = vmatpush1.msra.mxu0 0.0
        %2399 = vmatprep.subr.mxu0 0.0
        %2400 = vmatpush1.msra.mxu0 0.0
        %2401 = vmatprep.subr.mxu0 0.0
        %2402 = vmatpush1.msra.mxu0 0.0
        %2403 = vmatprep.subr.mxu0 %v2382
        %2404 = vmatpush1.msra.mxu0 %v2381
        %2405 = vmatprep.subr.mxu0 %v2380
        %2406 = vmatpush1.msra.mxu0 %v2379
        %2407 = vmatprep.subr.mxu0 %v2378
        %2408 = vmatpush1.msra.mxu0 %v2377
        %2409 = vmatprep.subr.mxu0 %v2376
        %2410 = vmatpush1.msra.mxu0 %v2375
        %2411 = vmatprep.subr.mxu0 %v2374
        %2412 = vmatpush1.msra.mxu0 %v2373
        %2413 = vmatprep.subr.mxu0 %v2372
        %2414 = vmatpush1.msra.mxu0 %v2371
        %2415 = vmatprep.subr.mxu0 %v2370
        %2416 = vmatpush1.msra.mxu0 %v2369
        %2417 = vmatprep.subr.mxu0 %v2368
        %2418 = vmatpush1.msra.mxu0 %v2367
        %2419 = vmatprep.subr.mxu0 0.0
        %2420 = vmatpush2.msra.mxu0 0.0
        %2421 = vmatprep.subr.mxu0 0.0
        %2422 = vmatpush2.msra.mxu0 0.0
        %2423 = vmatprep.subr.mxu0 0.0
        %2424 = vmatpush2.msra.mxu0 0.0
        %2425 = vmatprep.subr.mxu0 0.0
        %2426 = vmatpush2.msra.mxu0 0.0
        %2427 = vmatprep.subr.mxu0 0.0
        %2428 = vmatpush2.msra.mxu0 0.0
        %2429 = vmatprep.subr.mxu0 0.0
        %2430 = vmatpush2.msra.mxu0 0.0
        %2431 = vmatprep.subr.mxu0 0.0
        %2432 = vmatpush2.msra.mxu0 0.0
        %2433 = vmatprep.subr.mxu0 0.0
        %2434 = vmatpush2.msra.mxu0 0.0
        %2435 = vmatprep.subr.mxu0 0.0
        %2436 = vmatpush2.msra.mxu0 0.0
        %2437 = vmatprep.subr.mxu0 0.0
        %2438 = vmatpush2.msra.mxu0 0.0
        %2439 = vmatprep.subr.mxu0 0.0
        %2440 = vmatpush2.msra.mxu0 0.0
        %2441 = vmatprep.subr.mxu0 0.0
        %2442 = vmatpush2.msra.mxu0 0.0
        %2443 = vmatprep.subr.mxu0 0.0
        %2444 = vmatpush2.msra.mxu0 0.0
        %2445 = vmatprep.subr.mxu0 0.0
        %2446 = vmatpush2.msra.mxu0 0.0
        %2447 = vmatprep.subr.mxu0 0.0
        %2448 = vmatpush2.msra.mxu0 0.0
        %2449 = vmatprep.subr.mxu0 0.0
        %2450 = vmatpush2.msra.mxu0 0.0
        %2451 = vmatprep.mubr.f32.mxu0 0.0
        %2452 = vmatmul.mubr.f32.gmra.mxu0 %v2385
        %v2453 = vpop.f32.mrf.mxu0
        %v2454 = vadd.f32 0.0, %v2453
        %v2455 = vpop.f32.mrf.mxu0
        %v2456 = vadd.f32 0.0, %v2455
        %2457 = vdwg.mxu0
        %2458 = vmatprep.subr.mxu0 0.0
        %2459 = vmatpush1.msra.mxu0 0.0
        %2460 = vmatprep.subr.mxu0 0.0
        %2461 = vmatpush1.msra.mxu0 0.0
        %2462 = vmatprep.subr.mxu0 0.0
        %2463 = vmatpush1.msra.mxu0 0.0
        %2464 = vmatprep.subr.mxu0 0.0
        %2465 = vmatpush1.msra.mxu0 0.0
        %2466 = vmatprep.subr.mxu0 0.0
        %2467 = vmatpush1.msra.mxu0 0.0
        %2468 = vmatprep.subr.mxu0 0.0
        %2469 = vmatpush1.msra.mxu0 0.0
        %2470 = vmatprep.subr.mxu0 0.0
        %2471 = vmatpush1.msra.mxu0 0.0
        %2472 = vmatprep.subr.mxu0 0.0
        %2473 = vmatpush1.msra.mxu0 0.0
        %2474 = vmatprep.subr.mxu0 0.0
        %2475 = vmatpush1.msra.mxu0 %v1347
        %2476 = vmatprep.subr.mxu0 0.0
        %2477 = vmatpush1.msra.mxu0 %v1346
        %2478 = vmatprep.subr.mxu0 0.0
        %2479 = vmatpush1.msra.mxu0 %v1345
        %2480 = vmatprep.subr.mxu0 0.0
        %2481 = vmatpush1.msra.mxu0 %v1344
        %2482 = vmatprep.subr.mxu0 0.0
        %2483 = vmatpush1.msra.mxu0 %v1343
        %2484 = vmatprep.subr.mxu0 0.0
        %2485 = vmatpush1.msra.mxu0 %v1342
        %2486 = vmatprep.subr.mxu0 0.0
        %2487 = vmatpush1.msra.mxu0 %v1341
        %2488 = vmatprep.subr.mxu0 0.0
        %2489 = vmatpush1.msra.mxu0 %v1340
        %2490 = vmatprep.subr.mxu0 0.0
        %2491 = vmatpush2.msra.mxu0 0.0
        %2492 = vmatprep.subr.mxu0 0.0
        %2493 = vmatpush2.msra.mxu0 0.0
        %2494 = vmatprep.subr.mxu0 0.0
        %2495 = vmatpush2.msra.mxu0 0.0
        %2496 = vmatprep.subr.mxu0 0.0
        %2497 = vmatpush2.msra.mxu0 0.0
        %2498 = vmatprep.subr.mxu0 0.0
        %2499 = vmatpush2.msra.mxu0 0.0
        %2500 = vmatprep.subr.mxu0 0.0
        %2501 = vmatpush2.msra.mxu0 0.0
        %2502 = vmatprep.subr.mxu0 0.0
        %2503 = vmatpush2.msra.mxu0 0.0
        %2504 = vmatprep.subr.mxu0 0.0
        %2505 = vmatpush2.msra.mxu0 0.0
        %2506 = vmatprep.subr.mxu0 0.0
        %2507 = vmatpush2.msra.mxu0 0.0
        %2508 = vmatprep.subr.mxu0 0.0
        %2509 = vmatpush2.msra.mxu0 0.0
        %2510 = vmatprep.subr.mxu0 0.0
        %2511 = vmatpush2.msra.mxu0 0.0
        %2512 = vmatprep.subr.mxu0 0.0
        %2513 = vmatpush2.msra.mxu0 0.0
        %2514 = vmatprep.subr.mxu0 0.0
        %2515 = vmatpush2.msra.mxu0 0.0
        %2516 = vmatprep.subr.mxu0 0.0
        %2517 = vmatpush2.msra.mxu0 0.0
        %2518 = vmatprep.subr.mxu0 0.0
        %2519 = vmatpush2.msra.mxu0 0.0
        %2520 = vmatprep.subr.mxu0 0.0
        %2521 = vmatpush2.msra.mxu0 0.0
        %2522 = vmatprep.mubr.f32.mxu0 0.0
        %2523 = vmatmul.mubr.f32.gmra.mxu0 %v2385
        %v2524 = vpop.f32.mrf.mxu0
        %v2525 = vadd.f32 0.0, %v2524
        %v2526 = vpop.f32.mrf.mxu0
        %2527 = vdwg.mxu0
        %v2528 = vmax.f32 %v2525, 1e-38
        %v2529 = vrcp.pop %v2528
        %v2531 = vsel %vm2228, %v2529, 0
        %2533 = vmatprep.subr.mxu0 0.0
        %2534 = vmatpush1.msra.mxu0 0.0
        %2535 = vmatprep.subr.mxu0 0.0
        %2536 = vmatpush1.msra.mxu0 0.0
        %2537 = vmatprep.subr.mxu0 0.0
        %2538 = vmatpush1.msra.mxu0 0.0
        %2539 = vmatprep.subr.mxu0 0.0
        %2540 = vmatpush1.msra.mxu0 0.0
        %2541 = vmatprep.subr.mxu0 0.0
        %2542 = vmatpush1.msra.mxu0 0.0
        %2543 = vmatprep.subr.mxu0 0.0
        %2544 = vmatpush1.msra.mxu0 0.0
        %2545 = vmatprep.subr.mxu0 0.0
        %2546 = vmatpush1.msra.mxu0 0.0
        %2547 = vmatprep.subr.mxu0 0.0
        %2548 = vmatpush1.msra.mxu0 0.0
        %2549 = vmatprep.subr.mxu0 0.0
        %2550 = vmatpush1.msra.mxu0 0.0
        %2551 = vmatprep.subr.mxu0 0.0
        %2552 = vmatpush1.msra.mxu0 0.0
        %2553 = vmatprep.subr.mxu0 0.0
        %2554 = vmatpush1.msra.mxu0 0.0
        %2555 = vmatprep.subr.mxu0 0.0
        %2556 = vmatpush1.msra.mxu0 0.0
        %2557 = vmatprep.subr.mxu0 0.0
        %2558 = vmatpush1.msra.mxu0 0.0
        %2559 = vmatprep.subr.mxu0 0.0
        %2560 = vmatpush1.msra.mxu0 0.0
        %2561 = vmatprep.subr.mxu0 0.0
        %2562 = vmatpush1.msra.mxu0 0.0
        %2563 = vmatprep.subr.mxu0 %v2227
        %2564 = vmatpush1.msra.mxu0 %v2226
        %2565 = vmatprep.subr.mxu0 0.0
        %2566 = vmatpush2.msra.mxu0 0.0
        %2567 = vmatprep.subr.mxu0 0.0
        %2568 = vmatpush2.msra.mxu0 0.0
        %2569 = vmatprep.subr.mxu0 0.0
        %2570 = vmatpush2.msra.mxu0 0.0
        %2571 = vmatprep.subr.mxu0 0.0
        %2572 = vmatpush2.msra.mxu0 0.0
        %2573 = vmatprep.subr.mxu0 0.0
        %2574 = vmatpush2.msra.mxu0 0.0
        %2575 = vmatprep.subr.mxu0 0.0
        %2576 = vmatpush2.msra.mxu0 0.0
        %2577 = vmatprep.subr.mxu0 0.0
        %2578 = vmatpush2.msra.mxu0 0.0
        %2579 = vmatprep.subr.mxu0 0.0
        %2580 = vmatpush2.msra.mxu0 0.0
        %2581 = vmatprep.subr.mxu0 0.0
        %2582 = vmatpush2.msra.mxu0 0.0
        %2583 = vmatprep.subr.mxu0 0.0
        %2584 = vmatpush2.msra.mxu0 0.0
        %2585 = vmatprep.subr.mxu0 0.0
        %2586 = vmatpush2.msra.mxu0 0.0
        %2587 = vmatprep.subr.mxu0 0.0
        %2588 = vmatpush2.msra.mxu0 0.0
        %2589 = vmatprep.subr.mxu0 0.0
        %2590 = vmatpush2.msra.mxu0 0.0
        %2591 = vmatprep.subr.mxu0 0.0
        %2592 = vmatpush2.msra.mxu0 0.0
        %2593 = vmatprep.subr.mxu0 0.0
        %2594 = vmatpush2.msra.mxu0 0.0
        %2595 = vmatprep.subr.mxu0 0.0
        %2596 = vmatpush2.msra.mxu0 0.0
        %2597 = vmatprep.mubr.f32.mxu0 0.0
        %2598 = vmatmul.mubr.f32.gmra.mxu0 %v2531
        %v2599 = vpop.f32.mrf.mxu0
        %v2600 = vadd.f32 0.0, %v2599
        %v2601 = vpop.f32.mrf.mxu0
        %v2602 = vadd.f32 0.0, %v2601
        %2603 = vdwg.mxu0
        %v2604 = vmul.f32 %v2454, %v2600
        %v2605 = vmul.f32 %v2456, %v2602
        %2606 = vst [vmem:[%s435] sm:$0xff] %v2604
        %2607 = vst [vmem:[%s435 + $0x8] sm:$0xff] %v2605
        %s2608 = sand.u32 %s297, 1
        %s2609 = scalar_lea.sflag [#allocation4], %s2608
        %s2610 = sand.u32 %s297, 1
        %s2611 = smul.addr %s2610, 16
        %s2612 = scalar_lea.vmem [#allocation5], %s2611
        // Predicated region
        $region73: #{tpu_custom_call.1} parent=67 // pred_check
          %p2613 = pneg %p307
        $region74: #{tpu_custom_call.1} parent=67 // pred_check_branch
          %2615 = sbr.rel (%p2613) target = $region76
        $region75: #{tpu_custom_call.1} parent=67 // pred_region
          %s2617 = ssub.s32 256, 256
          %2618 = vsyncadd %s2609, %s2617
          %s2619 = smul.addr %s27, 2
          %s2620 = smul.addr %s2619, 128
          %s2621 = scalar_lea.hbm %s12, %s2620
          %s2623 = sshll.u32 %s2612, 4
          %s2624 = int_to_ptr.vmem [resolvable:$true] %s2623
          %2626 = dma.vmem_to_hbm [thread:$0]  %s2624, 256, %s2621, %s2609
        $region76: #{tpu_custom_call.1} parent=67 // pred_fallthru
          _
      $region68: #{tpu_custom_call.1} parent=5 // pred_fallthru
        _
      %p2627 = scmp.le.s32.totalorder 2, %s22
      // Predicated region
      $region77: #{tpu_custom_call.1} parent=5 // pred_check
        %p2628 = pneg %p2627
      $region78: #{tpu_custom_call.1} parent=5 // pred_check_branch
        %2630 = sbr.rel (%p2628) target = $region80
      $region79: #{tpu_custom_call.1} parent=5 // pred_region
        %s2631 = ssub.s32 %s22, 2
        // Predicated region
        $region81: #{tpu_custom_call.1} parent=79 // pred_check
          %p2632 = pneg %p313
        $region82: #{tpu_custom_call.1} parent=79 // pred_check_branch
          %2634 = sbr.rel (%p2632) target = $region84
        $region83: #{tpu_custom_call.1} parent=79 // pred_region
          %s2635 = sand.u32 %s298, 1
          %s2636 = scalar_lea.sflag [#allocation4], %s2635
          %s2637 = sand.u32 %s298, 1
          %s2638 = smul.addr %s2637, 16
          %s2639 = scalar_lea.vmem [#allocation5], %s2638
          %2640 = dma.done %s2636, 256
        $region84: #{tpu_custom_call.1} parent=79 // pred_fallthru
          _
      $region80: #{tpu_custom_call.1} parent=5 // pred_fallthru
        _
    $region6: #{tpu_custom_call.1} parent=1 // loop_footer
      %s26 = sadd.s32 1, %s22
    $region7: #{tpu_custom_call.1} parent=1 // loop_footer_branch
      %21 = sbr.rel target = $region3
    $region8: #{tpu_custom_call.1} parent=1 // loop_exit
      _
    %2641 = vsyncpa [#allocation3], 1
    %s2642 = scalar_lea.sflag [#allocation3], 1
    %2643 = vsyncpa %s2642, 1
    %2644 = vsyncpa [#allocation4], 1
    %s2645 = scalar_lea.sflag [#allocation4], 1
    %2646 = vsyncpa %s2645, 1

// kernel: tpu_custom_call.1
$region0: #{tpu_custom_call.1}
  #allocation0 [shape = 'u32[]', space=smem, size = 0x4, offset = 0x4, fixed_abs, tag = 'smem constant byte address 0x4 - core index']
  #allocation1 [shape = 'u32[144,128]{1,0:T(1,128)}', space=vmem, size = 0x12000, scoped, tag = 'internal scratch']
  %s0 = inlined_call_operand.vmem [shape: f32[128,16], index: 0, kind: input, shape index: {}]
  %s1 = inlined_call_operand.vmem [shape: f32[16,16], index: 1, kind: input, shape index: {}]
  %s2 = inlined_call_operand.vmem [shape: f32[16,512], index: 2, kind: input, shape index: {}]
  %s3 = inlined_call_operand.vmem [shape: f32[1,512], index: 3, kind: input, shape index: {}]
  %s4 = inlined_call_operand.vmem [shape: f32[16,256], index: 4, kind: input, shape index: {}]
  %s5 = inlined_call_operand.vmem [shape: f32[1,256], index: 5, kind: input, shape index: {}]
  %s6 = inlined_call_operand.vmem [shape: f32[8,256], index: 6, kind: input, shape index: {}]
  %s7 = inlined_call_operand.vmem [shape: f32[8,256], index: 7, kind: input, shape index: {}]
  %s8 = inlined_call_operand.hbm [shape: f32[256,256], index: 8, kind: input, shape index: {}]
  %s9 = inlined_call_operand.vmem [shape: f32[256,8], index: 9, kind: input, shape index: {}]
  %s10 = inlined_call_operand.vmem [shape: f32[8,256], index: 10, kind: input, shape index: {}]
  %s11 = inlined_call_operand.vmem [shape: f32[8,64], index: 11, kind: input, shape index: {}]
  %s12 = inlined_call_operand.hbm [shape: f32[16,256], index: 12, kind: output, shape index: {}]
  %s13 = sld [smem:[#allocation0]]
  $region85: #{tpu_custom_call.1} parent=0
    _
  %s15 = ssub.s32 1, %s13
  %s16 = scalar_select 0, %s15, %s13
  $region1: #{tpu_custom_call.1} parent=0
    #allocation2 [shape = 'u8[262144]{0}', space=vmem, size = 0x40000, scoped, tag = 'input window, operand 8, single buffered']
    #allocation3 [shape = 's32[2]{0}', space=sflag, size = 0x8, scoped, tag = 'scoped memory for tpu_custom_call.1']
    #allocation4 [shape = 's32[2]{0}', space=sflag, size = 0x8, scoped, tag = 'scoped memory for tpu_custom_call.1']
    #allocation5 [shape = 'u8[16384]{0}', space=vmem, size = 0x4000, scoped, tag = 'output window, operand 0']
    %17 = vsyncpa [#allocation3], 0
    %18 = vsyncpa [#allocation4], 0
    %s19 = scalar_lea.sflag [#allocation4], 1
    %20 = vsyncpa %s19, 0
    loop: start=0, step=1, limit=4
    $region2: #{tpu_custom_call.1} parent=1 // loop_pre_header
      _
    $region3: #{tpu_custom_call.1} parent=1 // loop_header
      %s22 = sphi 0, %s26
      %p23 = scmp.ge.s32.totalorder %s22, 4
      %s32 = sphi 0, %s34
      %s35 = sphi 0, %s32
      %s36 = sphi 0, %s35
      %s52 = sphi 0, %s36
      %s58 = sphi 0, %s60
      %s61 = sphi 0, %s58
      %s62 = sphi 0, %s61
      %s78 = sphi 0, %s62
      %s82 = sphi 0, %s82
      %s84 = sphi 0, %s82
      %s85 = sphi 0, %s84
      %s99 = sphi 0, %s85
      %s103 = sphi 0, %s103
      %s105 = sphi 0, %s103
      %s106 = sphi 0, %s105
      %s120 = sphi 0, %s106
      %s124 = sphi 0, %s124
      %s126 = sphi 0, %s124
      %s127 = sphi 0, %s126
      %s141 = sphi 0, %s127
      %s145 = sphi 0, %s145
      %s147 = sphi 0, %s145
      %s148 = sphi 0, %s147
      %s162 = sphi 0, %s148
      %s166 = sphi 0, %s166
      %s168 = sphi 0, %s166
      %s169 = sphi 0, %s168
      %s183 = sphi 0, %s169
      %s187 = sphi 0, %s187
      %s189 = sphi 0, %s187
      %s190 = sphi 0, %s189
      %s204 = sphi 0, %s190
      %s208 = sphi 0, %s208
      %s210 = sphi 0, %s208
      %s211 = sphi 0, %s210
      %s225 = sphi 0, %s211
      %s229 = sphi 0, %s229
      %s231 = sphi 0, %s229
      %s232 = sphi 0, %s231
      %s246 = sphi 0, %s232
      %s250 = sphi 0, %s250
      %s252 = sphi 0, %s250
      %s253 = sphi 0, %s252
      %s267 = sphi 0, %s253
      %s271 = sphi 0, %s271
      %s273 = sphi 0, %s271
      %s274 = sphi 0, %s273
      %s288 = sphi 0, %s274
      %s294 = sphi 0, %s296
      %s297 = sphi 0, %s294
      %s298 = sphi 0, %s297
      %s314 = sphi 0, %s298
    $region4: #{tpu_custom_call.1} parent=1 // loop_header_branch
      %25 = sbr.rel (%p23) target = $region8
    $region5: #{tpu_custom_call.1} parent=1 // loop_body
      %s27 = ssub.s32 %s22, 1
      %s28 = ssub.s32 %s22, 2
      %s29 = sadd.s32 %s22, 1
      %s30 = ssub.s32 %s22, %s29
      %p31 = scmp.eq.s32.totalorder %s30, 0
      %s33 = sadd.s32 %s32, 1
      %s34 = scalar_select %p31, %s32, %s33
      %p37 = pneg %p31
      %p38 = scmp.eq.s32.totalorder %s22, 1
      %p39 = por %p37, %p38
      %p40 = scmp.ne.s32.totalorder %s32, %s35
      %p41 = scmp.eq.s32.totalorder %s22, 0
      %p42 = por %p40, %p41
      %p43 = scmp.ne.s32.totalorder %s32, %s35
      %p44 = scmp.eq.s32.totalorder %s27, 1
      %p45 = por %p43, %p44
      %p46 = scmp.ne.s32.totalorder %s35, %s36
      %p47 = scmp.eq.s32.totalorder %s27, 0
      %p48 = por %p46, %p47
      %p49 = scmp.ne.s32.totalorder %s35, %s36
      %p50 = scmp.eq.s32.totalorder %s28, 1
      %p51 = por %p49, %p50
      %p53 = scmp.ne.s32.totalorder %s36, %s52
      %p54 = scmp.eq.s32.totalorder %s28, 0
      %p55 = por %p53, %p54
      %s56 = ssub.s32 %s22, %s29
      %p57 = scmp.eq.s32.totalorder %s56, 0
      %s59 = sadd.s32 %s58, 1
      %s60 = scalar_select %p57, %s58, %s59
      %p63 = pneg %p57
      %p64 = scmp.eq.s32.totalorder %s22, 1
      %p65 = por %p63, %p64
      %p66 = scmp.ne.s32.totalorder %s58, %s61
      %p67 = scmp.eq.s32.totalorder %s22, 0
      %p68 = por %p66, %p67
      %p69 = scmp.ne.s32.totalorder %s58, %s61
      %p70 = scmp.eq.s32.totalorder %s27, 1
      %p71 = por %p69, %p70
      %p72 = scmp.ne.s32.totalorder %s61, %s62
      %p73 = scmp.eq.s32.totalorder %s27, 0
      %p74 = por %p72, %p73
      %p75 = scmp.ne.s32.totalorder %s61, %s62
      %p76 = scmp.eq.s32.totalorder %s28, 1
      %p77 = por %p75, %p76
      %p79 = scmp.ne.s32.totalorder %s62, %s78
      %p80 = scmp.eq.s32.totalorder %s28, 0
      %p81 = por %p79, %p80
      %s83 = sadd.s32 %s82, 1
      %p86 = scmp.eq.s32.totalorder %s22, 1
      %p87 = scmp.ne.s32.totalorder %s82, %s84
      %p88 = scmp.eq.s32.totalorder %s22, 0
      %p89 = por %p87, %p88
      %p90 = scmp.ne.s32.totalorder %s82, %s84
      %p91 = scmp.eq.s32.totalorder %s27, 1
      %p92 = por %p90, %p91
      %p93 = scmp.ne.s32.totalorder %s84, %s85
      %p94 = scmp.eq.s32.totalorder %s27, 0
      %p95 = por %p93, %p94
      %p96 = scmp.ne.s32.totalorder %s84, %s85
      %p97 = scmp.eq.s32.totalorder %s28, 1
      %p98 = por %p96, %p97
      %p100 = scmp.ne.s32.totalorder %s85, %s99
      %p101 = scmp.eq.s32.totalorder %s28, 0
      %p102 = por %p100, %p101
      %s104 = sadd.s32 %s103, 1
      %p107 = scmp.eq.s32.totalorder %s22, 1
      %p108 = scmp.ne.s32.totalorder %s103, %s105
      %p109 = scmp.eq.s32.totalorder %s22, 0
      %p110 = por %p108, %p109
      %p111 = scmp.ne.s32.totalorder %s103, %s105
      %p112 = scmp.eq.s32.totalorder %s27, 1
      %p113 = por %p111, %p112
      %p114 = scmp.ne.s32.totalorder %s105, %s106
      %p115 = scmp.eq.s32.totalorder %s27, 0
      %p116 = por %p114, %p115
      %p117 = scmp.ne.s32.totalorder %s105, %s106
      %p118 = scmp.eq.s32.totalorder %s28, 1
      %p119 = por %p117, %p118
      %p121 = scmp.ne.s32.totalorder %s106, %s120
      %p122 = scmp.eq.s32.totalorder %s28, 0
      %p123 = por %p121, %p122
      %s125 = sadd.s32 %s124, 1
      %p128 = scmp.eq.s32.totalorder %s22, 1
      %p129 = scmp.ne.s32.totalorder %s124, %s126
      %p130 = scmp.eq.s32.totalorder %s22, 0
      %p131 = por %p129, %p130
      %p132 = scmp.ne.s32.totalorder %s124, %s126
      %p133 = scmp.eq.s32.totalorder %s27, 1
      %p134 = por %p132, %p133
      %p135 = scmp.ne.s32.totalorder %s126, %s127
      %p136 = scmp.eq.s32.totalorder %s27, 0
      %p137 = por %p135, %p136
      %p138 = scmp.ne.s32.totalorder %s126, %s127
      %p139 = scmp.eq.s32.totalorder %s28, 1
      %p140 = por %p138, %p139
      %p142 = scmp.ne.s32.totalorder %s127, %s141
      %p143 = scmp.eq.s32.totalorder %s28, 0
      %p144 = por %p142, %p143
      %s146 = sadd.s32 %s145, 1
      %p149 = scmp.eq.s32.totalorder %s22, 1
      %p150 = scmp.ne.s32.totalorder %s145, %s147
      %p151 = scmp.eq.s32.totalorder %s22, 0
      %p152 = por %p150, %p151
      %p153 = scmp.ne.s32.totalorder %s145, %s147
      %p154 = scmp.eq.s32.totalorder %s27, 1
      %p155 = por %p153, %p154
      %p156 = scmp.ne.s32.totalorder %s147, %s148
      %p157 = scmp.eq.s32.totalorder %s27, 0
      %p158 = por %p156, %p157
      %p159 = scmp.ne.s32.totalorder %s147, %s148
      %p160 = scmp.eq.s32.totalorder %s28, 1
      %p161 = por %p159, %p160
      %p163 = scmp.ne.s32.totalorder %s148, %s162
      %p164 = scmp.eq.s32.totalorder %s28, 0
      %p165 = por %p163, %p164
      %s167 = sadd.s32 %s166, 1
      %p170 = scmp.eq.s32.totalorder %s22, 1
      %p171 = scmp.ne.s32.totalorder %s166, %s168
      %p172 = scmp.eq.s32.totalorder %s22, 0
      %p173 = por %p171, %p172
      %p174 = scmp.ne.s32.totalorder %s166, %s168
      %p175 = scmp.eq.s32.totalorder %s27, 1
      %p176 = por %p174, %p175
      %p177 = scmp.ne.s32.totalorder %s168, %s169
      %p178 = scmp.eq.s32.totalorder %s27, 0
      %p179 = por %p177, %p178
      %p180 = scmp.ne.s32.totalorder %s168, %s169
      %p181 = scmp.eq.s32.totalorder %s28, 1
      %p182 = por %p180, %p181
      %p184 = scmp.ne.s32.totalorder %s169, %s183
      %p185 = scmp.eq.s32.totalorder %s28, 0
      %p186 = por %p184, %p185
      %s188 = sadd.s32 %s187, 1
      %p191 = scmp.eq.s32.totalorder %s22, 1
      %p192 = scmp.ne.s32.totalorder %s187, %s189
      %p193 = scmp.eq.s32.totalorder %s22, 0
      %p194 = por %p192, %p193
      %p195 = scmp.ne.s32.totalorder %s187, %s189
      %p196 = scmp.eq.s32.totalorder %s27, 1
      %p197 = por %p195, %p196
      %p198 = scmp.ne.s32.totalorder %s189, %s190
      %p199 = scmp.eq.s32.totalorder %s27, 0
      %p200 = por %p198, %p199
      %p201 = scmp.ne.s32.totalorder %s189, %s190
      %p202 = scmp.eq.s32.totalorder %s28, 1
      %p203 = por %p201, %p202
      %p205 = scmp.ne.s32.totalorder %s190, %s204
      %p206 = scmp.eq.s32.totalorder %s28, 0
      %p207 = por %p205, %p206
      %s209 = sadd.s32 %s208, 1
      %p212 = scmp.eq.s32.totalorder %s22, 1
      %p213 = scmp.ne.s32.totalorder %s208, %s210
      %p214 = scmp.eq.s32.totalorder %s22, 0
      %p215 = por %p213, %p214
      %p216 = scmp.ne.s32.totalorder %s208, %s210
      %p217 = scmp.eq.s32.totalorder %s27, 1
      %p218 = por %p216, %p217
      %p219 = scmp.ne.s32.totalorder %s210, %s211
      %p220 = scmp.eq.s32.totalorder %s27, 0
      %p221 = por %p219, %p220
      %p222 = scmp.ne.s32.totalorder %s210, %s211
      %p223 = scmp.eq.s32.totalorder %s28, 1
      %p224 = por %p222, %p223
      %p226 = scmp.ne.s32.totalorder %s211, %s225
      %p227 = scmp.eq.s32.totalorder %s28, 0
      %p228 = por %p226, %p227
      %s230 = sadd.s32 %s229, 1
      %p233 = scmp.eq.s32.totalorder %s22, 1
      %p234 = scmp.ne.s32.totalorder %s229, %s231
      %p235 = scmp.eq.s32.totalorder %s22, 0
      %p236 = por %p234, %p235
      %p237 = scmp.ne.s32.totalorder %s229, %s231
      %p238 = scmp.eq.s32.totalorder %s27, 1
      %p239 = por %p237, %p238
      %p240 = scmp.ne.s32.totalorder %s231, %s232
      %p241 = scmp.eq.s32.totalorder %s27, 0
      %p242 = por %p240, %p241
      %p243 = scmp.ne.s32.totalorder %s231, %s232
      %p244 = scmp.eq.s32.totalorder %s28, 1
      %p245 = por %p243, %p244
      %p247 = scmp.ne.s32.totalorder %s232, %s246
      %p248 = scmp.eq.s32.totalorder %s28, 0
      %p249 = por %p247, %p248
      %s251 = sadd.s32 %s250, 1
      %p254 = scmp.eq.s32.totalorder %s22, 1
      %p255 = scmp.ne.s32.totalorder %s250, %s252
      %p256 = scmp.eq.s32.totalorder %s22, 0
      %p257 = por %p255, %p256
      %p258 = scmp.ne.s32.totalorder %s250, %s252
      %p259 = scmp.eq.s32.totalorder %s27, 1
      %p260 = por %p258, %p259
      %p261 = scmp.ne.s32.totalorder %s252, %s253
      %p262 = scmp.eq.s32.totalorder %s27, 0
      %p263 = por %p261, %p262
      %p264 = scmp.ne.s32.totalorder %s252, %s253
      %p265 = scmp.eq.s32.totalorder %s28, 1
      %p266 = por %p264, %p265
      %p268 = scmp.ne.s32.totalorder %s253, %s267
      %p269 = scmp.eq.s32.totalorder %s28, 0
      %p270 = por %p268, %p269
      %s272 = sadd.s32 %s271, 1
      %p275 = scmp.eq.s32.totalorder %s22, 1
      %p276 = scmp.ne.s32.totalorder %s271, %s273
      %p277 = scmp.eq.s32.totalorder %s22, 0
      %p278 = por %p276, %p277
      %p279 = scmp.ne.s32.totalorder %s271, %s273
      %p280 = scmp.eq.s32.totalorder %s27, 1
      %p281 = por %p279, %p280
      %p282 = scmp.ne.s32.totalorder %s273, %s274
      %p283 = scmp.eq.s32.totalorder %s27, 0
      %p284 = por %p282, %p283
      %p285 = scmp.ne.s32.totalorder %s273, %s274
      %p286 = scmp.eq.s32.totalorder %s28, 1
      %p287 = por %p285, %p286
      %p289 = scmp.ne.s32.totalorder %s274, %s288
      %p290 = scmp.eq.s32.totalorder %s28, 0
      %p291 = por %p289, %p290
      %s292 = ssub.s32 %s22, %s29
      %p293 = scmp.eq.s32.totalorder %s292, 0
      %s295 = sadd.s32 %s294, 1
      %s296 = scalar_select %p293, %s294, %s295
      %p299 = pneg %p293
      %p300 = scmp.eq.s32.totalorder %s22, 1
      %p301 = por %p299, %p300
      %p302 = scmp.ne.s32.totalorder %s294, %s297
      %p303 = scmp.eq.s32.totalorder %s22, 0
      %p304 = por %p302, %p303
      %p305 = scmp.ne.s32.totalorder %s294, %s297
      %p306 = scmp.eq.s32.totalorder %s27, 1
      %p307 = por %p305, %p306
      %p308 = scmp.ne.s32.totalorder %s297, %s298
      %p309 = scmp.eq.s32.totalorder %s27, 0
      %p310 = por %p308, %p309
      %p311 = scmp.ne.s32.totalorder %s297, %s298
      %p312 = scmp.eq.s32.totalorder %s28, 1
      %p313 = por %p311, %p312
      %p315 = scmp.ne.s32.totalorder %s298, %s314
      %p316 = scmp.eq.s32.totalorder %s28, 0
      %p317 = por %p315, %p316
      %p318 = scmp.le.s32.totalorder 1, %s22
      %p319 = scmp.lt.s32.totalorder %s22, 3
      %p320 = pnand %p318, %p319
      %p321 = pneg %p320
      // Predicated region
      $region9: #{tpu_custom_call.1} parent=5 // pred_check
        _
      $region10: #{tpu_custom_call.1} parent=5 // pred_check_branch
        %323 = sbr.rel (%p320) target = $region12
      $region11: #{tpu_custom_call.1} parent=5 // pred_region
        %s324 = ssub.s32 %s22, 1
        // Predicated region
        $region13: #{tpu_custom_call.1} parent=11 // pred_check
          %p325 = pneg %p95
        $region14: #{tpu_custom_call.1} parent=11 // pred_check_branch
          %327 = sbr.rel (%p325) target = $region16
        $region15: #{tpu_custom_call.1} parent=11 // pred_region
          _
        $region16: #{tpu_custom_call.1} parent=11 // pred_fallthru
          _
        // Predicated region
        $region17: #{tpu_custom_call.1} parent=11 // pred_check
          %p328 = pneg %p116
        $region18: #{tpu_custom_call.1} parent=11 // pred_check_branch
          %330 = sbr.rel (%p328) target = $region20
        $region19: #{tpu_custom_call.1} parent=11 // pred_region
          _
        $region20: #{tpu_custom_call.1} parent=11 // pred_fallthru
          _
        // Predicated region
        $region21: #{tpu_custom_call.1} parent=11 // pred_check
          %p331 = pneg %p137
        $region22: #{tpu_custom_call.1} parent=11 // pred_check_branch
          %333 = sbr.rel (%p331) target = $region24
        $region23: #{tpu_custom_call.1} parent=11 // pred_region
          _
        $region24: #{tpu_custom_call.1} parent=11 // pred_fallthru
          _
        // Predicated region
        $region25: #{tpu_custom_call.1} parent=11 // pred_check
          %p334 = pneg %p158
        $region26: #{tpu_custom_call.1} parent=11 // pred_check_branch
          %336 = sbr.rel (%p334) target = $region28
        $region27: #{tpu_custom_call.1} parent=11 // pred_region
          _
        $region28: #{tpu_custom_call.1} parent=11 // pred_fallthru
          _
        // Predicated region
        $region29: #{tpu_custom_call.1} parent=11 // pred_check
          %p337 = pneg %p179
        $region30: #{tpu_custom_call.1} parent=11 // pred_check_branch
          %339 = sbr.rel (%p337) target = $region32
        $region31: #{tpu_custom_call.1} parent=11 // pred_region
          _
        $region32: #{tpu_custom_call.1} parent=11 // pred_fallthru
          _
        // Predicated region
        $region33: #{tpu_custom_call.1} parent=11 // pred_check
          %p340 = pneg %p200
        $region34: #{tpu_custom_call.1} parent=11 // pred_check_branch
          %342 = sbr.rel (%p340) target = $region36
        $region35: #{tpu_custom_call.1} parent=11 // pred_region
          _
        $region36: #{tpu_custom_call.1} parent=11 // pred_fallthru
          _
        // Predicated region
        $region37: #{tpu_custom_call.1} parent=11 // pred_check
          %p343 = pneg %p221
        $region38: #{tpu_custom_call.1} parent=11 // pred_check_branch
          %345 = sbr.rel (%p343) target = $region40
        $region39: #{tpu_custom_call.1} parent=11 // pred_region
          %s347 = ssub.s32 8192, 8192
          %348 = vsyncadd [#allocation3], %s347
          %s349 = sshll.u32 [#allocation2], 4
          %s350 = int_to_ptr.vmem [resolvable:$true] %s349
          %355 = dma.hbm_to_vmem [thread:$0]  %s8, 8192, %s350, [#allocation3], 256, 256, 16
        $region40: #{tpu_custom_call.1} parent=11 // pred_fallthru
          _
        // Predicated region
        $region41: #{tpu_custom_call.1} parent=11 // pred_check
          %p356 = pneg %p242
        $region42: #{tpu_custom_call.1} parent=11 // pred_check_branch
          %358 = sbr.rel (%p356) target = $region44
        $region43: #{tpu_custom_call.1} parent=11 // pred_region
          _
        $region44: #{tpu_custom_call.1} parent=11 // pred_fallthru
          _
        // Predicated region
        $region45: #{tpu_custom_call.1} parent=11 // pred_check
          %p359 = pneg %p263
        $region46: #{tpu_custom_call.1} parent=11 // pred_check_branch
          %361 = sbr.rel (%p359) target = $region48
        $region47: #{tpu_custom_call.1} parent=11 // pred_region
          _
        $region48: #{tpu_custom_call.1} parent=11 // pred_fallthru
          _
        // Predicated region
        $region49: #{tpu_custom_call.1} parent=11 // pred_check
          %p362 = pneg %p284
        $region50: #{tpu_custom_call.1} parent=11 // pred_check_branch
          %364 = sbr.rel (%p362) target = $region52
        $region51: #{tpu_custom_call.1} parent=11 // pred_region
          _
        $region52: #{tpu_custom_call.1} parent=11 // pred_fallthru
          _
      $region12: #{tpu_custom_call.1} parent=5 // pred_fallthru
        _
      %p365 = scmp.lt.s32.totalorder %s22, 2
      // Predicated region
      $region53: #{tpu_custom_call.1} parent=5 // pred_check
        %p366 = pneg %p365
      $region54: #{tpu_custom_call.1} parent=5 // pred_check_branch
        %368 = sbr.rel (%p366) target = $region56
      $region55: #{tpu_custom_call.1} parent=5 // pred_region
        // Predicated region
        $region57: #{tpu_custom_call.1} parent=55 // pred_check
          %p369 = pneg %p42
        $region58: #{tpu_custom_call.1} parent=55 // pred_check_branch
          %371 = sbr.rel (%p369) target = $region60
        $region59: #{tpu_custom_call.1} parent=55 // pred_region
          %s372 = smul.u32 8, %s22
          %p373 = scmp.lt.s32.totalorder %s372, 15
          %s374 = scalar_select %p373, %s372, 15
          %s375 = smul.addr %s374, 8
          %s376 = scalar_lea.vmem %s0, %s375
          %s377 = smul.u32 8, %s22
        $region60: #{tpu_custom_call.1} parent=55 // pred_fallthru
          _
        // Predicated region
        $region61: #{tpu_custom_call.1} parent=55 // pred_check
          %p378 = pneg %p68
        $region62: #{tpu_custom_call.1} parent=55 // pred_check_branch
          %380 = sbr.rel (%p378) target = $region64
        $region63: #{tpu_custom_call.1} parent=55 // pred_region
          %p381 = scmp.lt.s32.totalorder %s22, 1
          %s382 = scalar_select %p381, %s22, 1
          %s383 = smul.addr %s382, 8
          %s384 = scalar_lea.vmem %s1, %s383
        $region64: #{tpu_custom_call.1} parent=55 // pred_fallthru
          _
      $region56: #{tpu_custom_call.1} parent=5 // pred_fallthru
        _
      %p385 = scmp.le.s32.totalorder 1, %s22
      %p386 = scmp.lt.s32.totalorder %s22, 3
      %p387 = pnand %p385, %p386
      %p388 = pneg %p387
      // Predicated region
      $region65: #{tpu_custom_call.1} parent=5 // pred_check
        _
      $region66: #{tpu_custom_call.1} parent=5 // pred_check_branch
        %390 = sbr.rel (%p387) target = $region68
      $region67: #{tpu_custom_call.1} parent=5 // pred_region
        %s391 = ssub.s32 %s22, 1
        // Predicated region
        $region69: #{tpu_custom_call.1} parent=67 // pred_check
          %p392 = pneg %p221
        $region70: #{tpu_custom_call.1} parent=67 // pred_check_branch
          %394 = sbr.rel (%p392) target = $region72
        $region71: #{tpu_custom_call.1} parent=67 // pred_region
          %395 = dma.done [#allocation3], 8192
        $region72: #{tpu_custom_call.1} parent=67 // pred_fallthru
          _
        %s396 = smul.u32 8, %s27
        %p397 = scmp.lt.s32.totalorder %s396, 15
        %s398 = scalar_select %p397, %s396, 15
        %s399 = smul.addr %s398, 8
        %s400 = scalar_lea.vmem %s0, %s399
        %p401 = pneg %p48
        %p402 = pneg %p45
        %p403 = scmp.lt.s32.totalorder %s27, 1
        %s404 = scalar_select %p403, %s27, 1
        %s405 = smul.addr %s404, 8
        %s406 = scalar_lea.vmem %s1, %s405
        %p407 = pneg %p74
        %p408 = pneg %p71
        %p409 = pneg %p95
        %p410 = pneg %p92
        %p411 = pneg %p116
        %p412 = pneg %p113
        %p413 = pneg %p137
        %p414 = pneg %p134
        %p415 = pneg %p158
        %p416 = pneg %p155
        %p417 = pneg %p179
        %p418 = pneg %p176
        %p419 = pneg %p200
        %p420 = pneg %p197
        %p421 = pneg %p221
        %p422 = pneg %p218
        %p423 = pneg %p242
        %p424 = pneg %p239
        %p425 = pneg %p263
        %p426 = pneg %p260
        %p427 = pneg %p284
        %p428 = pneg %p281
        %p429 = pneg %p310
        %p430 = pneg %p307
        %s431 = sand.u32 %s297, 1
        %s432 = scalar_lea.sflag [#allocation4], %s431
        %s433 = sand.u32 %s297, 1
        %s434 = smul.addr %s433, 16
        %s435 = scalar_lea.vmem [#allocation5], %s434
        %s436 = smul.u32 8, %s27
        %p437 = scmp.lt.s32.totalorder %s436, 15
        %s438 = scalar_select %p437, %s436, 15
        %s439 = smul.addr %s438, 8
        %s440 = scalar_lea.vmem %s0, %s439
        %s441 = smul.u32 8, %s27
        %p442 = scmp.lt.s32.totalorder %s27, 1
        %s443 = scalar_select %p442, %s27, 1
        %s444 = smul.addr %s443, 8
        %s445 = scalar_lea.vmem %s1, %s444
        %v446 = vld [vmem:[%s440] sm:$0xff]
        %v447 = vld [vmem:[%s440 + $0x8] sm:$0xff]
        %v448 = vld [vmem:[%s440 + $0x10] sm:$0xff]
        %v449 = vld [vmem:[%s440 + $0x18] sm:$0xff]
        %v450 = vld [vmem:[%s440 + $0x20] sm:$0xff]
        %v451 = vld [vmem:[%s440 + $0x28] sm:$0xff]
        %v452 = vld [vmem:[%s440 + $0x30] sm:$0xff]
        %v453 = vld [vmem:[%s440 + $0x38] sm:$0xff]
        %v454 = vld [vmem:[%s2] sm:$0xff]
        %v455 = vld [vmem:[%s2 + $0x8] sm:$0xff]
        %v456 = vld [vmem:[%s2 + $0x10] sm:$0xff]
        %v457 = vld [vmem:[%s2 + $0x18] sm:$0xff]
        %v458 = vld [vmem:[%s2 + $0x20] sm:$0xff]
        %v459 = vld [vmem:[%s2 + $0x28] sm:$0xff]
        %v460 = vld [vmem:[%s2 + $0x30] sm:$0xff]
        %v461 = vld [vmem:[%s2 + $0x38] sm:$0xff]
        %v462 = vld [vmem:[%s3] sm:$0xf]
        %v464 = vlaneseq
        %v465 = vshrl.u32 %v464, 7
        %v466 = vsub.s32 0, %v465
        %v467 = vrot.slane %v462, %v466
        %v468 = vlaneseq
        %v469 = vshrl.u32 %v468, 7
        %v470 = vsub.s32 1, %v469
        %v471 = vrot.slane %v462, %v470
        %v472 = vlaneseq
        %v473 = vshrl.u32 %v472, 7
        %v474 = vsub.s32 2, %v473
        %v475 = vrot.slane %v462, %v474
        %v476 = vlaneseq
        %v477 = vshrl.u32 %v476, 7
        %v478 = vsub.s32 3, %v477
        %v479 = vrot.slane %v462, %v478
        %vm484 = vcmask 130048
        %v486 = vsel %vm484, %v446, 0
        %v489 = vsel %vm484, %v447, 0
        %v492 = vsel %vm484, %v448, 0
        %v495 = vsel %vm484, %v449, 0
        %v498 = vsel %vm484, %v450, 0
        %v501 = vsel %vm484, %v451, 0
        %v504 = vsel %vm484, %v452, 0
        %v507 = vsel %vm484, %v453, 0
        %509 = vmatprep.subr.mxu0 0.0
        %510 = vmatpush1.msra.mxu0 0.0
        %511 = vmatprep.subr.mxu0 0.0
        %512 = vmatpush1.msra.mxu0 0.0
        %513 = vmatprep.subr.mxu0 0.0
        %514 = vmatpush1.msra.mxu0 0.0
        %515 = vmatprep.subr.mxu0 0.0
        %516 = vmatpush1.msra.mxu0 0.0
        %517 = vmatprep.subr.mxu0 0.0
        %518 = vmatpush1.msra.mxu0 0.0
        %519 = vmatprep.subr.mxu0 0.0
        %520 = vmatpush1.msra.mxu0 0.0
        %521 = vmatprep.subr.mxu0 0.0
        %522 = vmatpush1.msra.mxu0 0.0
        %523 = vmatprep.subr.mxu0 0.0
        %524 = vmatpush1.msra.mxu0 0.0
        %525 = vmatprep.subr.mxu0 0.0
        %526 = vmatpush1.msra.mxu0 0.0
        %527 = vmatprep.subr.mxu0 0.0
        %528 = vmatpush1.msra.mxu0 0.0
        %529 = vmatprep.subr.mxu0 0.0
        %530 = vmatpush1.msra.mxu0 0.0
        %531 = vmatprep.subr.mxu0 0.0
        %532 = vmatpush1.msra.mxu0 0.0
        %533 = vmatprep.subr.mxu0 0.0
        %534 = vmatpush1.msra.mxu0 0.0
        %535 = vmatprep.subr.mxu0 0.0
        %536 = vmatpush1.msra.mxu0 0.0
        %537 = vmatprep.subr.mxu0 %v459
        %538 = vmatpush1.msra.mxu0 %v458
        %539 = vmatprep.subr.mxu0 %v455
        %540 = vmatpush1.msra.mxu0 %v454
        %541 = vmatprep.subr.mxu0 0.0
        %542 = vmatpush2.msra.mxu0 0.0
        %543 = vmatprep.subr.mxu0 0.0
        %544 = vmatpush2.msra.mxu0 0.0
        %545 = vmatprep.subr.mxu0 0.0
        %546 = vmatpush2.msra.mxu0 0.0
        %547 = vmatprep.subr.mxu0 0.0
        %548 = vmatpush2.msra.mxu0 0.0
        %549 = vmatprep.subr.mxu0 0.0
        %550 = vmatpush2.msra.mxu0 0.0
        %551 = vmatprep.subr.mxu0 0.0
        %552 = vmatpush2.msra.mxu0 0.0
        %553 = vmatprep.subr.mxu0 0.0
        %554 = vmatpush2.msra.mxu0 0.0
        %555 = vmatprep.subr.mxu0 0.0
        %556 = vmatpush2.msra.mxu0 0.0
        %557 = vmatprep.subr.mxu0 0.0
        %558 = vmatpush2.msra.mxu0 0.0
        %559 = vmatprep.subr.mxu0 0.0
        %560 = vmatpush2.msra.mxu0 0.0
        %561 = vmatprep.subr.mxu0 0.0
        %562 = vmatpush2.msra.mxu0 0.0
        %563 = vmatprep.subr.mxu0 0.0
        %564 = vmatpush2.msra.mxu0 0.0
        %565 = vmatprep.subr.mxu0 0.0
        %566 = vmatpush2.msra.mxu0 0.0
        %567 = vmatprep.subr.mxu0 0.0
        %568 = vmatpush2.msra.mxu0 0.0
        %569 = vmatprep.subr.mxu0 0.0
        %570 = vmatpush2.msra.mxu0 0.0
        %571 = vmatprep.subr.mxu0 0.0
        %572 = vmatpush2.msra.mxu0 0.0
        %573 = vmatprep.mubr.f32.mxu0 0.0
        %574 = vmatmul.mubr.f32.gmra.mxu0 %v486
        %v575 = vpop.f32.mrf.mxu0
        %v576 = vadd.f32 %v467, %v575
        %v577 = vpop.f32.mrf.mxu0
        %v578 = vadd.f32 %v471, %v577
        %579 = vmatprep.mubr.f32.mxu0 0.0
        %580 = vmatmul.mubr.f32.gmra.mxu0 %v489
        %v581 = vpop.f32.mrf.mxu0
        %v582 = vadd.f32 %v467, %v581
        %v583 = vpop.f32.mrf.mxu0
        %v584 = vadd.f32 %v471, %v583
        %585 = vmatprep.mubr.f32.mxu0 0.0
        %586 = vmatmul.mubr.f32.gmra.mxu0 %v492
        %v587 = vpop.f32.mrf.mxu0
        %v588 = vadd.f32 %v467, %v587
        %v589 = vpop.f32.mrf.mxu0
        %v590 = vadd.f32 %v471, %v589
        %591 = vmatprep.mubr.f32.mxu0 0.0
        %592 = vmatmul.mubr.f32.gmra.mxu0 %v495
        %v593 = vpop.f32.mrf.mxu0
        %v594 = vadd.f32 %v467, %v593
        %v595 = vpop.f32.mrf.mxu0
        %v596 = vadd.f32 %v471, %v595
        %597 = vmatprep.mubr.f32.mxu0 0.0
        %598 = vmatmul.mubr.f32.gmra.mxu0 %v498
        %v599 = vpop.f32.mrf.mxu0
        %v600 = vadd.f32 %v467, %v599
        %v601 = vpop.f32.mrf.mxu0
        %v602 = vadd.f32 %v471, %v601
        %603 = vmatprep.mubr.f32.mxu0 0.0
        %604 = vmatmul.mubr.f32.gmra.mxu0 %v501
        %v605 = vpop.f32.mrf.mxu0
        %v606 = vadd.f32 %v467, %v605
        %v607 = vpop.f32.mrf.mxu0
        %v608 = vadd.f32 %v471, %v607
        %609 = vmatprep.mubr.f32.mxu0 0.0
        %610 = vmatmul.mubr.f32.gmra.mxu0 %v504
        %v611 = vpop.f32.mrf.mxu0
        %v612 = vadd.f32 %v467, %v611
        %v613 = vpop.f32.mrf.mxu0
        %v614 = vadd.f32 %v471, %v613
        %615 = vmatprep.mubr.f32.mxu0 0.0
        %616 = vmatmul.mubr.f32.gmra.mxu0 %v507
        %v617 = vpop.f32.mrf.mxu0
        %v618 = vadd.f32 %v467, %v617
        %v619 = vpop.f32.mrf.mxu0
        %v620 = vadd.f32 %v471, %v619
        %621 = vdwg.mxu0
        %622 = vmatprep.subr.mxu0 0.0
        %623 = vmatpush1.msra.mxu0 0.0
        %624 = vmatprep.subr.mxu0 0.0
        %625 = vmatpush1.msra.mxu0 0.0
        %626 = vmatprep.subr.mxu0 0.0
        %627 = vmatpush1.msra.mxu0 0.0
        %628 = vmatprep.subr.mxu0 0.0
        %629 = vmatpush1.msra.mxu0 0.0
        %630 = vmatprep.subr.mxu0 0.0
        %631 = vmatpush1.msra.mxu0 0.0
        %632 = vmatprep.subr.mxu0 0.0
        %633 = vmatpush1.msra.mxu0 0.0
        %634 = vmatprep.subr.mxu0 0.0
        %635 = vmatpush1.msra.mxu0 0.0
        %636 = vmatprep.subr.mxu0 0.0
        %637 = vmatpush1.msra.mxu0 0.0
        %638 = vmatprep.subr.mxu0 0.0
        %639 = vmatpush1.msra.mxu0 0.0
        %640 = vmatprep.subr.mxu0 0.0
        %641 = vmatpush1.msra.mxu0 0.0
        %642 = vmatprep.subr.mxu0 0.0
        %643 = vmatpush1.msra.mxu0 0.0
        %644 = vmatprep.subr.mxu0 0.0
        %645 = vmatpush1.msra.mxu0 0.0
        %646 = vmatprep.subr.mxu0 0.0
        %647 = vmatpush1.msra.mxu0 0.0
        %648 = vmatprep.subr.mxu0 0.0
        %649 = vmatpush1.msra.mxu0 0.0
        %650 = vmatprep.subr.mxu0 %v461
        %651 = vmatpush1.msra.mxu0 %v460
        %652 = vmatprep.subr.mxu0 %v457
        %653 = vmatpush1.msra.mxu0 %v456
        %654 = vmatprep.subr.mxu0 0.0
        %655 = vmatpush2.msra.mxu0 0.0
        %656 = vmatprep.subr.mxu0 0.0
        %657 = vmatpush2.msra.mxu0 0.0
        %658 = vmatprep.subr.mxu0 0.0
        %659 = vmatpush2.msra.mxu0 0.0
        %660 = vmatprep.subr.mxu0 0.0
        %661 = vmatpush2.msra.mxu0 0.0
        %662 = vmatprep.subr.mxu0 0.0
        %663 = vmatpush2.msra.mxu0 0.0
        %664 = vmatprep.subr.mxu0 0.0
        %665 = vmatpush2.msra.mxu0 0.0
        %666 = vmatprep.subr.mxu0 0.0
        %667 = vmatpush2.msra.mxu0 0.0
        %668 = vmatprep.subr.mxu0 0.0
        %669 = vmatpush2.msra.mxu0 0.0
        %670 = vmatprep.subr.mxu0 0.0
        %671 = vmatpush2.msra.mxu0 0.0
        %672 = vmatprep.subr.mxu0 0.0
        %673 = vmatpush2.msra.mxu0 0.0
        %674 = vmatprep.subr.mxu0 0.0
        %675 = vmatpush2.msra.mxu0 0.0
        %676 = vmatprep.subr.mxu0 0.0
        %677 = vmatpush2.msra.mxu0 0.0
        %678 = vmatprep.subr.mxu0 0.0
        %679 = vmatpush2.msra.mxu0 0.0
        %680 = vmatprep.subr.mxu0 0.0
        %681 = vmatpush2.msra.mxu0 0.0
        %682 = vmatprep.subr.mxu0 0.0
        %683 = vmatpush2.msra.mxu0 0.0
        %684 = vmatprep.subr.mxu0 0.0
        %685 = vmatpush2.msra.mxu0 0.0
        %686 = vmatprep.mubr.f32.mxu0 0.0
        %687 = vmatmul.mubr.f32.gmra.mxu0 %v486
        %v688 = vpop.f32.mrf.mxu0
        %v689 = vadd.f32 %v475, %v688
        %v690 = vpop.f32.mrf.mxu0
        %v691 = vadd.f32 %v479, %v690
        %692 = vmatprep.mubr.f32.mxu0 0.0
        %693 = vmatmul.mubr.f32.gmra.mxu0 %v489
        %v694 = vpop.f32.mrf.mxu0
        %v695 = vadd.f32 %v475, %v694
        %v696 = vpop.f32.mrf.mxu0
        %v697 = vadd.f32 %v479, %v696
        %698 = vmatprep.mubr.f32.mxu0 0.0
        %699 = vmatmul.mubr.f32.gmra.mxu0 %v492
        %v700 = vpop.f32.mrf.mxu0
        %v701 = vadd.f32 %v475, %v700
        %v702 = vpop.f32.mrf.mxu0
        %v703 = vadd.f32 %v479, %v702
        %704 = vmatprep.mubr.f32.mxu0 0.0
        %705 = vmatmul.mubr.f32.gmra.mxu0 %v495
        %v706 = vpop.f32.mrf.mxu0
        %v707 = vadd.f32 %v475, %v706
        %v708 = vpop.f32.mrf.mxu0
        %v709 = vadd.f32 %v479, %v708
        %710 = vmatprep.mubr.f32.mxu0 0.0
        %711 = vmatmul.mubr.f32.gmra.mxu0 %v498
        %v712 = vpop.f32.mrf.mxu0
        %v713 = vadd.f32 %v475, %v712
        %v714 = vpop.f32.mrf.mxu0
        %v715 = vadd.f32 %v479, %v714
        %716 = vmatprep.mubr.f32.mxu0 0.0
        %717 = vmatmul.mubr.f32.gmra.mxu0 %v501
        %v718 = vpop.f32.mrf.mxu0
        %v719 = vadd.f32 %v475, %v718
        %v720 = vpop.f32.mrf.mxu0
        %v721 = vadd.f32 %v479, %v720
        %722 = vmatprep.mubr.f32.mxu0 0.0
        %723 = vmatmul.mubr.f32.gmra.mxu0 %v504
        %v724 = vpop.f32.mrf.mxu0
        %v725 = vadd.f32 %v475, %v724
        %v726 = vpop.f32.mrf.mxu0
        %v727 = vadd.f32 %v479, %v726
        %728 = vmatprep.mubr.f32.mxu0 0.0
        %729 = vmatmul.mubr.f32.gmra.mxu0 %v507
        %v730 = vpop.f32.mrf.mxu0
        %v731 = vadd.f32 %v475, %v730
        %v732 = vpop.f32.mrf.mxu0
        %v733 = vadd.f32 %v479, %v732
        %734 = vdwg.mxu0
        %v735 = vld [vmem:[%s445] sm:$0xff]
        %v736 = vld [vmem:[%s4] sm:$0xff]
        %v737 = vld [vmem:[%s4 + $0x8] sm:$0xff]
        %v738 = vld [vmem:[%s4 + $0x10] sm:$0xff]
        %v739 = vld [vmem:[%s4 + $0x18] sm:$0xff]
        %v740 = vld [vmem:[%s5] sm:$0x3]
        %v742 = vlaneseq
        %v743 = vshrl.u32 %v742, 7
        %v744 = vsub.s32 0, %v743
        %v745 = vrot.slane %v740, %v744
        %v746 = vlaneseq
        %v747 = vshrl.u32 %v746, 7
        %v748 = vsub.s32 1, %v747
        %v749 = vrot.slane %v740, %v748
        %v753 = vsel %vm484, %v735, 0
        %755 = vmatprep.subr.mxu0 0.0
        %756 = vmatpush1.msra.mxu0 0.0
        %757 = vmatprep.subr.mxu0 0.0
        %758 = vmatpush1.msra.mxu0 0.0
        %759 = vmatprep.subr.mxu0 0.0
        %760 = vmatpush1.msra.mxu0 0.0
        %761 = vmatprep.subr.mxu0 0.0
        %762 = vmatpush1.msra.mxu0 0.0
        %763 = vmatprep.subr.mxu0 0.0
        %764 = vmatpush1.msra.mxu0 0.0
        %765 = vmatprep.subr.mxu0 0.0
        %766 = vmatpush1.msra.mxu0 0.0
        %767 = vmatprep.subr.mxu0 0.0
        %768 = vmatpush1.msra.mxu0 0.0
        %769 = vmatprep.subr.mxu0 0.0
        %770 = vmatpush1.msra.mxu0 0.0
        %771 = vmatprep.subr.mxu0 0.0
        %772 = vmatpush1.msra.mxu0 0.0
        %773 = vmatprep.subr.mxu0 0.0
        %774 = vmatpush1.msra.mxu0 0.0
        %775 = vmatprep.subr.mxu0 0.0
        %776 = vmatpush1.msra.mxu0 0.0
        %777 = vmatprep.subr.mxu0 0.0
        %778 = vmatpush1.msra.mxu0 0.0
        %779 = vmatprep.subr.mxu0 0.0
        %780 = vmatpush1.msra.mxu0 0.0
        %781 = vmatprep.subr.mxu0 0.0
        %782 = vmatpush1.msra.mxu0 0.0
        %783 = vmatprep.subr.mxu0 %v739
        %784 = vmatpush1.msra.mxu0 %v738
        %785 = vmatprep.subr.mxu0 %v737
        %786 = vmatpush1.msra.mxu0 %v736
        %787 = vmatprep.subr.mxu0 0.0
        %788 = vmatpush2.msra.mxu0 0.0
        %789 = vmatprep.subr.mxu0 0.0
        %790 = vmatpush2.msra.mxu0 0.0
        %791 = vmatprep.subr.mxu0 0.0
        %792 = vmatpush2.msra.mxu0 0.0
        %793 = vmatprep.subr.mxu0 0.0
        %794 = vmatpush2.msra.mxu0 0.0
        %795 = vmatprep.subr.mxu0 0.0
        %796 = vmatpush2.msra.mxu0 0.0
        %797 = vmatprep.subr.mxu0 0.0
        %798 = vmatpush2.msra.mxu0 0.0
        %799 = vmatprep.subr.mxu0 0.0
        %800 = vmatpush2.msra.mxu0 0.0
        %801 = vmatprep.subr.mxu0 0.0
        %802 = vmatpush2.msra.mxu0 0.0
        %803 = vmatprep.subr.mxu0 0.0
        %804 = vmatpush2.msra.mxu0 0.0
        %805 = vmatprep.subr.mxu0 0.0
        %806 = vmatpush2.msra.mxu0 0.0
        %807 = vmatprep.subr.mxu0 0.0
        %808 = vmatpush2.msra.mxu0 0.0
        %809 = vmatprep.subr.mxu0 0.0
        %810 = vmatpush2.msra.mxu0 0.0
        %811 = vmatprep.subr.mxu0 0.0
        %812 = vmatpush2.msra.mxu0 0.0
        %813 = vmatprep.subr.mxu0 0.0
        %814 = vmatpush2.msra.mxu0 0.0
        %815 = vmatprep.subr.mxu0 0.0
        %816 = vmatpush2.msra.mxu0 0.0
        %817 = vmatprep.subr.mxu0 0.0
        %818 = vmatpush2.msra.mxu0 0.0
        %819 = vmatprep.mubr.f32.mxu0 0.0
        %820 = vmatmul.mubr.f32.gmra.mxu0 %v753
        %v821 = vpop.f32.mrf.mxu0
        %v822 = vadd.f32 %v745, %v821
        %v823 = vpop.f32.mrf.mxu0
        %v824 = vadd.f32 %v749, %v823
        %825 = vdwg.mxu0
        %v826 = vld [vmem:[#allocation2] sm:$0xff]
        %v827 = vld [vmem:[#allocation2 + $0x8] sm:$0xff]
        %v828 = vld [vmem:[#allocation2 + $0x10] sm:$0xff]
        %v829 = vld [vmem:[#allocation2 + $0x18] sm:$0xff]
        %v830 = vld [vmem:[#allocation2 + $0x20] sm:$0xff]
        %v831 = vld [vmem:[#allocation2 + $0x28] sm:$0xff]
        %v832 = vld [vmem:[#allocation2 + $0x30] sm:$0xff]
        %v833 = vld [vmem:[#allocation2 + $0x38] sm:$0xff]
        %v834 = vld [vmem:[#allocation2 + $0x40] sm:$0xff]
        %v835 = vld [vmem:[#allocation2 + $0x48] sm:$0xff]
        %v836 = vld [vmem:[#allocation2 + $0x50] sm:$0xff]
        %v837 = vld [vmem:[#allocation2 + $0x58] sm:$0xff]
        %v838 = vld [vmem:[#allocation2 + $0x60] sm:$0xff]
        %v839 = vld [vmem:[#allocation2 + $0x68] sm:$0xff]
        %v840 = vld [vmem:[#allocation2 + $0x70] sm:$0xff]
        %v841 = vld [vmem:[#allocation2 + $0x78] sm:$0xff]
        %v842 = vld [vmem:[#allocation2 + $0x80] sm:$0xff]
        %v843 = vld [vmem:[#allocation2 + $0x88] sm:$0xff]
        %v844 = vld [vmem:[#allocation2 + $0x90] sm:$0xff]
        %v845 = vld [vmem:[#allocation2 + $0x98] sm:$0xff]
        %v846 = vld [vmem:[#allocation2 + $0xa0] sm:$0xff]
        %v847 = vld [vmem:[#allocation2 + $0xa8] sm:$0xff]
        %v848 = vld [vmem:[#allocation2 + $0xb0] sm:$0xff]
        %v849 = vld [vmem:[#allocation2 + $0xb8] sm:$0xff]
        %v850 = vld [vmem:[#allocation2 + $0xc0] sm:$0xff]
        %v851 = vld [vmem:[#allocation2 + $0xc8] sm:$0xff]
        %v852 = vld [vmem:[#allocation2 + $0xd0] sm:$0xff]
        %v853 = vld [vmem:[#allocation2 + $0xd8] sm:$0xff]
        %v854 = vld [vmem:[#allocation2 + $0xe0] sm:$0xff]
        %v855 = vld [vmem:[#allocation2 + $0xe8] sm:$0xff]
        %v856 = vld [vmem:[#allocation2 + $0xf0] sm:$0xff]
        %v857 = vld [vmem:[#allocation2 + $0xf8] sm:$0xff]
        %v858 = vld [vmem:[#allocation2 + $0x100] sm:$0xff]
        %v859 = vld [vmem:[#allocation2 + $0x108] sm:$0xff]
        %v860 = vld [vmem:[#allocation2 + $0x110] sm:$0xff]
        %v861 = vld [vmem:[#allocation2 + $0x118] sm:$0xff]
        %v862 = vld [vmem:[#allocation2 + $0x120] sm:$0xff]
        %v863 = vld [vmem:[#allocation2 + $0x128] sm:$0xff]
        %v864 = vld [vmem:[#allocation2 + $0x130] sm:$0xff]
        %v865 = vld [vmem:[#allocation2 + $0x138] sm:$0xff]
        %v866 = vld [vmem:[#allocation2 + $0x140] sm:$0xff]
        %v867 = vld [vmem:[#allocation2 + $0x148] sm:$0xff]
        %v868 = vld [vmem:[#allocation2 + $0x150] sm:$0xff]
        %v869 = vld [vmem:[#allocation2 + $0x158] sm:$0xff]
        %v870 = vld [vmem:[#allocation2 + $0x160] sm:$0xff]
        %v871 = vld [vmem:[#allocation2 + $0x168] sm:$0xff]
        %v872 = vld [vmem:[#allocation2 + $0x170] sm:$0xff]
        %v873 = vld [vmem:[#allocation2 + $0x178] sm:$0xff]
        %v874 = vld [vmem:[#allocation2 + $0x180] sm:$0xff]
        %v875 = vld [vmem:[#allocation2 + $0x188] sm:$0xff]
        %v876 = vld [vmem:[#allocation2 + $0x190] sm:$0xff]
        %v877 = vld [vmem:[#allocation2 + $0x198] sm:$0xff]
        %v878 = vld [vmem:[#allocation2 + $0x1a0] sm:$0xff]
        %v879 = vld [vmem:[#allocation2 + $0x1a8] sm:$0xff]
        %v880 = vld [vmem:[#allocation2 + $0x1b0] sm:$0xff]
        %v881 = vld [vmem:[#allocation2 + $0x1b8] sm:$0xff]
        %v882 = vld [vmem:[#allocation2 + $0x1c0] sm:$0xff]
        %v883 = vld [vmem:[#allocation2 + $0x1c8] sm:$0xff]
        %v884 = vld [vmem:[#allocation2 + $0x1d0] sm:$0xff]
        %v885 = vld [vmem:[#allocation2 + $0x1d8] sm:$0xff]
        %v886 = vld [vmem:[#allocation2 + $0x1e0] sm:$0xff]
        %v887 = vld [vmem:[#allocation2 + $0x1e8] sm:$0xff]
        %v888 = vld [vmem:[#allocation2 + $0x1f0] sm:$0xff]
        %v889 = vld [vmem:[#allocation2 + $0x1f8] sm:$0xff]
        %890 = vmatprep.subr.mxu0 %v857
        %891 = vmatpush1.msra.mxu0 %v856
        %892 = vmatprep.subr.mxu0 %v855
        %893 = vmatpush1.msra.mxu0 %v854
        %894 = vmatprep.subr.mxu0 %v853
        %895 = vmatpush1.msra.mxu0 %v852
        %896 = vmatprep.subr.mxu0 %v851
        %897 = vmatpush1.msra.mxu0 %v850
        %898 = vmatprep.subr.mxu0 %v849
        %899 = vmatpush1.msra.mxu0 %v848
        %900 = vmatprep.subr.mxu0 %v847
        %901 = vmatpush1.msra.mxu0 %v846
        %902 = vmatprep.subr.mxu0 %v845
        %903 = vmatpush1.msra.mxu0 %v844
        %904 = vmatprep.subr.mxu0 %v843
        %905 = vmatpush1.msra.mxu0 %v842
        %906 = vmatprep.subr.mxu0 %v841
        %907 = vmatpush1.msra.mxu0 %v840
        %908 = vmatprep.subr.mxu0 %v839
        %909 = vmatpush1.msra.mxu0 %v838
        %910 = vmatprep.subr.mxu0 %v837
        %911 = vmatpush1.msra.mxu0 %v836
        %912 = vmatprep.subr.mxu0 %v835
        %913 = vmatpush1.msra.mxu0 %v834
        %914 = vmatprep.subr.mxu0 %v833
        %915 = vmatpush1.msra.mxu0 %v832
        %916 = vmatprep.subr.mxu0 %v831
        %917 = vmatpush1.msra.mxu0 %v830
        %918 = vmatprep.subr.mxu0 %v829
        %919 = vmatpush1.msra.mxu0 %v828
        %920 = vmatprep.subr.mxu0 %v827
        %921 = vmatpush1.msra.mxu0 %v826
        %922 = vmatprep.subr.mxu0 %v889
        %923 = vmatpush2.msra.mxu0 %v888
        %924 = vmatprep.subr.mxu0 %v887
        %925 = vmatpush2.msra.mxu0 %v886
        %926 = vmatprep.subr.mxu0 %v885
        %927 = vmatpush2.msra.mxu0 %v884
        %928 = vmatprep.subr.mxu0 %v883
        %929 = vmatpush2.msra.mxu0 %v882
        %930 = vmatprep.subr.mxu0 %v881
        %931 = vmatpush2.msra.mxu0 %v880
        %932 = vmatprep.subr.mxu0 %v879
        %933 = vmatpush2.msra.mxu0 %v878
        %934 = vmatprep.subr.mxu0 %v877
        %935 = vmatpush2.msra.mxu0 %v876
        %936 = vmatprep.subr.mxu0 %v875
        %937 = vmatpush2.msra.mxu0 %v874
        %938 = vmatprep.subr.mxu0 %v873
        %939 = vmatpush2.msra.mxu0 %v872
        %940 = vmatprep.subr.mxu0 %v871
        %941 = vmatpush2.msra.mxu0 %v870
        %942 = vmatprep.subr.mxu0 %v869
        %943 = vmatpush2.msra.mxu0 %v868
        %944 = vmatprep.subr.mxu0 %v867
        %945 = vmatpush2.msra.mxu0 %v866
        %946 = vmatprep.subr.mxu0 %v865
        %947 = vmatpush2.msra.mxu0 %v864
        %948 = vmatprep.subr.mxu0 %v863
        %949 = vmatpush2.msra.mxu0 %v862
        %950 = vmatprep.subr.mxu0 %v861
        %951 = vmatpush2.msra.mxu0 %v860
        %952 = vmatprep.subr.mxu0 %v859
        %953 = vmatpush2.msra.mxu0 %v858
        %954 = vmatprep.mubr.f32.mxu0 %v578
        %955 = vmatmul.mubr.f32.gmra.mxu0 %v576
        %v956 = vpop.f32.mrf.mxu0
        %v957 = vadd.f32 0.0, %v956
        %v958 = vpop.f32.mrf.mxu0
        %v959 = vadd.f32 0.0, %v958
        %960 = vmatprep.mubr.f32.mxu0 %v584
        %961 = vmatmul.mubr.f32.gmra.mxu0 %v582
        %v962 = vpop.f32.mrf.mxu0
        %v963 = vadd.f32 0.0, %v962
        %v964 = vpop.f32.mrf.mxu0
        %v965 = vadd.f32 0.0, %v964
        %966 = vmatprep.mubr.f32.mxu0 %v590
        %967 = vmatmul.mubr.f32.gmra.mxu0 %v588
        %v968 = vpop.f32.mrf.mxu0
        %v969 = vadd.f32 0.0, %v968
        %v970 = vpop.f32.mrf.mxu0
        %v971 = vadd.f32 0.0, %v970
        %972 = vmatprep.mubr.f32.mxu0 %v596
        %973 = vmatmul.mubr.f32.gmra.mxu0 %v594
        %v974 = vpop.f32.mrf.mxu0
        %v975 = vadd.f32 0.0, %v974
        %v976 = vpop.f32.mrf.mxu0
        %v977 = vadd.f32 0.0, %v976
        %978 = vmatprep.mubr.f32.mxu0 %v602
        %979 = vmatmul.mubr.f32.gmra.mxu0 %v600
        %v980 = vpop.f32.mrf.mxu0
        %v981 = vadd.f32 0.0, %v980
        %v982 = vpop.f32.mrf.mxu0
        %v983 = vadd.f32 0.0, %v982
        %984 = vmatprep.mubr.f32.mxu0 %v608
        %985 = vmatmul.mubr.f32.gmra.mxu0 %v606
        %v986 = vpop.f32.mrf.mxu0
        %v987 = vadd.f32 0.0, %v986
        %v988 = vpop.f32.mrf.mxu0
        %v989 = vadd.f32 0.0, %v988
        %990 = vmatprep.mubr.f32.mxu0 %v614
        %991 = vmatmul.mubr.f32.gmra.mxu0 %v612
        %v992 = vpop.f32.mrf.mxu0
        %v993 = vadd.f32 0.0, %v992
        %v994 = vpop.f32.mrf.mxu0
        %v995 = vadd.f32 0.0, %v994
        %996 = vmatprep.mubr.f32.mxu0 %v620
        %997 = vmatmul.mubr.f32.gmra.mxu0 %v618
        %v998 = vpop.f32.mrf.mxu0
        %v999 = vadd.f32 0.0, %v998
        %v1000 = vpop.f32.mrf.mxu0
        %v1001 = vadd.f32 0.0, %v1000
        %1002 = vdwg.mxu0
        %v1003 = vld [vmem:[%s6] sm:$0xff]
        %v1004 = vld [vmem:[%s6 + $0x8] sm:$0xff]
        %v1005 = vmul.f32 %v576, %v1003
        %v1006 = vmul.f32 %v578, %v1004
        %v1007 = vmul.f32 %v582, %v1003
        %v1008 = vmul.f32 %v584, %v1004
        %v1009 = vmul.f32 %v588, %v1003
        %v1010 = vmul.f32 %v590, %v1004
        %v1011 = vmul.f32 %v594, %v1003
        %v1012 = vmul.f32 %v596, %v1004
        %v1013 = vmul.f32 %v600, %v1003
        %v1014 = vmul.f32 %v602, %v1004
        %v1015 = vmul.f32 %v606, %v1003
        %v1016 = vmul.f32 %v608, %v1004
        %v1017 = vmul.f32 %v612, %v1003
        %v1018 = vmul.f32 %v614, %v1004
        %v1019 = vmul.f32 %v618, %v1003
        %v1020 = vmul.f32 %v620, %v1004
        %v1021 = vld [vmem:[%s7] sm:$0xff]
        %v1022 = vld [vmem:[%s7 + $0x8] sm:$0xff]
        %v1023 = vmul.f32 %v957, %v1021
        %v1024 = vmul.f32 %v959, %v1022
        %v1025 = vmul.f32 %v963, %v1021
        %v1026 = vmul.f32 %v965, %v1022
        %v1027 = vmul.f32 %v969, %v1021
        %v1028 = vmul.f32 %v971, %v1022
        %v1029 = vmul.f32 %v975, %v1021
        %v1030 = vmul.f32 %v977, %v1022
        %v1031 = vmul.f32 %v981, %v1021
        %v1032 = vmul.f32 %v983, %v1022
        %v1033 = vmul.f32 %v987, %v1021
        %v1034 = vmul.f32 %v989, %v1022
        %v1035 = vmul.f32 %v993, %v1021
        %v1036 = vmul.f32 %v995, %v1022
        %v1037 = vmul.f32 %v999, %v1021
        %v1038 = vmul.f32 %v1001, %v1022
        %v1039 = vadd.f32 %v1005, %v1023
        %v1040 = vadd.f32 %v1006, %v1024
        %v1041 = vadd.f32 %v1007, %v1025
        %v1042 = vadd.f32 %v1008, %v1026
        %v1043 = vadd.f32 %v1009, %v1027
        %v1044 = vadd.f32 %v1010, %v1028
        %v1045 = vadd.f32 %v1011, %v1029
        %v1046 = vadd.f32 %v1012, %v1030
        %v1047 = vadd.f32 %v1013, %v1031
        %v1048 = vadd.f32 %v1014, %v1032
        %v1049 = vadd.f32 %v1015, %v1033
        %v1050 = vadd.f32 %v1016, %v1034
        %v1051 = vadd.f32 %v1017, %v1035
        %v1052 = vadd.f32 %v1018, %v1036
        %v1053 = vadd.f32 %v1019, %v1037
        %v1054 = vadd.f32 %v1020, %v1038
        %v1057 = vcombine.low %v822, %v824
        %v1058 = vcombine.high %v822, %v824
        %v1060 = vunpack.c.l.s4 1966171168
        %v1061 = vunpack.c.0.s8 %v1060
        %v1062 = vlaneseq
        %v1063 = vshrl.u32 %v1062, 7
        %v1064 = vsub.s32 %v1061, %v1063
        %v1065 = vrot.slane %v1057, %v1064
        %v1067 = vunpack.c.l.s4 1966171168
        %v1068 = vunpack.c.0.s8 %v1067
        %v1069 = vlaneseq
        %v1070 = vshrl.u32 %v1069, 7
        %v1071 = vsub.s32 %v1068, %v1070
        %v1072 = vrot.slane %v1058, %v1071
        %v1073 = vcombine.high %v1065, %v1065
        %v1074 = vcombine.high %v1072, %v1072
        %v1076 = vunpack.c.l.s4 1966171168
        %v1077 = vunpack.c.0.s8 %v1076
        %v1078 = vlaneseq
        %v1079 = vshrl.u32 %v1078, 7
        %v1080 = vsub.s32 %v1077, %v1079
        %v1081 = vrot.slane %v1065, %v1080
        %v1083 = vunpack.c.l.s4 1966171168
        %v1084 = vunpack.c.0.s8 %v1083
        %v1085 = vlaneseq
        %v1086 = vshrl.u32 %v1085, 7
        %v1087 = vsub.s32 %v1084, %v1086
        %v1088 = vrot.slane %v1072, %v1087
        %v1090 = vunpack.c.l.s4 1966171168
        %v1091 = vunpack.c.0.s8 %v1090
        %v1092 = vlaneseq
        %v1093 = vshrl.u32 %v1092, 7
        %v1094 = vsub.s32 %v1091, %v1093
        %v1095 = vrot.slane %v1073, %v1094
        %v1097 = vunpack.c.l.s4 1966171168
        %v1098 = vunpack.c.0.s8 %v1097
        %v1099 = vlaneseq
        %v1100 = vshrl.u32 %v1099, 7
        %v1101 = vsub.s32 %v1098, %v1100
        %v1102 = vrot.slane %v1074, %v1101
        %v1103 = vcombine.high %v1081, %v1081
        %v1104 = vcombine.high %v1088, %v1088
        %v1105 = vcombine.high %v1095, %v1095
        %v1106 = vcombine.high %v1102, %v1102
        %v1107 = vlaneseq
        %v1108 = vshrl.u32 %v1107, 7
        %v1109 = vsub.s32 0, %v1108
        %v1110 = vrot.slane %v1081, %v1109
        %v1111 = vlaneseq
        %v1112 = vshrl.u32 %v1111, 7
        %v1113 = vsub.s32 1, %v1112
        %v1114 = vrot.slane %v1081, %v1113
        %v1115 = vlaneseq
        %v1116 = vshrl.u32 %v1115, 7
        %v1117 = vsub.s32 0, %v1116
        %v1118 = vrot.slane %v1095, %v1117
        %v1119 = vlaneseq
        %v1120 = vshrl.u32 %v1119, 7
        %v1121 = vsub.s32 1, %v1120
        %v1122 = vrot.slane %v1095, %v1121
        %v1123 = vlaneseq
        %v1124 = vshrl.u32 %v1123, 7
        %v1125 = vsub.s32 0, %v1124
        %v1126 = vrot.slane %v1103, %v1125
        %v1127 = vlaneseq
        %v1128 = vshrl.u32 %v1127, 7
        %v1129 = vsub.s32 1, %v1128
        %v1130 = vrot.slane %v1103, %v1129
        %v1131 = vlaneseq
        %v1132 = vshrl.u32 %v1131, 7
        %v1133 = vsub.s32 0, %v1132
        %v1134 = vrot.slane %v1105, %v1133
        %v1135 = vlaneseq
        %v1136 = vshrl.u32 %v1135, 7
        %v1137 = vsub.s32 1, %v1136
        %v1138 = vrot.slane %v1105, %v1137
        %v1139 = vlaneseq
        %v1140 = vshrl.u32 %v1139, 7
        %v1141 = vsub.s32 0, %v1140
        %v1142 = vrot.slane %v1088, %v1141
        %v1143 = vlaneseq
        %v1144 = vshrl.u32 %v1143, 7
        %v1145 = vsub.s32 1, %v1144
        %v1146 = vrot.slane %v1088, %v1145
        %v1147 = vlaneseq
        %v1148 = vshrl.u32 %v1147, 7
        %v1149 = vsub.s32 0, %v1148
        %v1150 = vrot.slane %v1102, %v1149
        %v1151 = vlaneseq
        %v1152 = vshrl.u32 %v1151, 7
        %v1153 = vsub.s32 1, %v1152
        %v1154 = vrot.slane %v1102, %v1153
        %v1155 = vlaneseq
        %v1156 = vshrl.u32 %v1155, 7
        %v1157 = vsub.s32 0, %v1156
        %v1158 = vrot.slane %v1104, %v1157
        %v1159 = vlaneseq
        %v1160 = vshrl.u32 %v1159, 7
        %v1161 = vsub.s32 1, %v1160
        %v1162 = vrot.slane %v1104, %v1161
        %v1163 = vlaneseq
        %v1164 = vshrl.u32 %v1163, 7
        %v1165 = vsub.s32 0, %v1164
        %v1166 = vrot.slane %v1106, %v1165
        %v1167 = vlaneseq
        %v1168 = vshrl.u32 %v1167, 7
        %v1169 = vsub.s32 1, %v1168
        %v1170 = vrot.slane %v1106, %v1169
        %v1187 = vmul.f32 %v1039, %v1110
        %v1188 = vmul.f32 %v1040, %v1114
        %v1189 = vmul.f32 %v1041, %v1118
        %v1190 = vmul.f32 %v1042, %v1122
        %v1191 = vmul.f32 %v1043, %v1126
        %v1192 = vmul.f32 %v1044, %v1130
        %v1193 = vmul.f32 %v1045, %v1134
        %v1194 = vmul.f32 %v1046, %v1138
        %v1195 = vmul.f32 %v1047, %v1142
        %v1196 = vmul.f32 %v1048, %v1146
        %v1197 = vmul.f32 %v1049, %v1150
        %v1198 = vmul.f32 %v1050, %v1154
        %v1199 = vmul.f32 %v1051, %v1158
        %v1200 = vmul.f32 %v1052, %v1162
        %v1201 = vmul.f32 %v1053, %v1166
        %v1202 = vmul.f32 %v1054, %v1170
        %v1203 = vld [vmem:[%s9] sm:$0xff]
        %v1204 = vld [vmem:[%s9 + $0x8] sm:$0xff]
        %v1205 = vld [vmem:[%s9 + $0x10] sm:$0xff]
        %v1206 = vld [vmem:[%s9 + $0x18] sm:$0xff]
        %v1207 = vld [vmem:[%s9 + $0x20] sm:$0xff]
        %v1208 = vld [vmem:[%s9 + $0x28] sm:$0xff]
        %v1209 = vld [vmem:[%s9 + $0x30] sm:$0xff]
        %v1210 = vld [vmem:[%s9 + $0x38] sm:$0xff]
        %v1211 = vld [vmem:[%s9 + $0x40] sm:$0xff]
        %v1212 = vld [vmem:[%s9 + $0x48] sm:$0xff]
        %v1213 = vld [vmem:[%s9 + $0x50] sm:$0xff]
        %v1214 = vld [vmem:[%s9 + $0x58] sm:$0xff]
        %v1215 = vld [vmem:[%s9 + $0x60] sm:$0xff]
        %v1216 = vld [vmem:[%s9 + $0x68] sm:$0xff]
        %v1217 = vld [vmem:[%s9 + $0x70] sm:$0xff]
        %v1218 = vld [vmem:[%s9 + $0x78] sm:$0xff]
        %v1219 = vld [vmem:[%s9 + $0x80] sm:$0xff]
        %v1220 = vld [vmem:[%s9 + $0x88] sm:$0xff]
        %v1221 = vld [vmem:[%s9 + $0x90] sm:$0xff]
        %v1222 = vld [vmem:[%s9 + $0x98] sm:$0xff]
        %v1223 = vld [vmem:[%s9 + $0xa0] sm:$0xff]
        %v1224 = vld [vmem:[%s9 + $0xa8] sm:$0xff]
        %v1225 = vld [vmem:[%s9 + $0xb0] sm:$0xff]
        %v1226 = vld [vmem:[%s9 + $0xb8] sm:$0xff]
        %v1227 = vld [vmem:[%s9 + $0xc0] sm:$0xff]
        %v1228 = vld [vmem:[%s9 + $0xc8] sm:$0xff]
        %v1229 = vld [vmem:[%s9 + $0xd0] sm:$0xff]
        %v1230 = vld [vmem:[%s9 + $0xd8] sm:$0xff]
        %v1231 = vld [vmem:[%s9 + $0xe0] sm:$0xff]
        %v1232 = vld [vmem:[%s9 + $0xe8] sm:$0xff]
        %v1233 = vld [vmem:[%s9 + $0xf0] sm:$0xff]
        %v1234 = vld [vmem:[%s9 + $0xf8] sm:$0xff]
        %1235 = vmatprep.subr.mxu0 0.0
        %1236 = vmatpush1.msra.mxu0 %v1218
        %1237 = vmatprep.subr.mxu0 0.0
        %1238 = vmatpush1.msra.mxu0 %v1217
        %1239 = vmatprep.subr.mxu0 0.0
        %1240 = vmatpush1.msra.mxu0 %v1216
        %1241 = vmatprep.subr.mxu0 0.0
        %1242 = vmatpush1.msra.mxu0 %v1215
        %1243 = vmatprep.subr.mxu0 0.0
        %1244 = vmatpush1.msra.mxu0 %v1214
        %1245 = vmatprep.subr.mxu0 0.0
        %1246 = vmatpush1.msra.mxu0 %v1213
        %1247 = vmatprep.subr.mxu0 0.0
        %1248 = vmatpush1.msra.mxu0 %v1212
        %1249 = vmatprep.subr.mxu0 0.0
        %1250 = vmatpush1.msra.mxu0 %v1211
        %1251 = vmatprep.subr.mxu0 0.0
        %1252 = vmatpush1.msra.mxu0 %v1210
        %1253 = vmatprep.subr.mxu0 0.0
        %1254 = vmatpush1.msra.mxu0 %v1209
        %1255 = vmatprep.subr.mxu0 0.0
        %1256 = vmatpush1.msra.mxu0 %v1208
        %1257 = vmatprep.subr.mxu0 0.0
        %1258 = vmatpush1.msra.mxu0 %v1207
        %1259 = vmatprep.subr.mxu0 0.0
        %1260 = vmatpush1.msra.mxu0 %v1206
        %1261 = vmatprep.subr.mxu0 0.0
        %1262 = vmatpush1.msra.mxu0 %v1205
        %1263 = vmatprep.subr.mxu0 0.0
        %1264 = vmatpush1.msra.mxu0 %v1204
        %1265 = vmatprep.subr.mxu0 0.0
        %1266 = vmatpush1.msra.mxu0 %v1203
        %1267 = vmatprep.subr.mxu0 0.0
        %1268 = vmatpush2.msra.mxu0 %v1234
        %1269 = vmatprep.subr.mxu0 0.0
        %1270 = vmatpush2.msra.mxu0 %v1233
        %1271 = vmatprep.subr.mxu0 0.0
        %1272 = vmatpush2.msra.mxu0 %v1232
        %1273 = vmatprep.subr.mxu0 0.0
        %1274 = vmatpush2.msra.mxu0 %v1231
        %1275 = vmatprep.subr.mxu0 0.0
        %1276 = vmatpush2.msra.mxu0 %v1230
        %1277 = vmatprep.subr.mxu0 0.0
        %1278 = vmatpush2.msra.mxu0 %v1229
        %1279 = vmatprep.subr.mxu0 0.0
        %1280 = vmatpush2.msra.mxu0 %v1228
        %1281 = vmatprep.subr.mxu0 0.0
        %1282 = vmatpush2.msra.mxu0 %v1227
        %1283 = vmatprep.subr.mxu0 0.0
        %1284 = vmatpush2.msra.mxu0 %v1226
        %1285 = vmatprep.subr.mxu0 0.0
        %1286 = vmatpush2.msra.mxu0 %v1225
        %1287 = vmatprep.subr.mxu0 0.0
        %1288 = vmatpush2.msra.mxu0 %v1224
        %1289 = vmatprep.subr.mxu0 0.0
        %1290 = vmatpush2.msra.mxu0 %v1223
        %1291 = vmatprep.subr.mxu0 0.0
        %1292 = vmatpush2.msra.mxu0 %v1222
        %1293 = vmatprep.subr.mxu0 0.0
        %1294 = vmatpush2.msra.mxu0 %v1221
        %1295 = vmatprep.subr.mxu0 0.0
        %1296 = vmatpush2.msra.mxu0 %v1220
        %1297 = vmatprep.subr.mxu0 0.0
        %1298 = vmatpush2.msra.mxu0 %v1219
        %1299 = vmatprep.mubr.f32.mxu0 %v1188
        %1300 = vmatmul.mubr.f32.gmra.mxu0 %v1187
        %v1301 = vpop.f32.mrf.mxu0
        %v1302 = vadd.f32 0.0, %v1301
        %v1303 = vpop.f32.mrf.mxu0
        %1304 = vmatprep.mubr.f32.mxu0 %v1190
        %1305 = vmatmul.mubr.f32.gmra.mxu0 %v1189
        %v1306 = vpop.f32.mrf.mxu0
        %v1307 = vadd.f32 0.0, %v1306
        %v1308 = vpop.f32.mrf.mxu0
        %1309 = vmatprep.mubr.f32.mxu0 %v1192
        %1310 = vmatmul.mubr.f32.gmra.mxu0 %v1191
        %v1311 = vpop.f32.mrf.mxu0
        %v1312 = vadd.f32 0.0, %v1311
        %v1313 = vpop.f32.mrf.mxu0
        %1314 = vmatprep.mubr.f32.mxu0 %v1194
        %1315 = vmatmul.mubr.f32.gmra.mxu0 %v1193
        %v1316 = vpop.f32.mrf.mxu0
        %v1317 = vadd.f32 0.0, %v1316
        %v1318 = vpop.f32.mrf.mxu0
        %1319 = vmatprep.mubr.f32.mxu0 %v1196
        %1320 = vmatmul.mubr.f32.gmra.mxu0 %v1195
        %v1321 = vpop.f32.mrf.mxu0
        %v1322 = vadd.f32 0.0, %v1321
        %v1323 = vpop.f32.mrf.mxu0
        %1324 = vmatprep.mubr.f32.mxu0 %v1198
        %1325 = vmatmul.mubr.f32.gmra.mxu0 %v1197
        %v1326 = vpop.f32.mrf.mxu0
        %v1327 = vadd.f32 0.0, %v1326
        %v1328 = vpop.f32.mrf.mxu0
        %1329 = vmatprep.mubr.f32.mxu0 %v1200
        %1330 = vmatmul.mubr.f32.gmra.mxu0 %v1199
        %v1331 = vpop.f32.mrf.mxu0
        %v1332 = vadd.f32 0.0, %v1331
        %v1333 = vpop.f32.mrf.mxu0
        %1334 = vmatprep.mubr.f32.mxu0 %v1202
        %1335 = vmatmul.mubr.f32.gmra.mxu0 %v1201
        %v1336 = vpop.f32.mrf.mxu0
        %v1337 = vadd.f32 0.0, %v1336
        %v1338 = vpop.f32.mrf.mxu0
        %1339 = vdwg.mxu0
        %v1340 = vmul.f32 %v1302, %v1302
        %v1341 = vmul.f32 %v1307, %v1307
        %v1342 = vmul.f32 %v1312, %v1312
        %v1343 = vmul.f32 %v1317, %v1317
        %v1344 = vmul.f32 %v1322, %v1322
        %v1345 = vmul.f32 %v1327, %v1327
        %v1346 = vmul.f32 %v1332, %v1332
        %v1347 = vmul.f32 %v1337, %v1337
        %v1348 = vmul.f32 %v689, %v689
        %v1349 = vmul.f32 %v691, %v691
        %v1350 = vmul.f32 %v695, %v695
        %v1351 = vmul.f32 %v697, %v697
        %v1352 = vmul.f32 %v701, %v701
        %v1353 = vmul.f32 %v703, %v703
        %v1354 = vmul.f32 %v707, %v707
        %v1355 = vmul.f32 %v709, %v709
        %v1356 = vmul.f32 %v713, %v713
        %v1357 = vmul.f32 %v715, %v715
        %v1358 = vmul.f32 %v719, %v719
        %v1359 = vmul.f32 %v721, %v721
        %v1360 = vmul.f32 %v725, %v725
        %v1361 = vmul.f32 %v727, %v727
        %v1362 = vmul.f32 %v731, %v731
        %v1363 = vmul.f32 %v733, %v733
        %v1364 = vmul.f32 %v1348, %v689
        %v1365 = vmul.f32 %v1349, %v691
        %v1366 = vmul.f32 %v1350, %v695
        %v1367 = vmul.f32 %v1351, %v697
        %v1368 = vmul.f32 %v1352, %v701
        %v1369 = vmul.f32 %v1353, %v703
        %v1370 = vmul.f32 %v1354, %v707
        %v1371 = vmul.f32 %v1355, %v709
        %v1372 = vmul.f32 %v1356, %v713
        %v1373 = vmul.f32 %v1357, %v715
        %v1374 = vmul.f32 %v1358, %v719
        %v1375 = vmul.f32 %v1359, %v721
        %v1376 = vmul.f32 %v1360, %v725
        %v1377 = vmul.f32 %v1361, %v727
        %v1378 = vmul.f32 %v1362, %v731
        %v1379 = vmul.f32 %v1363, %v733
        %v1380 = vand.u32 2147483647, %v1364
        %v1381 = vand.u32 2147483647, %v1365
        %v1382 = vand.u32 2147483647, %v1366
        %v1383 = vand.u32 2147483647, %v1367
        %v1384 = vand.u32 2147483647, %v1368
        %v1385 = vand.u32 2147483647, %v1369
        %v1386 = vand.u32 2147483647, %v1370
        %v1387 = vand.u32 2147483647, %v1371
        %v1388 = vand.u32 2147483647, %v1372
        %v1389 = vand.u32 2147483647, %v1373
        %v1390 = vand.u32 2147483647, %v1374
        %v1391 = vand.u32 2147483647, %v1375
        %v1392 = vand.u32 2147483647, %v1376
        %v1393 = vand.u32 2147483647, %v1377
        %v1394 = vand.u32 2147483647, %v1378
        %v1395 = vand.u32 2147483647, %v1379
        %v1396 = vlaneseq
        %v1397 = vand.u32 %v1396, 127
        %v1398 = vadd.s32 %v1397, 128
        %1399 = vrot.lane.b32.xlu0 %v1380, 127
        %v1400 = vpop.permute.xlu0 %1399
        %1401 = vrot.lane.b32.xlu0 %v1382, 127
        %v1402 = vpop.permute.xlu0 %1401
        %1403 = vrot.lane.b32.xlu0 %v1384, 127
        %v1404 = vpop.permute.xlu0 %1403
        %1405 = vrot.lane.b32.xlu0 %v1386, 127
        %v1406 = vpop.permute.xlu0 %1405
        %1407 = vrot.lane.b32.xlu0 %v1388, 127
        %v1408 = vpop.permute.xlu0 %1407
        %1409 = vrot.lane.b32.xlu0 %v1390, 127
        %v1410 = vpop.permute.xlu0 %1409
        %1411 = vrot.lane.b32.xlu0 %v1392, 127
        %v1412 = vpop.permute.xlu0 %1411
        %1413 = vrot.lane.b32.xlu0 %v1394, 127
        %v1414 = vpop.permute.xlu0 %1413
        %1415 = vrot.lane.b32.xlu0 %v1381, 127
        %v1416 = vpop.permute.xlu0 %1415
        %1417 = vrot.lane.b32.xlu0 %v1383, 127
        %v1418 = vpop.permute.xlu0 %1417
        %1419 = vrot.lane.b32.xlu0 %v1385, 127
        %v1420 = vpop.permute.xlu0 %1419
        %1421 = vrot.lane.b32.xlu0 %v1387, 127
        %v1422 = vpop.permute.xlu0 %1421
        %1423 = vrot.lane.b32.xlu0 %v1389, 127
        %v1424 = vpop.permute.xlu0 %1423
        %1425 = vrot.lane.b32.xlu0 %v1391, 127
        %v1426 = vpop.permute.xlu0 %1425
        %1427 = vrot.lane.b32.xlu0 %v1393, 127
        %v1428 = vpop.permute.xlu0 %1427
        %1429 = vrot.lane.b32.xlu0 %v1395, 127
        %v1430 = vpop.permute.xlu0 %1429
        %vm1431 = vcmp.lt.s32.totalorder %v1397, 127
        %v1432 = vsel %vm1431, %v1400, %v1416
        %v1433 = vsel %vm1431, %v1402, %v1418
        %v1434 = vsel %vm1431, %v1404, %v1420
        %v1435 = vsel %vm1431, %v1406, %v1422
        %v1436 = vsel %vm1431, %v1408, %v1424
        %v1437 = vsel %vm1431, %v1410, %v1426
        %v1438 = vsel %vm1431, %v1412, %v1428
        %v1439 = vsel %vm1431, %v1414, %v1430
        %v1440 = vsel %vm1431, %v1416, %v1400
        %v1441 = vsel %vm1431, %v1418, %v1402
        %v1442 = vsel %vm1431, %v1420, %v1404
        %v1443 = vsel %vm1431, %v1422, %v1406
        %v1444 = vsel %vm1431, %v1424, %v1408
        %v1445 = vsel %vm1431, %v1426, %v1410
        %v1446 = vsel %vm1431, %v1428, %v1412
        %v1447 = vsel %vm1431, %v1430, %v1414
        %1448 = vrot.lane.b32.xlu0 %v1380, 1
        %v1449 = vpop.permute.xlu0 %1448
        %1450 = vrot.lane.b32.xlu0 %v1382, 1
        %v1451 = vpop.permute.xlu0 %1450
        %1452 = vrot.lane.b32.xlu0 %v1384, 1
        %v1453 = vpop.permute.xlu0 %1452
        %1454 = vrot.lane.b32.xlu0 %v1386, 1
        %v1455 = vpop.permute.xlu0 %1454
        %1456 = vrot.lane.b32.xlu0 %v1388, 1
        %v1457 = vpop.permute.xlu0 %1456
        %1458 = vrot.lane.b32.xlu0 %v1390, 1
        %v1459 = vpop.permute.xlu0 %1458
        %1460 = vrot.lane.b32.xlu0 %v1392, 1
        %v1461 = vpop.permute.xlu0 %1460
        %1462 = vrot.lane.b32.xlu0 %v1394, 1
        %v1463 = vpop.permute.xlu0 %1462
        %1464 = vrot.lane.b32.xlu0 %v1381, 1
        %v1465 = vpop.permute.xlu0 %1464
        %1466 = vrot.lane.b32.xlu0 %v1383, 1
        %v1467 = vpop.permute.xlu0 %1466
        %1468 = vrot.lane.b32.xlu0 %v1385, 1
        %v1469 = vpop.permute.xlu0 %1468
        %1470 = vrot.lane.b32.xlu0 %v1387, 1
        %v1471 = vpop.permute.xlu0 %1470
        %1472 = vrot.lane.b32.xlu0 %v1389, 1
        %v1473 = vpop.permute.xlu0 %1472
        %1474 = vrot.lane.b32.xlu0 %v1391, 1
        %v1475 = vpop.permute.xlu0 %1474
        %1476 = vrot.lane.b32.xlu0 %v1393, 1
        %v1477 = vpop.permute.xlu0 %1476
        %1478 = vrot.lane.b32.xlu0 %v1395, 1
        %v1479 = vpop.permute.xlu0 %1478
        %vm1480 = vcmp.lt.s32.totalorder %v1397, 1
        %v1481 = vsel %vm1480, %v1449, %v1465
        %v1482 = vsel %vm1480, %v1451, %v1467
        %v1483 = vsel %vm1480, %v1453, %v1469
        %v1484 = vsel %vm1480, %v1455, %v1471
        %v1485 = vsel %vm1480, %v1457, %v1473
        %v1486 = vsel %vm1480, %v1459, %v1475
        %v1487 = vsel %vm1480, %v1461, %v1477
        %v1488 = vsel %vm1480, %v1463, %v1479
        %v1489 = vsel %vm1480, %v1465, %v1449
        %v1490 = vsel %vm1480, %v1467, %v1451
        %v1491 = vsel %vm1480, %v1469, %v1453
        %v1492 = vsel %vm1480, %v1471, %v1455
        %v1493 = vsel %vm1480, %v1473, %v1457
        %v1494 = vsel %vm1480, %v1475, %v1459
        %v1495 = vsel %vm1480, %v1477, %v1461
        %v1496 = vsel %vm1480, %v1479, %v1463
        %v1497 = vand.u32 %v1397, 1
        %v1498 = vand.u32 %v1398, 1
        %vm1499 = vcmp.eq.s32.totalorder %v1497, 0
        %vm1500 = vcmp.eq.s32.totalorder %v1498, 0
        %v1501 = vsel %vm1499, 1, 0
        %v1502 = vsel %vm1500, 1, 0
        %vm1503 = vcmp.eq.s32.totalorder %v1501, 1
        %vm1504 = vcmp.eq.s32.totalorder %v1502, 1
        %v1505 = vsel %vm1503, %v1432, %v1489
        %v1506 = vsel %vm1504, %v1440, %v1481
        %v1507 = vsel %vm1503, %v1433, %v1490
        %v1508 = vsel %vm1504, %v1441, %v1482
        %v1509 = vsel %vm1503, %v1434, %v1491
        %v1510 = vsel %vm1504, %v1442, %v1483
        %v1511 = vsel %vm1503, %v1435, %v1492
        %v1512 = vsel %vm1504, %v1443, %v1484
        %v1513 = vsel %vm1503, %v1436, %v1493
        %v1514 = vsel %vm1504, %v1444, %v1485
        %v1515 = vsel %vm1503, %v1437, %v1494
        %v1516 = vsel %vm1504, %v1445, %v1486
        %v1517 = vsel %vm1503, %v1438, %v1495
        %v1518 = vsel %vm1504, %v1446, %v1487
        %v1519 = vsel %vm1503, %v1439, %v1496
        %v1520 = vsel %vm1504, %v1447, %v1488
        %v1521 = vmax.f32 %v1380, %v1505
        %v1522 = vmax.f32 %v1381, %v1506
        %v1523 = vmax.f32 %v1382, %v1507
        %v1524 = vmax.f32 %v1383, %v1508
        %v1525 = vmax.f32 %v1384, %v1509
        %v1526 = vmax.f32 %v1385, %v1510
        %v1527 = vmax.f32 %v1386, %v1511
        %v1528 = vmax.f32 %v1387, %v1512
        %v1529 = vmax.f32 %v1388, %v1513
        %v1530 = vmax.f32 %v1389, %v1514
        %v1531 = vmax.f32 %v1390, %v1515
        %v1532 = vmax.f32 %v1391, %v1516
        %v1533 = vmax.f32 %v1392, %v1517
        %v1534 = vmax.f32 %v1393, %v1518
        %v1535 = vmax.f32 %v1394, %v1519
        %v1536 = vmax.f32 %v1395, %v1520
        %1537 = vrot.lane.b32.xlu0 %v1521, 126
        %v1538 = vpop.permute.xlu0 %1537
        %1539 = vrot.lane.b32.xlu0 %v1523, 126
        %v1540 = vpop.permute.xlu0 %1539
        %1541 = vrot.lane.b32.xlu0 %v1525, 126
        %v1542 = vpop.permute.xlu0 %1541
        %1543 = vrot.lane.b32.xlu0 %v1527, 126
        %v1544 = vpop.permute.xlu0 %1543
        %1545 = vrot.lane.b32.xlu0 %v1529, 126
        %v1546 = vpop.permute.xlu0 %1545
        %1547 = vrot.lane.b32.xlu0 %v1531, 126
        %v1548 = vpop.permute.xlu0 %1547
        %1549 = vrot.lane.b32.xlu0 %v1533, 126
        %v1550 = vpop.permute.xlu0 %1549
        %1551 = vrot.lane.b32.xlu0 %v1535, 126
        %v1552 = vpop.permute.xlu0 %1551
        %1553 = vrot.lane.b32.xlu0 %v1522, 126
        %v1554 = vpop.permute.xlu0 %1553
        %1555 = vrot.lane.b32.xlu0 %v1524, 126
        %v1556 = vpop.permute.xlu0 %1555
        %1557 = vrot.lane.b32.xlu0 %v1526, 126
        %v1558 = vpop.permute.xlu0 %1557
        %1559 = vrot.lane.b32.xlu0 %v1528, 126
        %v1560 = vpop.permute.xlu0 %1559
        %1561 = vrot.lane.b32.xlu0 %v1530, 126
        %v1562 = vpop.permute.xlu0 %1561
        %1563 = vrot.lane.b32.xlu0 %v1532, 126
        %v1564 = vpop.permute.xlu0 %1563
        %1565 = vrot.lane.b32.xlu0 %v1534, 126
        %v1566 = vpop.permute.xlu0 %1565
        %1567 = vrot.lane.b32.xlu0 %v1536, 126
        %v1568 = vpop.permute.xlu0 %1567
        %vm1569 = vcmp.lt.s32.totalorder %v1397, 126
        %v1570 = vsel %vm1569, %v1538, %v1554
        %v1571 = vsel %vm1569, %v1540, %v1556
        %v1572 = vsel %vm1569, %v1542, %v1558
        %v1573 = vsel %vm1569, %v1544, %v1560
        %v1574 = vsel %vm1569, %v1546, %v1562
        %v1575 = vsel %vm1569, %v1548, %v1564
        %v1576 = vsel %vm1569, %v1550, %v1566
        %v1577 = vsel %vm1569, %v1552, %v1568
        %v1578 = vsel %vm1569, %v1554, %v1538
        %v1579 = vsel %vm1569, %v1556, %v1540
        %v1580 = vsel %vm1569, %v1558, %v1542
        %v1581 = vsel %vm1569, %v1560, %v1544
        %v1582 = vsel %vm1569, %v1562, %v1546
        %v1583 = vsel %vm1569, %v1564, %v1548
        %v1584 = vsel %vm1569, %v1566, %v1550
        %v1585 = vsel %vm1569, %v1568, %v1552
        %1586 = vrot.lane.b32.xlu0 %v1521, 2
        %v1587 = vpop.permute.xlu0 %1586
        %1588 = vrot.lane.b32.xlu0 %v1523, 2
        %v1589 = vpop.permute.xlu0 %1588
        %1590 = vrot.lane.b32.xlu0 %v1525, 2
        %v1591 = vpop.permute.xlu0 %1590
        %1592 = vrot.lane.b32.xlu0 %v1527, 2
        %v1593 = vpop.permute.xlu0 %1592
        %1594 = vrot.lane.b32.xlu0 %v1529, 2
        %v1595 = vpop.permute.xlu0 %1594
        %1596 = vrot.lane.b32.xlu0 %v1531, 2
        %v1597 = vpop.permute.xlu0 %1596
        %1598 = vrot.lane.b32.xlu0 %v1533, 2
        %v1599 = vpop.permute.xlu0 %1598
        %1600 = vrot.lane.b32.xlu0 %v1535, 2
        %v1601 = vpop.permute.xlu0 %1600
        %1602 = vrot.lane.b32.xlu0 %v1522, 2
        %v1603 = vpop.permute.xlu0 %1602
        %1604 = vrot.lane.b32.xlu0 %v1524, 2
        %v1605 = vpop.permute.xlu0 %1604
        %1606 = vrot.lane.b32.xlu0 %v1526, 2
        %v1607 = vpop.permute.xlu0 %1606
        %1608 = vrot.lane.b32.xlu0 %v1528, 2
        %v1609 = vpop.permute.xlu0 %1608
        %1610 = vrot.lane.b32.xlu0 %v1530, 2
        %v1611 = vpop.permute.xlu0 %1610
        %1612 = vrot.lane.b32.xlu0 %v1532, 2
        %v1613 = vpop.permute.xlu0 %1612
        %1614 = vrot.lane.b32.xlu0 %v1534, 2
        %v1615 = vpop.permute.xlu0 %1614
        %1616 = vrot.lane.b32.xlu0 %v1536, 2
        %v1617 = vpop.permute.xlu0 %1616
        %vm1618 = vcmp.lt.s32.totalorder %v1397, 2
        %v1619 = vsel %vm1618, %v1587, %v1603
        %v1620 = vsel %vm1618, %v1589, %v1605
        %v1621 = vsel %vm1618, %v1591, %v1607
        %v1622 = vsel %vm1618, %v1593, %v1609
        %v1623 = vsel %vm1618, %v1595, %v1611
        %v1624 = vsel %vm1618, %v1597, %v1613
        %v1625 = vsel %vm1618, %v1599, %v1615
        %v1626 = vsel %vm1618, %v1601, %v1617
        %v1627 = vsel %vm1618, %v1603, %v1587
        %v1628 = vsel %vm1618, %v1605, %v1589
        %v1629 = vsel %vm1618, %v1607, %v1591
        %v1630 = vsel %vm1618, %v1609, %v1593
        %v1631 = vsel %vm1618, %v1611, %v1595
        %v1632 = vsel %vm1618, %v1613, %v1597
        %v1633 = vsel %vm1618, %v1615, %v1599
        %v1634 = vsel %vm1618, %v1617, %v1601
        %v1635 = vand.u32 %v1397, 2
        %v1636 = vand.u32 %v1398, 2
        %vm1637 = vcmp.eq.s32.totalorder %v1635, 0
        %vm1638 = vcmp.eq.s32.totalorder %v1636, 0
        %v1639 = vsel %vm1637, 1, 0
        %v1640 = vsel %vm1638, 1, 0
        %vm1641 = vcmp.eq.s32.totalorder %v1639, 1
        %vm1642 = vcmp.eq.s32.totalorder %v1640, 1
        %v1643 = vsel %vm1641, %v1570, %v1627
        %v1644 = vsel %vm1642, %v1578, %v1619
        %v1645 = vsel %vm1641, %v1571, %v1628
        %v1646 = vsel %vm1642, %v1579, %v1620
        %v1647 = vsel %vm1641, %v1572, %v1629
        %v1648 = vsel %vm1642, %v1580, %v1621
        %v1649 = vsel %vm1641, %v1573, %v1630
        %v1650 = vsel %vm1642, %v1581, %v1622
        %v1651 = vsel %vm1641, %v1574, %v1631
        %v1652 = vsel %vm1642, %v1582, %v1623
        %v1653 = vsel %vm1641, %v1575, %v1632
        %v1654 = vsel %vm1642, %v1583, %v1624
        %v1655 = vsel %vm1641, %v1576, %v1633
        %v1656 = vsel %vm1642, %v1584, %v1625
        %v1657 = vsel %vm1641, %v1577, %v1634
        %v1658 = vsel %vm1642, %v1585, %v1626
        %v1659 = vmax.f32 %v1521, %v1643
        %v1660 = vmax.f32 %v1522, %v1644
        %v1661 = vmax.f32 %v1523, %v1645
        %v1662 = vmax.f32 %v1524, %v1646
        %v1663 = vmax.f32 %v1525, %v1647
        %v1664 = vmax.f32 %v1526, %v1648
        %v1665 = vmax.f32 %v1527, %v1649
        %v1666 = vmax.f32 %v1528, %v1650
        %v1667 = vmax.f32 %v1529, %v1651
        %v1668 = vmax.f32 %v1530, %v1652
        %v1669 = vmax.f32 %v1531, %v1653
        %v1670 = vmax.f32 %v1532, %v1654
        %v1671 = vmax.f32 %v1533, %v1655
        %v1672 = vmax.f32 %v1534, %v1656
        %v1673 = vmax.f32 %v1535, %v1657
        %v1674 = vmax.f32 %v1536, %v1658
        %1675 = vrot.lane.b32.xlu0 %v1659, 124
        %v1676 = vpop.permute.xlu0 %1675
        %1677 = vrot.lane.b32.xlu0 %v1661, 124
        %v1678 = vpop.permute.xlu0 %1677
        %1679 = vrot.lane.b32.xlu0 %v1663, 124
        %v1680 = vpop.permute.xlu0 %1679
        %1681 = vrot.lane.b32.xlu0 %v1665, 124
        %v1682 = vpop.permute.xlu0 %1681
        %1683 = vrot.lane.b32.xlu0 %v1667, 124
        %v1684 = vpop.permute.xlu0 %1683
        %1685 = vrot.lane.b32.xlu0 %v1669, 124
        %v1686 = vpop.permute.xlu0 %1685
        %1687 = vrot.lane.b32.xlu0 %v1671, 124
        %v1688 = vpop.permute.xlu0 %1687
        %1689 = vrot.lane.b32.xlu0 %v1673, 124
        %v1690 = vpop.permute.xlu0 %1689
        %1691 = vrot.lane.b32.xlu0 %v1660, 124
        %v1692 = vpop.permute.xlu0 %1691
        %1693 = vrot.lane.b32.xlu0 %v1662, 124
        %v1694 = vpop.permute.xlu0 %1693
        %1695 = vrot.lane.b32.xlu0 %v1664, 124
        %v1696 = vpop.permute.xlu0 %1695
        %1697 = vrot.lane.b32.xlu0 %v1666, 124
        %v1698 = vpop.permute.xlu0 %1697
        %1699 = vrot.lane.b32.xlu0 %v1668, 124
        %v1700 = vpop.permute.xlu0 %1699
        %1701 = vrot.lane.b32.xlu0 %v1670, 124
        %v1702 = vpop.permute.xlu0 %1701
        %1703 = vrot.lane.b32.xlu0 %v1672, 124
        %v1704 = vpop.permute.xlu0 %1703
        %1705 = vrot.lane.b32.xlu0 %v1674, 124
        %v1706 = vpop.permute.xlu0 %1705
        %vm1707 = vcmp.lt.s32.totalorder %v1397, 124
        %v1708 = vsel %vm1707, %v1676, %v1692
        %v1709 = vsel %vm1707, %v1678, %v1694
        %v1710 = vsel %vm1707, %v1680, %v1696
        %v1711 = vsel %vm1707, %v1682, %v1698
        %v1712 = vsel %vm1707, %v1684, %v1700
        %v1713 = vsel %vm1707, %v1686, %v1702
        %v1714 = vsel %vm1707, %v1688, %v1704
        %v1715 = vsel %vm1707, %v1690, %v1706
        %v1716 = vsel %vm1707, %v1692, %v1676
        %v1717 = vsel %vm1707, %v1694, %v1678
        %v1718 = vsel %vm1707, %v1696, %v1680
        %v1719 = vsel %vm1707, %v1698, %v1682
        %v1720 = vsel %vm1707, %v1700, %v1684
        %v1721 = vsel %vm1707, %v1702, %v1686
        %v1722 = vsel %vm1707, %v1704, %v1688
        %v1723 = vsel %vm1707, %v1706, %v1690
        %1724 = vrot.lane.b32.xlu0 %v1659, 4
        %v1725 = vpop.permute.xlu0 %1724
        %1726 = vrot.lane.b32.xlu0 %v1661, 4
        %v1727 = vpop.permute.xlu0 %1726
        %1728 = vrot.lane.b32.xlu0 %v1663, 4
        %v1729 = vpop.permute.xlu0 %1728
        %1730 = vrot.lane.b32.xlu0 %v1665, 4
        %v1731 = vpop.permute.xlu0 %1730
        %1732 = vrot.lane.b32.xlu0 %v1667, 4
        %v1733 = vpop.permute.xlu0 %1732
        %1734 = vrot.lane.b32.xlu0 %v1669, 4
        %v1735 = vpop.permute.xlu0 %1734
        %1736 = vrot.lane.b32.xlu0 %v1671, 4
        %v1737 = vpop.permute.xlu0 %1736
        %1738 = vrot.lane.b32.xlu0 %v1673, 4
        %v1739 = vpop.permute.xlu0 %1738
        %1740 = vrot.lane.b32.xlu0 %v1660, 4
        %v1741 = vpop.permute.xlu0 %1740
        %1742 = vrot.lane.b32.xlu0 %v1662, 4
        %v1743 = vpop.permute.xlu0 %1742
        %1744 = vrot.lane.b32.xlu0 %v1664, 4
        %v1745 = vpop.permute.xlu0 %1744
        %1746 = vrot.lane.b32.xlu0 %v1666, 4
        %v1747 = vpop.permute.xlu0 %1746
        %1748 = vrot.lane.b32.xlu0 %v1668, 4
        %v1749 = vpop.permute.xlu0 %1748
        %1750 = vrot.lane.b32.xlu0 %v1670, 4
        %v1751 = vpop.permute.xlu0 %1750
        %1752 = vrot.lane.b32.xlu0 %v1672, 4
        %v1753 = vpop.permute.xlu0 %1752
        %1754 = vrot.lane.b32.xlu0 %v1674, 4
        %v1755 = vpop.permute.xlu0 %1754
        %vm1756 = vcmp.lt.s32.totalorder %v1397, 4
        %v1757 = vsel %vm1756, %v1725, %v1741
        %v1758 = vsel %vm1756, %v1727, %v1743
        %v1759 = vsel %vm1756, %v1729, %v1745
        %v1760 = vsel %vm1756, %v1731, %v1747
        %v1761 = vsel %vm1756, %v1733, %v1749
        %v1762 = vsel %vm1756, %v1735, %v1751
        %v1763 = vsel %vm1756, %v1737, %v1753
        %v1764 = vsel %vm1756, %v1739, %v1755
        %v1765 = vsel %vm1756, %v1741, %v1725
        %v1766 = vsel %vm1756, %v1743, %v1727
        %v1767 = vsel %vm1756, %v1745, %v1729
        %v1768 = vsel %vm1756, %v1747, %v1731
        %v1769 = vsel %vm1756, %v1749, %v1733
        %v1770 = vsel %vm1756, %v1751, %v1735
        %v1771 = vsel %vm1756, %v1753, %v1737
        %v1772 = vsel %vm1756, %v1755, %v1739
        %v1773 = vand.u32 %v1397, 4
        %v1774 = vand.u32 %v1398, 4
        %vm1775 = vcmp.eq.s32.totalorder %v1773, 0
        %vm1776 = vcmp.eq.s32.totalorder %v1774, 0
        %v1777 = vsel %vm1775, 1, 0
        %v1778 = vsel %vm1776, 1, 0
        %vm1779 = vcmp.eq.s32.totalorder %v1777, 1
        %vm1780 = vcmp.eq.s32.totalorder %v1778, 1
        %v1781 = vsel %vm1779, %v1708, %v1765
        %v1782 = vsel %vm1780, %v1716, %v1757
        %v1783 = vsel %vm1779, %v1709, %v1766
        %v1784 = vsel %vm1780, %v1717, %v1758
        %v1785 = vsel %vm1779, %v1710, %v1767
        %v1786 = vsel %vm1780, %v1718, %v1759
        %v1787 = vsel %vm1779, %v1711, %v1768
        %v1788 = vsel %vm1780, %v1719, %v1760
        %v1789 = vsel %vm1779, %v1712, %v1769
        %v1790 = vsel %vm1780, %v1720, %v1761
        %v1791 = vsel %vm1779, %v1713, %v1770
        %v1792 = vsel %vm1780, %v1721, %v1762
        %v1793 = vsel %vm1779, %v1714, %v1771
        %v1794 = vsel %vm1780, %v1722, %v1763
        %v1795 = vsel %vm1779, %v1715, %v1772
        %v1796 = vsel %vm1780, %v1723, %v1764
        %v1797 = vmax.f32 %v1659, %v1781
        %v1798 = vmax.f32 %v1660, %v1782
        %v1799 = vmax.f32 %v1661, %v1783
        %v1800 = vmax.f32 %v1662, %v1784
        %v1801 = vmax.f32 %v1663, %v1785
        %v1802 = vmax.f32 %v1664, %v1786
        %v1803 = vmax.f32 %v1665, %v1787
        %v1804 = vmax.f32 %v1666, %v1788
        %v1805 = vmax.f32 %v1667, %v1789
        %v1806 = vmax.f32 %v1668, %v1790
        %v1807 = vmax.f32 %v1669, %v1791
        %v1808 = vmax.f32 %v1670, %v1792
        %v1809 = vmax.f32 %v1671, %v1793
        %v1810 = vmax.f32 %v1672, %v1794
        %v1811 = vmax.f32 %v1673, %v1795
        %v1812 = vmax.f32 %v1674, %v1796
        %1813 = vrot.lane.b32.xlu0 %v1797, 120
        %v1814 = vpop.permute.xlu0 %1813
        %1815 = vrot.lane.b32.xlu0 %v1799, 120
        %v1816 = vpop.permute.xlu0 %1815
        %1817 = vrot.lane.b32.xlu0 %v1801, 120
        %v1818 = vpop.permute.xlu0 %1817
        %1819 = vrot.lane.b32.xlu0 %v1803, 120
        %v1820 = vpop.permute.xlu0 %1819
        %1821 = vrot.lane.b32.xlu0 %v1805, 120
        %v1822 = vpop.permute.xlu0 %1821
        %1823 = vrot.lane.b32.xlu0 %v1807, 120
        %v1824 = vpop.permute.xlu0 %1823
        %1825 = vrot.lane.b32.xlu0 %v1809, 120
        %v1826 = vpop.permute.xlu0 %1825
        %1827 = vrot.lane.b32.xlu0 %v1811, 120
        %v1828 = vpop.permute.xlu0 %1827
        %1829 = vrot.lane.b32.xlu0 %v1798, 120
        %v1830 = vpop.permute.xlu0 %1829
        %1831 = vrot.lane.b32.xlu0 %v1800, 120
        %v1832 = vpop.permute.xlu0 %1831
        %1833 = vrot.lane.b32.xlu0 %v1802, 120
        %v1834 = vpop.permute.xlu0 %1833
        %1835 = vrot.lane.b32.xlu0 %v1804, 120
        %v1836 = vpop.permute.xlu0 %1835
        %1837 = vrot.lane.b32.xlu0 %v1806, 120
        %v1838 = vpop.permute.xlu0 %1837
        %1839 = vrot.lane.b32.xlu0 %v1808, 120
        %v1840 = vpop.permute.xlu0 %1839
        %1841 = vrot.lane.b32.xlu0 %v1810, 120
        %v1842 = vpop.permute.xlu0 %1841
        %1843 = vrot.lane.b32.xlu0 %v1812, 120
        %v1844 = vpop.permute.xlu0 %1843
        %vm1845 = vcmp.lt.s32.totalorder %v1397, 120
        %v1846 = vsel %vm1845, %v1814, %v1830
        %v1847 = vsel %vm1845, %v1816, %v1832
        %v1848 = vsel %vm1845, %v1818, %v1834
        %v1849 = vsel %vm1845, %v1820, %v1836
        %v1850 = vsel %vm1845, %v1822, %v1838
        %v1851 = vsel %vm1845, %v1824, %v1840
        %v1852 = vsel %vm1845, %v1826, %v1842
        %v1853 = vsel %vm1845, %v1828, %v1844
        %v1854 = vsel %vm1845, %v1830, %v1814
        %v1855 = vsel %vm1845, %v1832, %v1816
        %v1856 = vsel %vm1845, %v1834, %v1818
        %v1857 = vsel %vm1845, %v1836, %v1820
        %v1858 = vsel %vm1845, %v1838, %v1822
        %v1859 = vsel %vm1845, %v1840, %v1824
        %v1860 = vsel %vm1845, %v1842, %v1826
        %v1861 = vsel %vm1845, %v1844, %v1828
        %1862 = vrot.lane.b32.xlu0 %v1797, 8
        %v1863 = vpop.permute.xlu0 %1862
        %1864 = vrot.lane.b32.xlu0 %v1799, 8
        %v1865 = vpop.permute.xlu0 %1864
        %1866 = vrot.lane.b32.xlu0 %v1801, 8
        %v1867 = vpop.permute.xlu0 %1866
        %1868 = vrot.lane.b32.xlu0 %v1803, 8
        %v1869 = vpop.permute.xlu0 %1868
        %1870 = vrot.lane.b32.xlu0 %v1805, 8
        %v1871 = vpop.permute.xlu0 %1870
        %1872 = vrot.lane.b32.xlu0 %v1807, 8
        %v1873 = vpop.permute.xlu0 %1872
        %1874 = vrot.lane.b32.xlu0 %v1809, 8
        %v1875 = vpop.permute.xlu0 %1874
        %1876 = vrot.lane.b32.xlu0 %v1811, 8
        %v1877 = vpop.permute.xlu0 %1876
        %1878 = vrot.lane.b32.xlu0 %v1798, 8
        %v1879 = vpop.permute.xlu0 %1878
        %1880 = vrot.lane.b32.xlu0 %v1800, 8
        %v1881 = vpop.permute.xlu0 %1880
        %1882 = vrot.lane.b32.xlu0 %v1802, 8
        %v1883 = vpop.permute.xlu0 %1882
        %1884 = vrot.lane.b32.xlu0 %v1804, 8
        %v1885 = vpop.permute.xlu0 %1884
        %1886 = vrot.lane.b32.xlu0 %v1806, 8
        %v1887 = vpop.permute.xlu0 %1886
        %1888 = vrot.lane.b32.xlu0 %v1808, 8
        %v1889 = vpop.permute.xlu0 %1888
        %1890 = vrot.lane.b32.xlu0 %v1810, 8
        %v1891 = vpop.permute.xlu0 %1890
        %1892 = vrot.lane.b32.xlu0 %v1812, 8
        %v1893 = vpop.permute.xlu0 %1892
        %vm1894 = vcmp.lt.s32.totalorder %v1397, 8
        %v1895 = vsel %vm1894, %v1863, %v1879
        %v1896 = vsel %vm1894, %v1865, %v1881
        %v1897 = vsel %vm1894, %v1867, %v1883
        %v1898 = vsel %vm1894, %v1869, %v1885
        %v1899 = vsel %vm1894, %v1871, %v1887
        %v1900 = vsel %vm1894, %v1873, %v1889
        %v1901 = vsel %vm1894, %v1875, %v1891
        %v1902 = vsel %vm1894, %v1877, %v1893
        %v1903 = vsel %vm1894, %v1879, %v1863
        %v1904 = vsel %vm1894, %v1881, %v1865
        %v1905 = vsel %vm1894, %v1883, %v1867
        %v1906 = vsel %vm1894, %v1885, %v1869
        %v1907 = vsel %vm1894, %v1887, %v1871
        %v1908 = vsel %vm1894, %v1889, %v1873
        %v1909 = vsel %vm1894, %v1891, %v1875
        %v1910 = vsel %vm1894, %v1893, %v1877
        %v1911 = vand.u32 %v1397, 8
        %v1912 = vand.u32 %v1398, 8
        %vm1913 = vcmp.eq.s32.totalorder %v1911, 0
        %vm1914 = vcmp.eq.s32.totalorder %v1912, 0
        %v1915 = vsel %vm1913, 1, 0
        %v1916 = vsel %vm1914, 1, 0
        %vm1917 = vcmp.eq.s32.totalorder %v1915, 1
        %vm1918 = vcmp.eq.s32.totalorder %v1916, 1
        %v1919 = vsel %vm1917, %v1846, %v1903
        %v1920 = vsel %vm1918, %v1854, %v1895
        %v1921 = vsel %vm1917, %v1847, %v1904
        %v1922 = vsel %vm1918, %v1855, %v1896
        %v1923 = vsel %vm1917, %v1848, %v1905
        %v1924 = vsel %vm1918, %v1856, %v1897
        %v1925 = vsel %vm1917, %v1849, %v1906
        %v1926 = vsel %vm1918, %v1857, %v1898
        %v1927 = vsel %vm1917, %v1850, %v1907
        %v1928 = vsel %vm1918, %v1858, %v1899
        %v1929 = vsel %vm1917, %v1851, %v1908
        %v1930 = vsel %vm1918, %v1859, %v1900
        %v1931 = vsel %vm1917, %v1852, %v1909
        %v1932 = vsel %vm1918, %v1860, %v1901
        %v1933 = vsel %vm1917, %v1853, %v1910
        %v1934 = vsel %vm1918, %v1861, %v1902
        %v1935 = vmax.f32 %v1797, %v1919
        %v1936 = vmax.f32 %v1798, %v1920
        %v1937 = vmax.f32 %v1799, %v1921
        %v1938 = vmax.f32 %v1800, %v1922
        %v1939 = vmax.f32 %v1801, %v1923
        %v1940 = vmax.f32 %v1802, %v1924
        %v1941 = vmax.f32 %v1803, %v1925
        %v1942 = vmax.f32 %v1804, %v1926
        %v1943 = vmax.f32 %v1805, %v1927
        %v1944 = vmax.f32 %v1806, %v1928
        %v1945 = vmax.f32 %v1807, %v1929
        %v1946 = vmax.f32 %v1808, %v1930
        %v1947 = vmax.f32 %v1809, %v1931
        %v1948 = vmax.f32 %v1810, %v1932
        %v1949 = vmax.f32 %v1811, %v1933
        %v1950 = vmax.f32 %v1812, %v1934
        %1951 = vrot.lane.b32.xlu0 %v1935, 112
        %v1952 = vpop.permute.xlu0 %1951
        %1953 = vrot.lane.b32.xlu0 %v1937, 112
        %v1954 = vpop.permute.xlu0 %1953
        %1955 = vrot.lane.b32.xlu0 %v1939, 112
        %v1956 = vpop.permute.xlu0 %1955
        %1957 = vrot.lane.b32.xlu0 %v1941, 112
        %v1958 = vpop.permute.xlu0 %1957
        %1959 = vrot.lane.b32.xlu0 %v1943, 112
        %v1960 = vpop.permute.xlu0 %1959
        %1961 = vrot.lane.b32.xlu0 %v1945, 112
        %v1962 = vpop.permute.xlu0 %1961
        %1963 = vrot.lane.b32.xlu0 %v1947, 112
        %v1964 = vpop.permute.xlu0 %1963
        %1965 = vrot.lane.b32.xlu0 %v1949, 112
        %v1966 = vpop.permute.xlu0 %1965
        %1967 = vrot.lane.b32.xlu0 %v1936, 112
        %v1968 = vpop.permute.xlu0 %1967
        %1969 = vrot.lane.b32.xlu0 %v1938, 112
        %v1970 = vpop.permute.xlu0 %1969
        %1971 = vrot.lane.b32.xlu0 %v1940, 112
        %v1972 = vpop.permute.xlu0 %1971
        %1973 = vrot.lane.b32.xlu0 %v1942, 112
        %v1974 = vpop.permute.xlu0 %1973
        %1975 = vrot.lane.b32.xlu0 %v1944, 112
        %v1976 = vpop.permute.xlu0 %1975
        %1977 = vrot.lane.b32.xlu0 %v1946, 112
        %v1978 = vpop.permute.xlu0 %1977
        %1979 = vrot.lane.b32.xlu0 %v1948, 112
        %v1980 = vpop.permute.xlu0 %1979
        %1981 = vrot.lane.b32.xlu0 %v1950, 112
        %v1982 = vpop.permute.xlu0 %1981
        %vm1983 = vcmp.lt.s32.totalorder %v1397, 112
        %v1984 = vsel %vm1983, %v1952, %v1968
        %v1985 = vsel %vm1983, %v1954, %v1970
        %v1986 = vsel %vm1983, %v1956, %v1972
        %v1987 = vsel %vm1983, %v1958, %v1974
        %v1988 = vsel %vm1983, %v1960, %v1976
        %v1989 = vsel %vm1983, %v1962, %v1978
        %v1990 = vsel %vm1983, %v1964, %v1980
        %v1991 = vsel %vm1983, %v1966, %v1982
        %v1992 = vsel %vm1983, %v1968, %v1952
        %v1993 = vsel %vm1983, %v1970, %v1954
        %v1994 = vsel %vm1983, %v1972, %v1956
        %v1995 = vsel %vm1983, %v1974, %v1958
        %v1996 = vsel %vm1983, %v1976, %v1960
        %v1997 = vsel %vm1983, %v1978, %v1962
        %v1998 = vsel %vm1983, %v1980, %v1964
        %v1999 = vsel %vm1983, %v1982, %v1966
        %2000 = vrot.lane.b32.xlu0 %v1935, 16
        %v2001 = vpop.permute.xlu0 %2000
        %2002 = vrot.lane.b32.xlu0 %v1937, 16
        %v2003 = vpop.permute.xlu0 %2002
        %2004 = vrot.lane.b32.xlu0 %v1939, 16
        %v2005 = vpop.permute.xlu0 %2004
        %2006 = vrot.lane.b32.xlu0 %v1941, 16
        %v2007 = vpop.permute.xlu0 %2006
        %2008 = vrot.lane.b32.xlu0 %v1943, 16
        %v2009 = vpop.permute.xlu0 %2008
        %2010 = vrot.lane.b32.xlu0 %v1945, 16
        %v2011 = vpop.permute.xlu0 %2010
        %2012 = vrot.lane.b32.xlu0 %v1947, 16
        %v2013 = vpop.permute.xlu0 %2012
        %2014 = vrot.lane.b32.xlu0 %v1949, 16
        %v2015 = vpop.permute.xlu0 %2014
        %2016 = vrot.lane.b32.xlu0 %v1936, 16
        %v2017 = vpop.permute.xlu0 %2016
        %2018 = vrot.lane.b32.xlu0 %v1938, 16
        %v2019 = vpop.permute.xlu0 %2018
        %2020 = vrot.lane.b32.xlu0 %v1940, 16
        %v2021 = vpop.permute.xlu0 %2020
        %2022 = vrot.lane.b32.xlu0 %v1942, 16
        %v2023 = vpop.permute.xlu0 %2022
        %2024 = vrot.lane.b32.xlu0 %v1944, 16
        %v2025 = vpop.permute.xlu0 %2024
        %2026 = vrot.lane.b32.xlu0 %v1946, 16
        %v2027 = vpop.permute.xlu0 %2026
        %2028 = vrot.lane.b32.xlu0 %v1948, 16
        %v2029 = vpop.permute.xlu0 %2028
        %2030 = vrot.lane.b32.xlu0 %v1950, 16
        %v2031 = vpop.permute.xlu0 %2030
        %vm2032 = vcmp.lt.s32.totalorder %v1397, 16
        %v2033 = vsel %vm2032, %v2001, %v2017
        %v2034 = vsel %vm2032, %v2003, %v2019
        %v2035 = vsel %vm2032, %v2005, %v2021
        %v2036 = vsel %vm2032, %v2007, %v2023
        %v2037 = vsel %vm2032, %v2009, %v2025
        %v2038 = vsel %vm2032, %v2011, %v2027
        %v2039 = vsel %vm2032, %v2013, %v2029
        %v2040 = vsel %vm2032, %v2015, %v2031
        %v2041 = vsel %vm2032, %v2017, %v2001
        %v2042 = vsel %vm2032, %v2019, %v2003
        %v2043 = vsel %vm2032, %v2021, %v2005
        %v2044 = vsel %vm2032, %v2023, %v2007
        %v2045 = vsel %vm2032, %v2025, %v2009
        %v2046 = vsel %vm2032, %v2027, %v2011
        %v2047 = vsel %vm2032, %v2029, %v2013
        %v2048 = vsel %vm2032, %v2031, %v2015
        %v2049 = vand.u32 %v1397, 16
        %v2050 = vand.u32 %v1398, 16
        %vm2051 = vcmp.eq.s32.totalorder %v2049, 0
        %vm2052 = vcmp.eq.s32.totalorder %v2050, 0
        %v2053 = vsel %vm2051, 1, 0
        %v2054 = vsel %vm2052, 1, 0
        %vm2055 = vcmp.eq.s32.totalorder %v2053, 1
        %vm2056 = vcmp.eq.s32.totalorder %v2054, 1
        %v2057 = vsel %vm2055, %v1984, %v2041
        %v2058 = vsel %vm2056, %v1992, %v2033
        %v2059 = vsel %vm2055, %v1985, %v2042
        %v2060 = vsel %vm2056, %v1993, %v2034
        %v2061 = vsel %vm2055, %v1986, %v2043
        %v2062 = vsel %vm2056, %v1994, %v2035
        %v2063 = vsel %vm2055, %v1987, %v2044
        %v2064 = vsel %vm2056, %v1995, %v2036
        %v2065 = vsel %vm2055, %v1988, %v2045
        %v2066 = vsel %vm2056, %v1996, %v2037
        %v2067 = vsel %vm2055, %v1989, %v2046
        %v2068 = vsel %vm2056, %v1997, %v2038
        %v2069 = vsel %vm2055, %v1990, %v2047
        %v2070 = vsel %vm2056, %v1998, %v2039
        %v2071 = vsel %vm2055, %v1991, %v2048
        %v2072 = vsel %vm2056, %v1999, %v2040
        %v2073 = vmax.f32 %v1935, %v2057
        %v2074 = vmax.f32 %v1936, %v2058
        %v2075 = vmax.f32 %v1937, %v2059
        %v2076 = vmax.f32 %v1938, %v2060
        %v2077 = vmax.f32 %v1939, %v2061
        %v2078 = vmax.f32 %v1940, %v2062
        %v2079 = vmax.f32 %v1941, %v2063
        %v2080 = vmax.f32 %v1942, %v2064
        %v2081 = vmax.f32 %v1943, %v2065
        %v2082 = vmax.f32 %v1944, %v2066
        %v2083 = vmax.f32 %v1945, %v2067
        %v2084 = vmax.f32 %v1946, %v2068
        %v2085 = vmax.f32 %v1947, %v2069
        %v2086 = vmax.f32 %v1948, %v2070
        %v2087 = vmax.f32 %v1949, %v2071
        %v2088 = vmax.f32 %v1950, %v2072
        %2089 = vmatprep.subr.mxu0 0.0
        %2090 = vmatpush1.msra.mxu0 %v1218
        %2091 = vmatprep.subr.mxu0 0.0
        %2092 = vmatpush1.msra.mxu0 %v1217
        %2093 = vmatprep.subr.mxu0 0.0
        %2094 = vmatpush1.msra.mxu0 %v1216
        %2095 = vmatprep.subr.mxu0 0.0
        %2096 = vmatpush1.msra.mxu0 %v1215
        %2097 = vmatprep.subr.mxu0 0.0
        %2098 = vmatpush1.msra.mxu0 %v1214
        %2099 = vmatprep.subr.mxu0 0.0
        %2100 = vmatpush1.msra.mxu0 %v1213
        %2101 = vmatprep.subr.mxu0 0.0
        %2102 = vmatpush1.msra.mxu0 %v1212
        %2103 = vmatprep.subr.mxu0 0.0
        %2104 = vmatpush1.msra.mxu0 %v1211
        %2105 = vmatprep.subr.mxu0 0.0
        %2106 = vmatpush1.msra.mxu0 %v1210
        %2107 = vmatprep.subr.mxu0 0.0
        %2108 = vmatpush1.msra.mxu0 %v1209
        %2109 = vmatprep.subr.mxu0 0.0
        %2110 = vmatpush1.msra.mxu0 %v1208
        %2111 = vmatprep.subr.mxu0 0.0
        %2112 = vmatpush1.msra.mxu0 %v1207
        %2113 = vmatprep.subr.mxu0 0.0
        %2114 = vmatpush1.msra.mxu0 %v1206
        %2115 = vmatprep.subr.mxu0 0.0
        %2116 = vmatpush1.msra.mxu0 %v1205
        %2117 = vmatprep.subr.mxu0 0.0
        %2118 = vmatpush1.msra.mxu0 %v1204
        %2119 = vmatprep.subr.mxu0 0.0
        %2120 = vmatpush1.msra.mxu0 %v1203
        %2121 = vmatprep.subr.mxu0 0.0
        %2122 = vmatpush2.msra.mxu0 %v1234
        %2123 = vmatprep.subr.mxu0 0.0
        %2124 = vmatpush2.msra.mxu0 %v1233
        %2125 = vmatprep.subr.mxu0 0.0
        %2126 = vmatpush2.msra.mxu0 %v1232
        %2127 = vmatprep.subr.mxu0 0.0
        %2128 = vmatpush2.msra.mxu0 %v1231
        %2129 = vmatprep.subr.mxu0 0.0
        %2130 = vmatpush2.msra.mxu0 %v1230
        %2131 = vmatprep.subr.mxu0 0.0
        %2132 = vmatpush2.msra.mxu0 %v1229
        %2133 = vmatprep.subr.mxu0 0.0
        %2134 = vmatpush2.msra.mxu0 %v1228
        %2135 = vmatprep.subr.mxu0 0.0
        %2136 = vmatpush2.msra.mxu0 %v1227
        %2137 = vmatprep.subr.mxu0 0.0
        %2138 = vmatpush2.msra.mxu0 %v1226
        %2139 = vmatprep.subr.mxu0 0.0
        %2140 = vmatpush2.msra.mxu0 %v1225
        %2141 = vmatprep.subr.mxu0 0.0
        %2142 = vmatpush2.msra.mxu0 %v1224
        %2143 = vmatprep.subr.mxu0 0.0
        %2144 = vmatpush2.msra.mxu0 %v1223
        %2145 = vmatprep.subr.mxu0 0.0
        %2146 = vmatpush2.msra.mxu0 %v1222
        %2147 = vmatprep.subr.mxu0 0.0
        %2148 = vmatpush2.msra.mxu0 %v1221
        %2149 = vmatprep.subr.mxu0 0.0
        %2150 = vmatpush2.msra.mxu0 %v1220
        %2151 = vmatprep.subr.mxu0 0.0
        %2152 = vmatpush2.msra.mxu0 %v1219
        %2153 = vmatprep.mubr.f32.mxu0 %v2074
        %2154 = vmatmul.mubr.f32.gmra.mxu0 %v2073
        %v2155 = vpop.f32.mrf.mxu0
        %v2156 = vadd.f32 0.0, %v2155
        %v2157 = vpop.f32.mrf.mxu0
        %2158 = vmatprep.mubr.f32.mxu0 %v2076
        %2159 = vmatmul.mubr.f32.gmra.mxu0 %v2075
        %v2160 = vpop.f32.mrf.mxu0
        %v2161 = vadd.f32 0.0, %v2160
        %v2162 = vpop.f32.mrf.mxu0
        %2163 = vmatprep.mubr.f32.mxu0 %v2078
        %2164 = vmatmul.mubr.f32.gmra.mxu0 %v2077
        %v2165 = vpop.f32.mrf.mxu0
        %v2166 = vadd.f32 0.0, %v2165
        %v2167 = vpop.f32.mrf.mxu0
        %2168 = vmatprep.mubr.f32.mxu0 %v2080
        %2169 = vmatmul.mubr.f32.gmra.mxu0 %v2079
        %v2170 = vpop.f32.mrf.mxu0
        %v2171 = vadd.f32 0.0, %v2170
        %v2172 = vpop.f32.mrf.mxu0
        %2173 = vmatprep.mubr.f32.mxu0 %v2082
        %2174 = vmatmul.mubr.f32.gmra.mxu0 %v2081
        %v2175 = vpop.f32.mrf.mxu0
        %v2176 = vadd.f32 0.0, %v2175
        %v2177 = vpop.f32.mrf.mxu0
        %2178 = vmatprep.mubr.f32.mxu0 %v2084
        %2179 = vmatmul.mubr.f32.gmra.mxu0 %v2083
        %v2180 = vpop.f32.mrf.mxu0
        %v2181 = vadd.f32 0.0, %v2180
        %v2182 = vpop.f32.mrf.mxu0
        %2183 = vmatprep.mubr.f32.mxu0 %v2086
        %2184 = vmatmul.mubr.f32.gmra.mxu0 %v2085
        %v2185 = vpop.f32.mrf.mxu0
        %v2186 = vadd.f32 0.0, %v2185
        %v2187 = vpop.f32.mrf.mxu0
        %2188 = vmatprep.mubr.f32.mxu0 %v2088
        %2189 = vmatmul.mubr.f32.gmra.mxu0 %v2087
        %v2190 = vpop.f32.mrf.mxu0
        %v2191 = vadd.f32 0.0, %v2190
        %v2192 = vpop.f32.mrf.mxu0
        %2193 = vdwg.mxu0
        %v2194 = vmul.f32 %v2156, 0.03125
        %v2195 = vmul.f32 %v2161, 0.03125
        %v2196 = vmul.f32 %v2166, 0.03125
        %v2197 = vmul.f32 %v2171, 0.03125
        %v2198 = vmul.f32 %v2176, 0.03125
        %v2199 = vmul.f32 %v2181, 0.03125
        %v2200 = vmul.f32 %v2186, 0.03125
        %v2201 = vmul.f32 %v2191, 0.03125
        %v2202 = vmax.f32 %v2194, 1e-38
        %v2203 = vmax.f32 %v2195, 1e-38
        %v2204 = vmax.f32 %v2196, 1e-38
        %v2205 = vmax.f32 %v2197, 1e-38
        %v2206 = vmax.f32 %v2198, 1e-38
        %v2207 = vmax.f32 %v2199, 1e-38
        %v2208 = vmax.f32 %v2200, 1e-38
        %v2209 = vmax.f32 %v2201, 1e-38
        %v2210 = vrcp.pop %v2202
        %v2211 = vrcp.pop %v2203
        %v2212 = vrcp.pop %v2204
        %v2213 = vrcp.pop %v2205
        %v2214 = vrcp.pop %v2206
        %v2215 = vrcp.pop %v2207
        %v2216 = vrcp.pop %v2208
        %v2217 = vrcp.pop %v2209
        %v2218 = vmul.f32 %v1340, %v2210
        %v2219 = vmul.f32 %v1341, %v2211
        %v2220 = vmul.f32 %v1342, %v2212
        %v2221 = vmul.f32 %v1343, %v2213
        %v2222 = vmul.f32 %v1344, %v2214
        %v2223 = vmul.f32 %v1345, %v2215
        %v2224 = vmul.f32 %v1346, %v2216
        %v2225 = vmul.f32 %v1347, %v2217
        %v2226 = vld [vmem:[%s10] sm:$0xff]
        %v2227 = vld [vmem:[%s10 + $0x8] sm:$0xff]
        %vm2228 = vcmask 64512
        %v2230 = vsel %vm2228, %v2218, 0
        %v2233 = vsel %vm2228, %v2219, 0
        %v2236 = vsel %vm2228, %v2220, 0
        %v2239 = vsel %vm2228, %v2221, 0
        %v2242 = vsel %vm2228, %v2222, 0
        %v2245 = vsel %vm2228, %v2223, 0
        %v2248 = vsel %vm2228, %v2224, 0
        %v2251 = vsel %vm2228, %v2225, 0
        %2253 = vmatprep.subr.mxu0 0.0
        %2254 = vmatpush1.msra.mxu0 0.0
        %2255 = vmatprep.subr.mxu0 0.0
        %2256 = vmatpush1.msra.mxu0 0.0
        %2257 = vmatprep.subr.mxu0 0.0
        %2258 = vmatpush1.msra.mxu0 0.0
        %2259 = vmatprep.subr.mxu0 0.0
        %2260 = vmatpush1.msra.mxu0 0.0
        %2261 = vmatprep.subr.mxu0 0.0
        %2262 = vmatpush1.msra.mxu0 0.0
        %2263 = vmatprep.subr.mxu0 0.0
        %2264 = vmatpush1.msra.mxu0 0.0
        %2265 = vmatprep.subr.mxu0 0.0
        %2266 = vmatpush1.msra.mxu0 0.0
        %2267 = vmatprep.subr.mxu0 0.0
        %2268 = vmatpush1.msra.mxu0 0.0
        %2269 = vmatprep.subr.mxu0 0.0
        %2270 = vmatpush1.msra.mxu0 0.0
        %2271 = vmatprep.subr.mxu0 0.0
        %2272 = vmatpush1.msra.mxu0 0.0
        %2273 = vmatprep.subr.mxu0 0.0
        %2274 = vmatpush1.msra.mxu0 0.0
        %2275 = vmatprep.subr.mxu0 0.0
        %2276 = vmatpush1.msra.mxu0 0.0
        %2277 = vmatprep.subr.mxu0 0.0
        %2278 = vmatpush1.msra.mxu0 0.0
        %2279 = vmatprep.subr.mxu0 0.0
        %2280 = vmatpush1.msra.mxu0 0.0
        %2281 = vmatprep.subr.mxu0 0.0
        %2282 = vmatpush1.msra.mxu0 0.0
        %2283 = vmatprep.subr.mxu0 %v2227
        %2284 = vmatpush1.msra.mxu0 %v2226
        %2285 = vmatprep.subr.mxu0 0.0
        %2286 = vmatpush2.msra.mxu0 0.0
        %2287 = vmatprep.subr.mxu0 0.0
        %2288 = vmatpush2.msra.mxu0 0.0
        %2289 = vmatprep.subr.mxu0 0.0
        %2290 = vmatpush2.msra.mxu0 0.0
        %2291 = vmatprep.subr.mxu0 0.0
        %2292 = vmatpush2.msra.mxu0 0.0
        %2293 = vmatprep.subr.mxu0 0.0
        %2294 = vmatpush2.msra.mxu0 0.0
        %2295 = vmatprep.subr.mxu0 0.0
        %2296 = vmatpush2.msra.mxu0 0.0
        %2297 = vmatprep.subr.mxu0 0.0
        %2298 = vmatpush2.msra.mxu0 0.0
        %2299 = vmatprep.subr.mxu0 0.0
        %2300 = vmatpush2.msra.mxu0 0.0
        %2301 = vmatprep.subr.mxu0 0.0
        %2302 = vmatpush2.msra.mxu0 0.0
        %2303 = vmatprep.subr.mxu0 0.0
        %2304 = vmatpush2.msra.mxu0 0.0
        %2305 = vmatprep.subr.mxu0 0.0
        %2306 = vmatpush2.msra.mxu0 0.0
        %2307 = vmatprep.subr.mxu0 0.0
        %2308 = vmatpush2.msra.mxu0 0.0
        %2309 = vmatprep.subr.mxu0 0.0
        %2310 = vmatpush2.msra.mxu0 0.0
        %2311 = vmatprep.subr.mxu0 0.0
        %2312 = vmatpush2.msra.mxu0 0.0
        %2313 = vmatprep.subr.mxu0 0.0
        %2314 = vmatpush2.msra.mxu0 0.0
        %2315 = vmatprep.subr.mxu0 0.0
        %2316 = vmatpush2.msra.mxu0 0.0
        %2317 = vmatprep.mubr.f32.mxu0 0.0
        %2318 = vmatmul.mubr.f32.gmra.mxu0 %v2230
        %v2319 = vpop.f32.mrf.mxu0
        %v2320 = vadd.f32 0.0, %v2319
        %v2321 = vpop.f32.mrf.mxu0
        %v2322 = vadd.f32 0.0, %v2321
        %2323 = vmatprep.mubr.f32.mxu0 0.0
        %2324 = vmatmul.mubr.f32.gmra.mxu0 %v2233
        %v2325 = vpop.f32.mrf.mxu0
        %v2326 = vadd.f32 0.0, %v2325
        %v2327 = vpop.f32.mrf.mxu0
        %v2328 = vadd.f32 0.0, %v2327
        %2329 = vmatprep.mubr.f32.mxu0 0.0
        %2330 = vmatmul.mubr.f32.gmra.mxu0 %v2236
        %v2331 = vpop.f32.mrf.mxu0
        %v2332 = vadd.f32 0.0, %v2331
        %v2333 = vpop.f32.mrf.mxu0
        %v2334 = vadd.f32 0.0, %v2333
        %2335 = vmatprep.mubr.f32.mxu0 0.0
        %2336 = vmatmul.mubr.f32.gmra.mxu0 %v2239
        %v2337 = vpop.f32.mrf.mxu0
        %v2338 = vadd.f32 0.0, %v2337
        %v2339 = vpop.f32.mrf.mxu0
        %v2340 = vadd.f32 0.0, %v2339
        %2341 = vmatprep.mubr.f32.mxu0 0.0
        %2342 = vmatmul.mubr.f32.gmra.mxu0 %v2242
        %v2343 = vpop.f32.mrf.mxu0
        %v2344 = vadd.f32 0.0, %v2343
        %v2345 = vpop.f32.mrf.mxu0
        %v2346 = vadd.f32 0.0, %v2345
        %2347 = vmatprep.mubr.f32.mxu0 0.0
        %2348 = vmatmul.mubr.f32.gmra.mxu0 %v2245
        %v2349 = vpop.f32.mrf.mxu0
        %v2350 = vadd.f32 0.0, %v2349
        %v2351 = vpop.f32.mrf.mxu0
        %v2352 = vadd.f32 0.0, %v2351
        %2353 = vmatprep.mubr.f32.mxu0 0.0
        %2354 = vmatmul.mubr.f32.gmra.mxu0 %v2248
        %v2355 = vpop.f32.mrf.mxu0
        %v2356 = vadd.f32 0.0, %v2355
        %v2357 = vpop.f32.mrf.mxu0
        %v2358 = vadd.f32 0.0, %v2357
        %2359 = vmatprep.mubr.f32.mxu0 0.0
        %2360 = vmatmul.mubr.f32.gmra.mxu0 %v2251
        %v2361 = vpop.f32.mrf.mxu0
        %v2362 = vadd.f32 0.0, %v2361
        %v2363 = vpop.f32.mrf.mxu0
        %v2364 = vadd.f32 0.0, %v2363
        %2365 = vdwg.mxu0
        %v2366 = vld [vmem:[%s11] sm:$0xff]
        %v2367 = vmul.f32 %v2320, %v1364
        %v2368 = vmul.f32 %v2322, %v1365
        %v2369 = vmul.f32 %v2326, %v1366
        %v2370 = vmul.f32 %v2328, %v1367
        %v2371 = vmul.f32 %v2332, %v1368
        %v2372 = vmul.f32 %v2334, %v1369
        %v2373 = vmul.f32 %v2338, %v1370
        %v2374 = vmul.f32 %v2340, %v1371
        %v2375 = vmul.f32 %v2344, %v1372
        %v2376 = vmul.f32 %v2346, %v1373
        %v2377 = vmul.f32 %v2350, %v1374
        %v2378 = vmul.f32 %v2352, %v1375
        %v2379 = vmul.f32 %v2356, %v1376
        %v2380 = vmul.f32 %v2358, %v1377
        %v2381 = vmul.f32 %v2362, %v1378
        %v2382 = vmul.f32 %v2364, %v1379
        %vm2383 = vcmask 523264
        %v2385 = vsel %vm2383, %v2366, 0
        %2387 = vmatprep.subr.mxu0 0.0
        %2388 = vmatpush1.msra.mxu0 0.0
        %2389 = vmatprep.subr.mxu0 0.0
        %2390 = vmatpush1.msra.mxu0 0.0
        %2391 = vmatprep.subr.mxu0 0.0
        %2392 = vmatpush1.msra.mxu0 0.0
        %2393 = vmatprep.subr.mxu0 0.0
        %2394 = vmatpush1.msra.mxu0 0.0
        %2395 = vmatprep.subr.mxu0 0.0
        %2396 = vmatpush1.msra.mxu0 0.0
        %2397 = vmatprep.subr.mxu0 0.0
        %2398 = vmatpush1.msra.mxu0 0.0
        %2399 = vmatprep.subr.mxu0 0.0
        %2400 = vmatpush1.msra.mxu0 0.0
        %2401 = vmatprep.subr.mxu0 0.0
        %2402 = vmatpush1.msra.mxu0 0.0
        %2403 = vmatprep.subr.mxu0 %v2382
        %2404 = vmatpush1.msra.mxu0 %v2381
        %2405 = vmatprep.subr.mxu0 %v2380
        %2406 = vmatpush1.msra.mxu0 %v2379
        %2407 = vmatprep.subr.mxu0 %v2378
        %2408 = vmatpush1.msra.mxu0 %v2377
        %2409 = vmatprep.subr.mxu0 %v2376
        %2410 = vmatpush1.msra.mxu0 %v2375
        %2411 = vmatprep.subr.mxu0 %v2374
        %2412 = vmatpush1.msra.mxu0 %v2373
        %2413 = vmatprep.subr.mxu0 %v2372
        %2414 = vmatpush1.msra.mxu0 %v2371
        %2415 = vmatprep.subr.mxu0 %v2370
        %2416 = vmatpush1.msra.mxu0 %v2369
        %2417 = vmatprep.subr.mxu0 %v2368
        %2418 = vmatpush1.msra.mxu0 %v2367
        %2419 = vmatprep.subr.mxu0 0.0
        %2420 = vmatpush2.msra.mxu0 0.0
        %2421 = vmatprep.subr.mxu0 0.0
        %2422 = vmatpush2.msra.mxu0 0.0
        %2423 = vmatprep.subr.mxu0 0.0
        %2424 = vmatpush2.msra.mxu0 0.0
        %2425 = vmatprep.subr.mxu0 0.0
        %2426 = vmatpush2.msra.mxu0 0.0
        %2427 = vmatprep.subr.mxu0 0.0
        %2428 = vmatpush2.msra.mxu0 0.0
        %2429 = vmatprep.subr.mxu0 0.0
        %2430 = vmatpush2.msra.mxu0 0.0
        %2431 = vmatprep.subr.mxu0 0.0
        %2432 = vmatpush2.msra.mxu0 0.0
        %2433 = vmatprep.subr.mxu0 0.0
        %2434 = vmatpush2.msra.mxu0 0.0
        %2435 = vmatprep.subr.mxu0 0.0
        %2436 = vmatpush2.msra.mxu0 0.0
        %2437 = vmatprep.subr.mxu0 0.0
        %2438 = vmatpush2.msra.mxu0 0.0
        %2439 = vmatprep.subr.mxu0 0.0
        %2440 = vmatpush2.msra.mxu0 0.0
        %2441 = vmatprep.subr.mxu0 0.0
        %2442 = vmatpush2.msra.mxu0 0.0
        %2443 = vmatprep.subr.mxu0 0.0
        %2444 = vmatpush2.msra.mxu0 0.0
        %2445 = vmatprep.subr.mxu0 0.0
        %2446 = vmatpush2.msra.mxu0 0.0
        %2447 = vmatprep.subr.mxu0 0.0
        %2448 = vmatpush2.msra.mxu0 0.0
        %2449 = vmatprep.subr.mxu0 0.0
        %2450 = vmatpush2.msra.mxu0 0.0
        %2451 = vmatprep.mubr.f32.mxu0 0.0
        %2452 = vmatmul.mubr.f32.gmra.mxu0 %v2385
        %v2453 = vpop.f32.mrf.mxu0
        %v2454 = vadd.f32 0.0, %v2453
        %v2455 = vpop.f32.mrf.mxu0
        %v2456 = vadd.f32 0.0, %v2455
        %2457 = vdwg.mxu0
        %2458 = vmatprep.subr.mxu0 0.0
        %2459 = vmatpush1.msra.mxu0 0.0
        %2460 = vmatprep.subr.mxu0 0.0
        %2461 = vmatpush1.msra.mxu0 0.0
        %2462 = vmatprep.subr.mxu0 0.0
        %2463 = vmatpush1.msra.mxu0 0.0
        %2464 = vmatprep.subr.mxu0 0.0
        %2465 = vmatpush1.msra.mxu0 0.0
        %2466 = vmatprep.subr.mxu0 0.0
        %2467 = vmatpush1.msra.mxu0 0.0
        %2468 = vmatprep.subr.mxu0 0.0
        %2469 = vmatpush1.msra.mxu0 0.0
        %2470 = vmatprep.subr.mxu0 0.0
        %2471 = vmatpush1.msra.mxu0 0.0
        %2472 = vmatprep.subr.mxu0 0.0
        %2473 = vmatpush1.msra.mxu0 0.0
        %2474 = vmatprep.subr.mxu0 0.0
        %2475 = vmatpush1.msra.mxu0 %v1347
        %2476 = vmatprep.subr.mxu0 0.0
        %2477 = vmatpush1.msra.mxu0 %v1346
        %2478 = vmatprep.subr.mxu0 0.0
        %2479 = vmatpush1.msra.mxu0 %v1345
        %2480 = vmatprep.subr.mxu0 0.0
        %2481 = vmatpush1.msra.mxu0 %v1344
        %2482 = vmatprep.subr.mxu0 0.0
        %2483 = vmatpush1.msra.mxu0 %v1343
        %2484 = vmatprep.subr.mxu0 0.0
        %2485 = vmatpush1.msra.mxu0 %v1342
        %2486 = vmatprep.subr.mxu0 0.0
        %2487 = vmatpush1.msra.mxu0 %v1341
        %2488 = vmatprep.subr.mxu0 0.0
        %2489 = vmatpush1.msra.mxu0 %v1340
        %2490 = vmatprep.subr.mxu0 0.0
        %2491 = vmatpush2.msra.mxu0 0.0
        %2492 = vmatprep.subr.mxu0 0.0
        %2493 = vmatpush2.msra.mxu0 0.0
        %2494 = vmatprep.subr.mxu0 0.0
        %2495 = vmatpush2.msra.mxu0 0.0
        %2496 = vmatprep.subr.mxu0 0.0
        %2497 = vmatpush2.msra.mxu0 0.0
        %2498 = vmatprep.subr.mxu0 0.0
        %2499 = vmatpush2.msra.mxu0 0.0
        %2500 = vmatprep.subr.mxu0 0.0
        %2501 = vmatpush2.msra.mxu0 0.0
        %2502 = vmatprep.subr.mxu0 0.0
        %2503 = vmatpush2.msra.mxu0 0.0
        %2504 = vmatprep.subr.mxu0 0.0
        %2505 = vmatpush2.msra.mxu0 0.0
        %2506 = vmatprep.subr.mxu0 0.0
        %2507 = vmatpush2.msra.mxu0 0.0
        %2508 = vmatprep.subr.mxu0 0.0
        %2509 = vmatpush2.msra.mxu0 0.0
        %2510 = vmatprep.subr.mxu0 0.0
        %2511 = vmatpush2.msra.mxu0 0.0
        %2512 = vmatprep.subr.mxu0 0.0
        %2513 = vmatpush2.msra.mxu0 0.0
        %2514 = vmatprep.subr.mxu0 0.0
        %2515 = vmatpush2.msra.mxu0 0.0
        %2516 = vmatprep.subr.mxu0 0.0
        %2517 = vmatpush2.msra.mxu0 0.0
        %2518 = vmatprep.subr.mxu0 0.0
        %2519 = vmatpush2.msra.mxu0 0.0
        %2520 = vmatprep.subr.mxu0 0.0
        %2521 = vmatpush2.msra.mxu0 0.0
        %2522 = vmatprep.mubr.f32.mxu0 0.0
        %2523 = vmatmul.mubr.f32.gmra.mxu0 %v2385
        %v2524 = vpop.f32.mrf.mxu0
        %v2525 = vadd.f32 0.0, %v2524
        %v2526 = vpop.f32.mrf.mxu0
        %2527 = vdwg.mxu0
        %v2528 = vmax.f32 %v2525, 1e-38
        %v2529 = vrcp.pop %v2528
        %v2531 = vsel %vm2228, %v2529, 0
        %2533 = vmatprep.subr.mxu0 0.0
        %2534 = vmatpush1.msra.mxu0 0.0
        %2535 = vmatprep.subr.mxu0 0.0
        %2536 = vmatpush1.msra.mxu0 0.0
        %2537 = vmatprep.subr.mxu0 0.0
        %2538 = vmatpush1.msra.mxu0 0.0
        %2539 = vmatprep.subr.mxu0 0.0
        %2540 = vmatpush1.msra.mxu0 0.0
        %2541 = vmatprep.subr.mxu0 0.0
        %2542 = vmatpush1.msra.mxu0 0.0
        %2543 = vmatprep.subr.mxu0 0.0
        %2544 = vmatpush1.msra.mxu0 0.0
        %2545 = vmatprep.subr.mxu0 0.0
        %2546 = vmatpush1.msra.mxu0 0.0
        %2547 = vmatprep.subr.mxu0 0.0
        %2548 = vmatpush1.msra.mxu0 0.0
        %2549 = vmatprep.subr.mxu0 0.0
        %2550 = vmatpush1.msra.mxu0 0.0
        %2551 = vmatprep.subr.mxu0 0.0
        %2552 = vmatpush1.msra.mxu0 0.0
        %2553 = vmatprep.subr.mxu0 0.0
        %2554 = vmatpush1.msra.mxu0 0.0
        %2555 = vmatprep.subr.mxu0 0.0
        %2556 = vmatpush1.msra.mxu0 0.0
        %2557 = vmatprep.subr.mxu0 0.0
        %2558 = vmatpush1.msra.mxu0 0.0
        %2559 = vmatprep.subr.mxu0 0.0
        %2560 = vmatpush1.msra.mxu0 0.0
        %2561 = vmatprep.subr.mxu0 0.0
        %2562 = vmatpush1.msra.mxu0 0.0
        %2563 = vmatprep.subr.mxu0 %v2227
        %2564 = vmatpush1.msra.mxu0 %v2226
        %2565 = vmatprep.subr.mxu0 0.0
        %2566 = vmatpush2.msra.mxu0 0.0
        %2567 = vmatprep.subr.mxu0 0.0
        %2568 = vmatpush2.msra.mxu0 0.0
        %2569 = vmatprep.subr.mxu0 0.0
        %2570 = vmatpush2.msra.mxu0 0.0
        %2571 = vmatprep.subr.mxu0 0.0
        %2572 = vmatpush2.msra.mxu0 0.0
        %2573 = vmatprep.subr.mxu0 0.0
        %2574 = vmatpush2.msra.mxu0 0.0
        %2575 = vmatprep.subr.mxu0 0.0
        %2576 = vmatpush2.msra.mxu0 0.0
        %2577 = vmatprep.subr.mxu0 0.0
        %2578 = vmatpush2.msra.mxu0 0.0
        %2579 = vmatprep.subr.mxu0 0.0
        %2580 = vmatpush2.msra.mxu0 0.0
        %2581 = vmatprep.subr.mxu0 0.0
        %2582 = vmatpush2.msra.mxu0 0.0
        %2583 = vmatprep.subr.mxu0 0.0
        %2584 = vmatpush2.msra.mxu0 0.0
        %2585 = vmatprep.subr.mxu0 0.0
        %2586 = vmatpush2.msra.mxu0 0.0
        %2587 = vmatprep.subr.mxu0 0.0
        %2588 = vmatpush2.msra.mxu0 0.0
        %2589 = vmatprep.subr.mxu0 0.0
        %2590 = vmatpush2.msra.mxu0 0.0
        %2591 = vmatprep.subr.mxu0 0.0
        %2592 = vmatpush2.msra.mxu0 0.0
        %2593 = vmatprep.subr.mxu0 0.0
        %2594 = vmatpush2.msra.mxu0 0.0
        %2595 = vmatprep.subr.mxu0 0.0
        %2596 = vmatpush2.msra.mxu0 0.0
        %2597 = vmatprep.mubr.f32.mxu0 0.0
        %2598 = vmatmul.mubr.f32.gmra.mxu0 %v2531
        %v2599 = vpop.f32.mrf.mxu0
        %v2600 = vadd.f32 0.0, %v2599
        %v2601 = vpop.f32.mrf.mxu0
        %v2602 = vadd.f32 0.0, %v2601
        %2603 = vdwg.mxu0
        %v2604 = vmul.f32 %v2454, %v2600
        %v2605 = vmul.f32 %v2456, %v2602
        %2606 = vst [vmem:[%s435] sm:$0xff] %v2604
        %2607 = vst [vmem:[%s435 + $0x8] sm:$0xff] %v2605
        %s2608 = sand.u32 %s297, 1
        %s2609 = scalar_lea.sflag [#allocation4], %s2608
        %s2610 = sand.u32 %s297, 1
        %s2611 = smul.addr %s2610, 16
        %s2612 = scalar_lea.vmem [#allocation5], %s2611
        // Predicated region
        $region73: #{tpu_custom_call.1} parent=67 // pred_check
          %p2613 = pneg %p307
        $region74: #{tpu_custom_call.1} parent=67 // pred_check_branch
          %2615 = sbr.rel (%p2613) target = $region76
        $region75: #{tpu_custom_call.1} parent=67 // pred_region
          %s2617 = ssub.s32 256, 256
          %2618 = vsyncadd %s2609, %s2617
          %s2619 = smul.addr %s27, 2
          %s2620 = smul.addr %s2619, 128
          %s2621 = scalar_lea.hbm %s12, %s2620
          %s2623 = sshll.u32 %s2612, 4
          %s2624 = int_to_ptr.vmem [resolvable:$true] %s2623
          %2626 = dma.vmem_to_hbm [thread:$0]  %s2624, 256, %s2621, %s2609
        $region76: #{tpu_custom_call.1} parent=67 // pred_fallthru
          _
      $region68: #{tpu_custom_call.1} parent=5 // pred_fallthru
        _
      %p2627 = scmp.le.s32.totalorder 2, %s22
      // Predicated region
      $region77: #{tpu_custom_call.1} parent=5 // pred_check
        %p2628 = pneg %p2627
      $region78: #{tpu_custom_call.1} parent=5 // pred_check_branch
        %2630 = sbr.rel (%p2628) target = $region80
      $region79: #{tpu_custom_call.1} parent=5 // pred_region
        %s2631 = ssub.s32 %s22, 2
        // Predicated region
        $region81: #{tpu_custom_call.1} parent=79 // pred_check
          %p2632 = pneg %p313
        $region82: #{tpu_custom_call.1} parent=79 // pred_check_branch
          %2634 = sbr.rel (%p2632) target = $region84
        $region83: #{tpu_custom_call.1} parent=79 // pred_region
          %s2635 = sand.u32 %s298, 1
          %s2636 = scalar_lea.sflag [#allocation4], %s2635
          %s2637 = sand.u32 %s298, 1
          %s2638 = smul.addr %s2637, 16
          %s2639 = scalar_lea.vmem [#allocation5], %s2638
          %2640 = dma.done %s2636, 256
        $region84: #{tpu_custom_call.1} parent=79 // pred_fallthru
          _
      $region80: #{tpu_custom_call.1} parent=5 // pred_fallthru
        _
    $region6: #{tpu_custom_call.1} parent=1 // loop_footer
      %s26 = sadd.s32 1, %s22
    $region7: #{tpu_custom_call.1} parent=1 // loop_footer_branch
      %21 = sbr.rel target = $region3
    $region8: #{tpu_custom_call.1} parent=1 // loop_exit
      _
    %2641 = vsyncpa [#allocation3], 1
    %s2642 = scalar_lea.sflag [#allocation3], 1
    %2643 = vsyncpa %s2642, 1
    %2644 = vsyncpa [#allocation4], 1
    %s2645 = scalar_lea.sflag [#allocation4], 1
    %2646 = vsyncpa %s2645, 1

</llo_original>
